<compile_context>
chip_gen: v7x
topology: tpu7x:2x2x1
jax: 0.10.0
libtpu: 0.0.40
codegen_flags: <defaults>
</compile_context>

<pallas_src>
import functools
import math

import numpy as np
import jax
import jax.numpy as jnp
from jax import lax
from jax.experimental import pallas as pl
from jax.experimental.pallas import tpu as pltpu


# ----------------------------------------------------------------------------
# Fused Pallas kernel: the entire encoder for one batch-tile
# ----------------------------------------------------------------------------

def _encoder_fused_kernel(x_ref, w_ref, b_ref, m_ref, *rest, plan, n_down):
    """refs = (x, weight_slab, bias_slab, mask_slab, *downsample_mats, out).

    x_ref : (width, N0) f32, batch packed into lanes, channels zero-padded.
    w_ref : (R, width) bf16 -- every conv tap's (C_out, width) matrix stacked.
    b_ref : (maxC, n_convs) f32 -- one bias column per conv layer.
    m_ref : (n_masks, N0) f32 -- 0/1 boundary masks (padding + per-sequence
            isolation) for each unique (stage length, tap offset).
    downsample mats : (N_in, N_out) bf16 0/1, one per strided down-conv.
    """
    d_refs = rest[:n_down]
    out_ref = rest[n_down]

    w_all = w_ref[...]          # bf16 weight slab (resident for whole kernel)
    b_all = b_ref[...]          # f32 bias slab
    m_all = m_ref[...]          # f32 boundary masks

    def bias_col(col, c_out):
        return b_all[:c_out, col:col + 1]                       # (c_out, 1)

    def conv_taps(a, taps, c_out, n):
        """sum_tau W_tau @ maskshift_tau(a): per-tap MXU accumulate (no concat,
        no selection matmuls).  Shift = lane roll (XLU), padding / sequence
        isolation = 0/1 mask (VPU), contraction = bf16 MXU, f32 accumulate."""
        acc = None
        for (row, off, mrow) in taps:
            w_t = w_all[row:row + c_out, :]                     # (c_out, K) bf16
            if off == 0:
                op = a
            else:
                op = pltpu.roll(a, shift=(-off) % n, axis=1)
                op = op * m_all[mrow:mrow + 1, :n]
            p = jnp.dot(w_t, op.astype(jnp.bfloat16),
                        preferred_element_type=jnp.float32)
            acc = p if acc is None else acc + p
        return acc

    h = x_ref[...]                                              # (width, N0) f32

    for entry in plan:
        kind = entry[0]
        if kind == "conv":            # stride-1, length-preserving conv
            _, taps, bcol, c_out, n, relu = entry
            y = conv_taps(h, taps, c_out, n) + bias_col(bcol, c_out)
            h = jnp.maximum(y, 0.0) if relu else y
        elif kind == "down":          # strided down-conv
            _, taps, bcol, c_out, n_in, n_out, d_idx = entry
            y = conv_taps(h, taps, c_out, n_in) + bias_col(bcol, c_out)
            # Lane downsample: ONE bf16 0/1 selection matmul per down block
            # (also re-packs sequences contiguously).
            # TODO(synk): for large B*L replace with a strided-copy even/odd
            # deinterleave to avoid this O(N_in*N_out) data-movement matmul.
            h = jnp.dot(y.astype(jnp.bfloat16), d_refs[d_idx][...],
                        preferred_element_type=jnp.float32)
        else:                         # "res": x + conv1x1(relu(conv3_d(relu(x))))
            _, taps1, bcol1, w2_row, bcol2, c, n = entry
            a = jnp.maximum(h, 0.0)
            t = conv_taps(a, taps1, c, n) + bias_col(bcol1, c)
            t = jnp.maximum(t, 0.0).astype(jnp.bfloat16)
            w2 = w_all[w2_row:w2_row + c, :]
            h = (h + jnp.dot(w2, t, preferred_element_type=jnp.float32)
                 + bias_col(bcol2, c))

    out_ref[...] = h.astype(out_ref.dtype)


# ----------------------------------------------------------------------------
# One-time layout preparation (weight/bias/mask slabs, downsample matrices)
# ----------------------------------------------------------------------------

def prepare_encoder(params, *, B_tile, L, stride_t):
    """Fold all parameters into packed slabs and build the static layer plan.

    Called once.  Per-tile sizes: a tile holds B_tile whole sequences, so
    convolutions never cross a grid-tile boundary."""
    conv_in_w, conv_in_b = params["conv_in"]
    width = int(conv_in_w.shape[0])
    c_in = int(conv_in_w.shape[1])
    out_w, out_b = params["conv_out"]
    c_final = int(out_w.shape[0])
    maxC = max(width, c_final)
    N0 = B_tile * L

    w_rows, biases, mask_rows, d_mats, plan = [], [], [], [], []
    mask_index = {}
    n_wrows = [0]
    flops = [0]

    def add_bias(b):
        col = len(biases)
        bb = np.zeros((maxC,), np.float32)
        b = np.asarray(b, np.float32)
        bb[:b.shape[0]] = b
        biases.append(bb)
        return col

    def add_mask(L_stage, off):
        key = (L_stage, off)
        if key not in mask_index:
            l = np.arange(L_stage)
            seg = ((l + off >= 0) & (l + off < L_stage)).astype(np.float32)
            row = np.zeros((N0,), np.float32)
            row[:B_tile * L_stage] = np.tile(seg, B_tile)
            mask_index[key] = len(mask_rows)
            mask_rows.append(row)
        return mask_index[key]

    def add_taps(w, dil, pad, L_stage):
        """Append per-tap (C_out, width) weight matrices (C_in zero-padded to
        width) to the slab; return static (row_offset, lane_offset, mask_row)."""
        w = np.asarray(w, np.float32)
        c_out, c_in_l, k = w.shape
        taps = []
        for tau in range(k):
            row = n_wrows[0]
            wt = np.zeros((c_out, width), np.float32)
            wt[:, :c_in_l] = w[:, :, tau]
            w_rows.append(wt)
            n_wrows[0] += c_out
            off = tau * dil - pad
            taps.append((row, off, -1 if off == 0 else add_mask(L_stage, off)))
        return tuple(taps)

    Lc = L

    # conv_in : k=3, s=1, p=1, + ReLU
    taps = add_taps(conv_in_w, 1, 1, Lc)
    plan.append(("conv", taps, add_bias(conv_in_b), width, B_tile * Lc, True))
    flops[0] += 2 * 3 * width * width * B_tile * Lc

    filter_t, pad_t = stride_t * 2, stride_t // 2
    for blk in params["blocks"]:
        # strided down-conv : k=2*stride_t, s=stride_t, p=stride_t//2
        w, b = blk["down"]
        taps = add_taps(w, 1, pad_t, Lc)
        bcol = add_bias(b)
        L_out = (Lc + 2 * pad_t - filter_t) // stride_t + 1
        D = np.zeros((B_tile * Lc, B_tile * L_out), np.float32)
        for s in range(B_tile):
            for t in range(L_out):
                D[s * Lc + stride_t * t, s * L_out + t] = 1.0
        d_idx = len(d_mats)
        d_mats.append(D)
        plan.append(("down", taps, bcol, width,
                     B_tile * Lc, B_tile * L_out, d_idx))
        flops[0] += 2 * filter_t * width * width * B_tile * Lc
        flops[0] += 2 * width * (B_tile * Lc) * (B_tile * L_out)
        Lc = L_out

        # Resnet1D : depth x [ x + conv1x1(relu(conv3_dilated(relu(x)))) ]
        for (w1, b1, w2, b2, d) in blk["res"]:
            taps1 = add_taps(w1, d, d, Lc)
            bcol1 = add_bias(b1)
            w2_row = n_wrows[0]
            wt2 = np.zeros((width, width), np.float32)
            wt2[:, :] = np.asarray(w2, np.float32)[:, :, 0]
            w_rows.append(wt2)
            n_wrows[0] += width
            bcol2 = add_bias(b2)
            plan.append(("res", taps1, bcol1, w2_row, bcol2,
                         width, B_tile * Lc))
            flops[0] += 2 * 4 * width * width * B_tile * Lc

    # conv_out : k=3, s=1, p=1  (no activation)
    taps = add_taps(out_w, 1, 1, Lc)
    plan.append(("conv", taps, add_bias(out_b), c_final, B_tile * Lc, False))
    flops[0] += 2 * 3 * width * c_final * B_tile * Lc

    return dict(
        plan=tuple(plan),
        w_slab=jnp.asarray(np.concatenate(w_rows, axis=0), jnp.bfloat16),
        b_slab=jnp.asarray(np.stack(biases, axis=1), jnp.float32),
        m_slab=jnp.asarray(np.stack(mask_rows, axis=0), jnp.float32),
        d_mats=tuple(jnp.asarray(D, jnp.bfloat16) for D in d_mats),
        meta=dict(width=width, c_in=c_in, c_final=c_final, B_tile=B_tile,
                  L=L, L_out=Lc, flops_per_tile=flops[0]),
    )


# ----------------------------------------------------------------------------
# Forward wrapper (grid over batch tiles, lane-packed layout)
# ----------------------------------------------------------------------------

def encoder_forward(prep, x):
    """x: (B, C_in, L) -> (B, output_emb_width, L / stride_t**down_t)."""
    plan, meta = prep["plan"], prep["meta"]
    width, c_in, c_final = meta["width"], meta["c_in"], meta["c_final"]
    B_tile, L, L_out = meta["B_tile"], meta["L"], meta["L_out"]
    B, xc, xl = x.shape
    assert xc == c_in and xl == L and B % B_tile == 0

    n_tiles = B // B_tile
    N_tile, N_out_tile = B_tile * L, B_tile * L_out

    # Pack batch into the lane axis; zero-pad channels to `width` so every MXU
    # contraction has K = width.  Layout plumbing only (outside the kernel).
    x2d = jnp.transpose(x, (1, 0, 2)).reshape(c_in, B * L)
    x_packed = jnp.pad(x2d, ((0, width - c_in), (0, 0))).astype(jnp.float32)

    w_slab, b_slab, m_slab = prep["w_slab"], prep["b_slab"], prep["m_slab"]
    d_mats = prep["d_mats"]

    def const_spec(a):
        return pl.BlockSpec(a.shape, lambda i: (0, 0))

    in_specs = [pl.BlockSpec((width, N_tile), lambda i: (0, i)),
                const_spec(w_slab), const_spec(b_slab), const_spec(m_slab)]
    in_specs += [const_spec(D) for D in d_mats]

    param_bytes = (w_slab.size * 2 + b_slab.size * 4 + m_slab.size * 4
                   + sum(int(D.size) * 2 for D in d_mats))
    cost = pl.CostEstimate(
        flops=int(meta["flops_per_tile"]) * n_tiles,
        transcendentals=0,
        bytes_accessed=int(x_packed.size * 4 + param_bytes
                           + c_final * B * L_out * 4))

    kern = functools.partial(_encoder_fused_kernel, plan=plan,
                             n_down=len(d_mats))

    out2d = pl.pallas_call(
        kern,
        out_shape=jax.ShapeDtypeStruct((c_final, B * L_out), jnp.float32),
        grid=(n_tiles,),
        in_specs=in_specs,
        out_specs=pl.BlockSpec((c_final, N_out_tile), lambda i: (0, i)),
        compiler_params=pltpu.CompilerParams(
            dimension_semantics=("parallel",),
            vmem_limit_bytes=32 * 1024 * 1024),
        cost_estimate=cost,
    )(x_packed, w_slab, b_slab, m_slab, *d_mats)

    return jnp.transpose(out2d.reshape(c_final, B, L_out), (1, 0, 2))


# ----------------------------------------------------------------------------
# Deterministic parameter init (PyTorch Conv1d default: U(-1/sqrt(fan_in), .))
# ----------------------------------------------------------------------------

def init_conv_params(key, c_out, c_in, k):
    kw, kb = jax.random.split(key)
    bound = 1.0 / math.sqrt(c_in * k)
    w = jax.random.uniform(kw, (c_out, c_in, k), jnp.float32, -bound, bound)
    b = jax.random.uniform(kb, (c_out,), jnp.float32, -bound, bound)
    return w, b


def init_encoder_params(key, *, input_emb_width, output_emb_width, down_t,
                        stride_t, width, depth, dilation_growth_rate):
    n_keys = 2 + down_t * (1 + 2 * depth)
    keys = iter(jax.random.split(key, n_keys))
    params = {}
    params["conv_in"] = init_conv_params(next(keys), width, input_emb_width, 3)
    filter_t = stride_t * 2
    blocks = []
    for _ in range(down_t):
        down = init_conv_params(next(keys), width, width, filter_t)
        # Resnet1D dilations, reversed (reverse_dilation=True)
        dilations = [dilation_growth_rate ** i for i in range(depth)][::-1]
        res = []
        for d in dilations:
            w1, b1 = init_conv_params(next(keys), width, width, 3)
            w2, b2 = init_conv_params(next(keys), width, width, 1)
            res.append((w1, b1, w2, b2, d))
        blocks.append({"down": down, "res": res})
    params["blocks"] = blocks
    params["conv_out"] = init_conv_params(next(keys), output_emb_width, width, 3)
    return params


# ----------------------------------------------------------------------------
# Pure-JAX reference (correctness check only)
# ----------------------------------------------------------------------------

def _conv1d_ref(x, w, b, *, stride=1, padding=0, dilation=1):
    y = lax.conv_general_dilated(
        x, w, window_strides=(stride,), padding=[(padding, padding)],
        rhs_dilation=(dilation,), dimension_numbers=("NCH", "OIH", "NCH"))
    return y + b[None, :, None]


def encoder_forward_ref(params, x, *, stride_t):
    w, b = params["conv_in"]
    y = jax.nn.relu(_conv1d_ref(x, w, b, padding=1))
    for blk in params["blocks"]:
        w, b = blk["down"]
        y = _conv1d_ref(y, w, b, stride=stride_t, padding=stride_t // 2)
        for (w1, b1, w2, b2, d) in blk["res"]:
            h = jax.nn.relu(y)
            h = _conv1d_ref(h, w1, b1, dilation=d, padding=d)
            h = jax.nn.relu(h)
            h = _conv1d_ref(h, w2, b2)
            y = y + h
    w, b = params["conv_out"]
    y = _conv1d_ref(y, w, b, padding=1)
    return y


if __name__ == "__main__":
    # Small config consistent with the module's __init__ signature.
    input_emb_width = 3
    output_emb_width = 32
    down_t = 2
    stride_t = 2
    width = 32
    depth = 2
    dilation_growth_rate = 3

    # B_tile*L / stride_t**down_t = 128 lanes at the deepest stage (lane dense)
    # and B / B_tile = 2 grid steps ("parallel" -> both v7x TensorCores).
    B, L, B_tile = 8, 128, 4

    key = jax.random.PRNGKey(0)
    kp, kx = jax.random.split(key)
    params = init_encoder_params(
        kp, input_emb_width=input_emb_width, output_emb_width=output_emb_width,
        down_t=down_t, stride_t=stride_t, width=width, depth=depth,
        dilation_growth_rate=dilation_growth_rate)

    # x: (B, input_emb_width, L) -- NCL, like PyTorch Conv1d input
    x = jax.random.normal(kx, (B, input_emb_width, L), jnp.float32)

    # One-time layout prep (weight/bias/mask slabs, downsample matrices).
    prep = prepare_encoder(params, B_tile=B_tile, L=L, stride_t=stride_t)

    fwd = jax.jit(lambda xx: encoder_forward(prep, xx))
    out = jax.block_until_ready(fwd(x))

    ref = encoder_forward_ref(params, x, stride_t=stride_t)
    L_out = L // (stride_t ** down_t)
    assert out.shape == (B, output_emb_width, L_out), out.shape
    scale = float(jnp.max(jnp.abs(ref)))
    err = float(jnp.max(jnp.abs(out - ref)))
    # bf16 MXU operands (f32 accumulation) -> loosened tolerance vs f32 ref.
    assert err <= 5e-2 * scale + 1e-3, (err, scale)

    print("KERNEL_OK")
</pallas_src>

<mosaic_0001>
module attributes {stable_mosaic.version = 11 : i64} {
  func.func @_encoder_fused_kernel(%arg0: i32, %arg1: memref<32x512xf32, #tpu.memory_space<vmem>>, %arg2: memref<960x32xbf16, #tpu.memory_space<vmem>>, %arg3: memref<32x12xf32, #tpu.memory_space<vmem>>, %arg4: memref<12x512xf32, #tpu.memory_space<vmem>>, %arg5: memref<512x256xbf16, #tpu.memory_space<vmem>>, %arg6: memref<256x128xbf16, #tpu.memory_space<vmem>>, %arg7: memref<32x128xf32, #tpu.memory_space<vmem>>) attributes {dimension_semantics = [#tpu.dimension_semantics<parallel>], iteration_bounds = array<i64: 2>, scalar_prefetch = 0 : i64, scratch_operands = 0 : i64, tpu.core_type = #tpu.core_type<tc>, window_params = [{transform_indices = @transform_0, window_bounds = array<i64: 32, 512>}, {pipeline_mode = #tpu.pipeline_mode<synchronous>, transform_indices = @transform_1, window_bounds = array<i64: 960, 32>}, {pipeline_mode = #tpu.pipeline_mode<synchronous>, transform_indices = @transform_2, window_bounds = array<i64: 32, 12>}, {pipeline_mode = #tpu.pipeline_mode<synchronous>, transform_indices = @transform_3, window_bounds = array<i64: 12, 512>}, {pipeline_mode = #tpu.pipeline_mode<synchronous>, transform_indices = @transform_4, window_bounds = array<i64: 512, 256>}, {pipeline_mode = #tpu.pipeline_mode<synchronous>, transform_indices = @transform_5, window_bounds = array<i64: 256, 128>}, {transform_indices = @transform_6, window_bounds = array<i64: 32, 128>}]} {
    %c0 = arith.constant 0 : index
    %c0_0 = arith.constant 0 : index
    %0 = vector.load %arg2[%c0, %c0_0] : memref<960x32xbf16, #tpu.memory_space<vmem>>, vector<960x32xbf16>
    %c0_1 = arith.constant 0 : index
    %c0_2 = arith.constant 0 : index
    %1 = vector.load %arg3[%c0_1, %c0_2] : memref<32x12xf32, #tpu.memory_space<vmem>>, vector<32x12xf32>
    %c0_3 = arith.constant 0 : index
    %c0_4 = arith.constant 0 : index
    %2 = vector.load %arg4[%c0_3, %c0_4] : memref<12x512xf32, #tpu.memory_space<vmem>>, vector<12x512xf32>
    %c0_5 = arith.constant 0 : index
    %c0_6 = arith.constant 0 : index
    %3 = vector.load %arg1[%c0_5, %c0_6] : memref<32x512xf32, #tpu.memory_space<vmem>>, vector<32x512xf32>
    %4 = vector.extract_strided_slice %0 {offsets = [0, 0], sizes = [32, 32], strides = [1, 1]} : vector<960x32xbf16> to vector<32x32xbf16>
    %c1_i32 = arith.constant 1 : i32
    %5 = tpu.dynamic_rotate %3 by %c1_i32 dim 1 : vector<32x512xf32>, i32 -> vector<32x512xf32>
    %6 = vector.extract_strided_slice %2 {offsets = [0, 0], sizes = [1, 512], strides = [1, 1]} : vector<12x512xf32> to vector<1x512xf32>
    %7 = vector.broadcast %6 : vector<1x512xf32> to vector<32x512xf32>
    %8 = arith.mulf %5, %7 : vector<32x512xf32>
    %9 = arith.truncf %8 : vector<32x512xf32> to vector<32x512xbf16>
    %cst = arith.constant dense<0.000000e+00> : vector<32x512xf32>
    %10 = tpu.matmul %4, %9, %cst {dimension_numbers = #tpu.dot_dimension_numbers<[1], [0], [0], [1], [0, 0, 1, 1], [], []>} : vector<32x32xbf16>, vector<32x512xbf16>, vector<32x512xf32> -> vector<32x512xf32>
    %11 = vector.extract_strided_slice %0 {offsets = [32, 0], sizes = [32, 32], strides = [1, 1]} : vector<960x32xbf16> to vector<32x32xbf16>
    %12 = arith.truncf %3 : vector<32x512xf32> to vector<32x512xbf16>
    %cst_7 = arith.constant dense<0.000000e+00> : vector<32x512xf32>
    %13 = tpu.matmul %11, %12, %cst_7 {dimension_numbers = #tpu.dot_dimension_numbers<[1], [0], [0], [1], [0, 0, 1, 1], [], []>} : vector<32x32xbf16>, vector<32x512xbf16>, vector<32x512xf32> -> vector<32x512xf32>
    %14 = arith.addf %10, %13 : vector<32x512xf32>
    %15 = vector.extract_strided_slice %0 {offsets = [64, 0], sizes = [32, 32], strides = [1, 1]} : vector<960x32xbf16> to vector<32x32xbf16>
    %c511_i32 = arith.constant 511 : i32
    %16 = tpu.dynamic_rotate %3 by %c511_i32 dim 1 : vector<32x512xf32>, i32 -> vector<32x512xf32>
    %17 = vector.extract_strided_slice %2 {offsets = [1, 0], sizes = [1, 512], strides = [1, 1]} : vector<12x512xf32> to vector<1x512xf32>
    %18 = vector.broadcast %17 : vector<1x512xf32> to vector<32x512xf32>
    %19 = arith.mulf %16, %18 : vector<32x512xf32>
    %20 = arith.truncf %19 : vector<32x512xf32> to vector<32x512xbf16>
    %cst_8 = arith.constant dense<0.000000e+00> : vector<32x512xf32>
    %21 = tpu.matmul %15, %20, %cst_8 {dimension_numbers = #tpu.dot_dimension_numbers<[1], [0], [0], [1], [0, 0, 1, 1], [], []>} : vector<32x32xbf16>, vector<32x512xbf16>, vector<32x512xf32> -> vector<32x512xf32>
    %22 = arith.addf %14, %21 : vector<32x512xf32>
    %23 = vector.extract_strided_slice %1 {offsets = [0, 0], sizes = [32, 1], strides = [1, 1]} : vector<32x12xf32> to vector<32x1xf32>
    %24 = vector.broadcast %23 : vector<32x1xf32> to vector<32x512xf32>
    %25 = arith.addf %22, %24 : vector<32x512xf32>
    %cst_9 = arith.constant 0.000000e+00 : f32
    %26 = vector.broadcast %cst_9 : f32 to vector<32x512xf32>
    %27 = arith.maximumf %25, %26 : vector<32x512xf32>
    %28 = vector.extract_strided_slice %0 {offsets = [96, 0], sizes = [32, 32], strides = [1, 1]} : vector<960x32xbf16> to vector<32x32xbf16>
    %c1_i32_10 = arith.constant 1 : i32
    %29 = tpu.dynamic_rotate %27 by %c1_i32_10 dim 1 : vector<32x512xf32>, i32 -> vector<32x512xf32>
    %30 = vector.extract_strided_slice %2 {offsets = [0, 0], sizes = [1, 512], strides = [1, 1]} : vector<12x512xf32> to vector<1x512xf32>
    %31 = vector.broadcast %30 : vector<1x512xf32> to vector<32x512xf32>
    %32 = arith.mulf %29, %31 : vector<32x512xf32>
    %33 = arith.truncf %32 : vector<32x512xf32> to vector<32x512xbf16>
    %cst_11 = arith.constant dense<0.000000e+00> : vector<32x512xf32>
    %34 = tpu.matmul %28, %33, %cst_11 {dimension_numbers = #tpu.dot_dimension_numbers<[1], [0], [0], [1], [0, 0, 1, 1], [], []>} : vector<32x32xbf16>, vector<32x512xbf16>, vector<32x512xf32> -> vector<32x512xf32>
    %35 = vector.extract_strided_slice %0 {offsets = [128, 0], sizes = [32, 32], strides = [1, 1]} : vector<960x32xbf16> to vector<32x32xbf16>
    %36 = arith.truncf %27 : vector<32x512xf32> to vector<32x512xbf16>
    %cst_12 = arith.constant dense<0.000000e+00> : vector<32x512xf32>
    %37 = tpu.matmul %35, %36, %cst_12 {dimension_numbers = #tpu.dot_dimension_numbers<[1], [0], [0], [1], [0, 0, 1, 1], [], []>} : vector<32x32xbf16>, vector<32x512xbf16>, vector<32x512xf32> -> vector<32x512xf32>
    %38 = arith.addf %34, %37 : vector<32x512xf32>
    %39 = vector.extract_strided_slice %0 {offsets = [160, 0], sizes = [32, 32], strides = [1, 1]} : vector<960x32xbf16> to vector<32x32xbf16>
    %c511_i32_13 = arith.constant 511 : i32
    %40 = tpu.dynamic_rotate %27 by %c511_i32_13 dim 1 : vector<32x512xf32>, i32 -> vector<32x512xf32>
    %41 = vector.extract_strided_slice %2 {offsets = [1, 0], sizes = [1, 512], strides = [1, 1]} : vector<12x512xf32> to vector<1x512xf32>
    %42 = vector.broadcast %41 : vector<1x512xf32> to vector<32x512xf32>
    %43 = arith.mulf %40, %42 : vector<32x512xf32>
    %44 = arith.truncf %43 : vector<32x512xf32> to vector<32x512xbf16>
    %cst_14 = arith.constant dense<0.000000e+00> : vector<32x512xf32>
    %45 = tpu.matmul %39, %44, %cst_14 {dimension_numbers = #tpu.dot_dimension_numbers<[1], [0], [0], [1], [0, 0, 1, 1], [], []>} : vector<32x32xbf16>, vector<32x512xbf16>, vector<32x512xf32> -> vector<32x512xf32>
    %46 = arith.addf %38, %45 : vector<32x512xf32>
    %47 = vector.extract_strided_slice %0 {offsets = [192, 0], sizes = [32, 32], strides = [1, 1]} : vector<960x32xbf16> to vector<32x32xbf16>
    %c510_i32 = arith.constant 510 : i32
    %48 = tpu.dynamic_rotate %27 by %c510_i32 dim 1 : vector<32x512xf32>, i32 -> vector<32x512xf32>
    %49 = vector.extract_strided_slice %2 {offsets = [2, 0], sizes = [1, 512], strides = [1, 1]} : vector<12x512xf32> to vector<1x512xf32>
    %50 = vector.broadcast %49 : vector<1x512xf32> to vector<32x512xf32>
    %51 = arith.mulf %48, %50 : vector<32x512xf32>
    %52 = arith.truncf %51 : vector<32x512xf32> to vector<32x512xbf16>
    %cst_15 = arith.constant dense<0.000000e+00> : vector<32x512xf32>
    %53 = tpu.matmul %47, %52, %cst_15 {dimension_numbers = #tpu.dot_dimension_numbers<[1], [0], [0], [1], [0, 0, 1, 1], [], []>} : vector<32x32xbf16>, vector<32x512xbf16>, vector<32x512xf32> -> vector<32x512xf32>
    %54 = arith.addf %46, %53 : vector<32x512xf32>
    %55 = vector.extract_strided_slice %1 {offsets = [0, 1], sizes = [32, 1], strides = [1, 1]} : vector<32x12xf32> to vector<32x1xf32>
    %56 = vector.broadcast %55 : vector<32x1xf32> to vector<32x512xf32>
    %57 = arith.addf %54, %56 : vector<32x512xf32>
    %58 = arith.truncf %57 : vector<32x512xf32> to vector<32x512xbf16>
    %c0_16 = arith.constant 0 : index
    %c0_17 = arith.constant 0 : index
    %59 = vector.load %arg5[%c0_16, %c0_17] : memref<512x256xbf16, #tpu.memory_space<vmem>>, vector<512x256xbf16>
    %cst_18 = arith.constant dense<0.000000e+00> : vector<32x256xf32>
    %60 = tpu.matmul %58, %59, %cst_18 {dimension_numbers = #tpu.dot_dimension_numbers<[1], [0], [0], [1], [0, 0, 1, 1], [], []>} : vector<32x512xbf16>, vector<512x256xbf16>, vector<32x256xf32> -> vector<32x256xf32>
    %cst_19 = arith.constant 0.000000e+00 : f32
    %61 = vector.broadcast %cst_19 : f32 to vector<32x256xf32>
    %62 = arith.maximumf %60, %61 : vector<32x256xf32>
    %63 = vector.extract_strided_slice %0 {offsets = [224, 0], sizes = [32, 32], strides = [1, 1]} : vector<960x32xbf16> to vector<32x32xbf16>
    %c3_i32 = arith.constant 3 : i32
    %64 = tpu.dynamic_rotate %62 by %c3_i32 dim 1 : vector<32x256xf32>, i32 -> vector<32x256xf32>
    %65 = vector.extract_strided_slice %2 {offsets = [3, 0], sizes = [1, 256], strides = [1, 1]} : vector<12x512xf32> to vector<1x256xf32>
    %66 = vector.broadcast %65 : vector<1x256xf32> to vector<32x256xf32>
    %67 = arith.mulf %64, %66 : vector<32x256xf32>
    %68 = arith.truncf %67 : vector<32x256xf32> to vector<32x256xbf16>
    %cst_20 = arith.constant dense<0.000000e+00> : vector<32x256xf32>
    %69 = tpu.matmul %63, %68, %cst_20 {dimension_numbers = #tpu.dot_dimension_numbers<[1], [0], [0], [1], [0, 0, 1, 1], [], []>} : vector<32x32xbf16>, vector<32x256xbf16>, vector<32x256xf32> -> vector<32x256xf32>
    %70 = vector.extract_strided_slice %0 {offsets = [256, 0], sizes = [32, 32], strides = [1, 1]} : vector<960x32xbf16> to vector<32x32xbf16>
    %71 = arith.truncf %62 : vector<32x256xf32> to vector<32x256xbf16>
    %cst_21 = arith.constant dense<0.000000e+00> : vector<32x256xf32>
    %72 = tpu.matmul %70, %71, %cst_21 {dimension_numbers = #tpu.dot_dimension_numbers<[1], [0], [0], [1], [0, 0, 1, 1], [], []>} : vector<32x32xbf16>, vector<32x256xbf16>, vector<32x256xf32> -> vector<32x256xf32>
    %73 = arith.addf %69, %72 : vector<32x256xf32>
    %74 = vector.extract_strided_slice %0 {offsets = [288, 0], sizes = [32, 32], strides = [1, 1]} : vector<960x32xbf16> to vector<32x32xbf16>
    %c253_i32 = arith.constant 253 : i32
    %75 = tpu.dynamic_rotate %62 by %c253_i32 dim 1 : vector<32x256xf32>, i32 -> vector<32x256xf32>
    %76 = vector.extract_strided_slice %2 {offsets = [4, 0], sizes = [1, 256], strides = [1, 1]} : vector<12x512xf32> to vector<1x256xf32>
    %77 = vector.broadcast %76 : vector<1x256xf32> to vector<32x256xf32>
    %78 = arith.mulf %75, %77 : vector<32x256xf32>
    %79 = arith.truncf %78 : vector<32x256xf32> to vector<32x256xbf16>
    %cst_22 = arith.constant dense<0.000000e+00> : vector<32x256xf32>
    %80 = tpu.matmul %74, %79, %cst_22 {dimension_numbers = #tpu.dot_dimension_numbers<[1], [0], [0], [1], [0, 0, 1, 1], [], []>} : vector<32x32xbf16>, vector<32x256xbf16>, vector<32x256xf32> -> vector<32x256xf32>
    %81 = arith.addf %73, %80 : vector<32x256xf32>
    %82 = vector.extract_strided_slice %1 {offsets = [0, 2], sizes = [32, 1], strides = [1, 1]} : vector<32x12xf32> to vector<32x1xf32>
    %83 = vector.broadcast %82 : vector<32x1xf32> to vector<32x256xf32>
    %84 = arith.addf %81, %83 : vector<32x256xf32>
    %cst_23 = arith.constant 0.000000e+00 : f32
    %85 = vector.broadcast %cst_23 : f32 to vector<32x256xf32>
    %86 = arith.maximumf %84, %85 : vector<32x256xf32>
    %87 = arith.truncf %86 : vector<32x256xf32> to vector<32x256xbf16>
    %88 = vector.extract_strided_slice %0 {offsets = [320, 0], sizes = [32, 32], strides = [1, 1]} : vector<960x32xbf16> to vector<32x32xbf16>
    %cst_24 = arith.constant dense<0.000000e+00> : vector<32x256xf32>
    %89 = tpu.matmul %88, %87, %cst_24 {dimension_numbers = #tpu.dot_dimension_numbers<[1], [0], [0], [1], [0, 0, 1, 1], [], []>} : vector<32x32xbf16>, vector<32x256xbf16>, vector<32x256xf32> -> vector<32x256xf32>
    %90 = arith.addf %60, %89 : vector<32x256xf32>
    %91 = vector.extract_strided_slice %1 {offsets = [0, 3], sizes = [32, 1], strides = [1, 1]} : vector<32x12xf32> to vector<32x1xf32>
    %92 = vector.broadcast %91 : vector<32x1xf32> to vector<32x256xf32>
    %93 = arith.addf %90, %92 : vector<32x256xf32>
    %cst_25 = arith.constant 0.000000e+00 : f32
    %94 = vector.broadcast %cst_25 : f32 to vector<32x256xf32>
    %95 = arith.maximumf %93, %94 : vector<32x256xf32>
    %96 = vector.extract_strided_slice %0 {offsets = [352, 0], sizes = [32, 32], strides = [1, 1]} : vector<960x32xbf16> to vector<32x32xbf16>
    %c1_i32_26 = arith.constant 1 : i32
    %97 = tpu.dynamic_rotate %95 by %c1_i32_26 dim 1 : vector<32x256xf32>, i32 -> vector<32x256xf32>
    %98 = vector.extract_strided_slice %2 {offsets = [5, 0], sizes = [1, 256], strides = [1, 1]} : vector<12x512xf32> to vector<1x256xf32>
    %99 = vector.broadcast %98 : vector<1x256xf32> to vector<32x256xf32>
    %100 = arith.mulf %97, %99 : vector<32x256xf32>
    %101 = arith.truncf %100 : vector<32x256xf32> to vector<32x256xbf16>
    %cst_27 = arith.constant dense<0.000000e+00> : vector<32x256xf32>
    %102 = tpu.matmul %96, %101, %cst_27 {dimension_numbers = #tpu.dot_dimension_numbers<[1], [0], [0], [1], [0, 0, 1, 1], [], []>} : vector<32x32xbf16>, vector<32x256xbf16>, vector<32x256xf32> -> vector<32x256xf32>
    %103 = vector.extract_strided_slice %0 {offsets = [384, 0], sizes = [32, 32], strides = [1, 1]} : vector<960x32xbf16> to vector<32x32xbf16>
    %104 = arith.truncf %95 : vector<32x256xf32> to vector<32x256xbf16>
    %cst_28 = arith.constant dense<0.000000e+00> : vector<32x256xf32>
    %105 = tpu.matmul %103, %104, %cst_28 {dimension_numbers = #tpu.dot_dimension_numbers<[1], [0], [0], [1], [0, 0, 1, 1], [], []>} : vector<32x32xbf16>, vector<32x256xbf16>, vector<32x256xf32> -> vector<32x256xf32>
    %106 = arith.addf %102, %105 : vector<32x256xf32>
    %107 = vector.extract_strided_slice %0 {offsets = [416, 0], sizes = [32, 32], strides = [1, 1]} : vector<960x32xbf16> to vector<32x32xbf16>
    %c255_i32 = arith.constant 255 : i32
    %108 = tpu.dynamic_rotate %95 by %c255_i32 dim 1 : vector<32x256xf32>, i32 -> vector<32x256xf32>
    %109 = vector.extract_strided_slice %2 {offsets = [6, 0], sizes = [1, 256], strides = [1, 1]} : vector<12x512xf32> to vector<1x256xf32>
    %110 = vector.broadcast %109 : vector<1x256xf32> to vector<32x256xf32>
    %111 = arith.mulf %108, %110 : vector<32x256xf32>
    %112 = arith.truncf %111 : vector<32x256xf32> to vector<32x256xbf16>
    %cst_29 = arith.constant dense<0.000000e+00> : vector<32x256xf32>
    %113 = tpu.matmul %107, %112, %cst_29 {dimension_numbers = #tpu.dot_dimension_numbers<[1], [0], [0], [1], [0, 0, 1, 1], [], []>} : vector<32x32xbf16>, vector<32x256xbf16>, vector<32x256xf32> -> vector<32x256xf32>
    %114 = arith.addf %106, %113 : vector<32x256xf32>
    %115 = vector.extract_strided_slice %1 {offsets = [0, 4], sizes = [32, 1], strides = [1, 1]} : vector<32x12xf32> to vector<32x1xf32>
    %116 = vector.broadcast %115 : vector<32x1xf32> to vector<32x256xf32>
    %117 = arith.addf %114, %116 : vector<32x256xf32>
    %cst_30 = arith.constant 0.000000e+00 : f32
    %118 = vector.broadcast %cst_30 : f32 to vector<32x256xf32>
    %119 = arith.maximumf %117, %118 : vector<32x256xf32>
    %120 = arith.truncf %119 : vector<32x256xf32> to vector<32x256xbf16>
    %121 = vector.extract_strided_slice %0 {offsets = [448, 0], sizes = [32, 32], strides = [1, 1]} : vector<960x32xbf16> to vector<32x32xbf16>
    %cst_31 = arith.constant dense<0.000000e+00> : vector<32x256xf32>
    %122 = tpu.matmul %121, %120, %cst_31 {dimension_numbers = #tpu.dot_dimension_numbers<[1], [0], [0], [1], [0, 0, 1, 1], [], []>} : vector<32x32xbf16>, vector<32x256xbf16>, vector<32x256xf32> -> vector<32x256xf32>
    %123 = arith.addf %93, %122 : vector<32x256xf32>
    %124 = vector.extract_strided_slice %1 {offsets = [0, 5], sizes = [32, 1], strides = [1, 1]} : vector<32x12xf32> to vector<32x1xf32>
    %125 = vector.broadcast %124 : vector<32x1xf32> to vector<32x256xf32>
    %126 = arith.addf %123, %125 : vector<32x256xf32>
    %127 = vector.extract_strided_slice %0 {offsets = [480, 0], sizes = [32, 32], strides = [1, 1]} : vector<960x32xbf16> to vector<32x32xbf16>
    %c1_i32_32 = arith.constant 1 : i32
    %128 = tpu.dynamic_rotate %126 by %c1_i32_32 dim 1 : vector<32x256xf32>, i32 -> vector<32x256xf32>
    %129 = vector.extract_strided_slice %2 {offsets = [5, 0], sizes = [1, 256], strides = [1, 1]} : vector<12x512xf32> to vector<1x256xf32>
    %130 = vector.broadcast %129 : vector<1x256xf32> to vector<32x256xf32>
    %131 = arith.mulf %128, %130 : vector<32x256xf32>
    %132 = arith.truncf %131 : vector<32x256xf32> to vector<32x256xbf16>
    %cst_33 = arith.constant dense<0.000000e+00> : vector<32x256xf32>
    %133 = tpu.matmul %127, %132, %cst_33 {dimension_numbers = #tpu.dot_dimension_numbers<[1], [0], [0], [1], [0, 0, 1, 1], [], []>} : vector<32x32xbf16>, vector<32x256xbf16>, vector<32x256xf32> -> vector<32x256xf32>
    %134 = vector.extract_strided_slice %0 {offsets = [512, 0], sizes = [32, 32], strides = [1, 1]} : vector<960x32xbf16> to vector<32x32xbf16>
    %135 = arith.truncf %126 : vector<32x256xf32> to vector<32x256xbf16>
    %cst_34 = arith.constant dense<0.000000e+00> : vector<32x256xf32>
    %136 = tpu.matmul %134, %135, %cst_34 {dimension_numbers = #tpu.dot_dimension_numbers<[1], [0], [0], [1], [0, 0, 1, 1], [], []>} : vector<32x32xbf16>, vector<32x256xbf16>, vector<32x256xf32> -> vector<32x256xf32>
    %137 = arith.addf %133, %136 : vector<32x256xf32>
    %138 = vector.extract_strided_slice %0 {offsets = [544, 0], sizes = [32, 32], strides = [1, 1]} : vector<960x32xbf16> to vector<32x32xbf16>
    %c255_i32_35 = arith.constant 255 : i32
    %139 = tpu.dynamic_rotate %126 by %c255_i32_35 dim 1 : vector<32x256xf32>, i32 -> vector<32x256xf32>
    %140 = vector.extract_strided_slice %2 {offsets = [6, 0], sizes = [1, 256], strides = [1, 1]} : vector<12x512xf32> to vector<1x256xf32>
    %141 = vector.broadcast %140 : vector<1x256xf32> to vector<32x256xf32>
    %142 = arith.mulf %139, %141 : vector<32x256xf32>
    %143 = arith.truncf %142 : vector<32x256xf32> to vector<32x256xbf16>
    %cst_36 = arith.constant dense<0.000000e+00> : vector<32x256xf32>
    %144 = tpu.matmul %138, %143, %cst_36 {dimension_numbers = #tpu.dot_dimension_numbers<[1], [0], [0], [1], [0, 0, 1, 1], [], []>} : vector<32x32xbf16>, vector<32x256xbf16>, vector<32x256xf32> -> vector<32x256xf32>
    %145 = arith.addf %137, %144 : vector<32x256xf32>
    %146 = vector.extract_strided_slice %0 {offsets = [576, 0], sizes = [32, 32], strides = [1, 1]} : vector<960x32xbf16> to vector<32x32xbf16>
    %c254_i32 = arith.constant 254 : i32
    %147 = tpu.dynamic_rotate %126 by %c254_i32 dim 1 : vector<32x256xf32>, i32 -> vector<32x256xf32>
    %148 = vector.extract_strided_slice %2 {offsets = [7, 0], sizes = [1, 256], strides = [1, 1]} : vector<12x512xf32> to vector<1x256xf32>
    %149 = vector.broadcast %148 : vector<1x256xf32> to vector<32x256xf32>
    %150 = arith.mulf %147, %149 : vector<32x256xf32>
    %151 = arith.truncf %150 : vector<32x256xf32> to vector<32x256xbf16>
    %cst_37 = arith.constant dense<0.000000e+00> : vector<32x256xf32>
    %152 = tpu.matmul %146, %151, %cst_37 {dimension_numbers = #tpu.dot_dimension_numbers<[1], [0], [0], [1], [0, 0, 1, 1], [], []>} : vector<32x32xbf16>, vector<32x256xbf16>, vector<32x256xf32> -> vector<32x256xf32>
    %153 = arith.addf %145, %152 : vector<32x256xf32>
    %154 = vector.extract_strided_slice %1 {offsets = [0, 6], sizes = [32, 1], strides = [1, 1]} : vector<32x12xf32> to vector<32x1xf32>
    %155 = vector.broadcast %154 : vector<32x1xf32> to vector<32x256xf32>
    %156 = arith.addf %153, %155 : vector<32x256xf32>
    %157 = arith.truncf %156 : vector<32x256xf32> to vector<32x256xbf16>
    %c0_38 = arith.constant 0 : index
    %c0_39 = arith.constant 0 : index
    %158 = vector.load %arg6[%c0_38, %c0_39] : memref<256x128xbf16, #tpu.memory_space<vmem>>, vector<256x128xbf16>
    %cst_40 = arith.constant dense<0.000000e+00> : vector<32x128xf32>
    %159 = tpu.matmul %157, %158, %cst_40 {dimension_numbers = #tpu.dot_dimension_numbers<[1], [0], [0], [1], [0, 0, 1, 1], [], []>} : vector<32x256xbf16>, vector<256x128xbf16>, vector<32x128xf32> -> vector<32x128xf32>
    %cst_41 = arith.constant 0.000000e+00 : f32
    %160 = vector.broadcast %cst_41 : f32 to vector<32x128xf32>
    %161 = arith.maximumf %159, %160 : vector<32x128xf32>
    %162 = vector.extract_strided_slice %0 {offsets = [608, 0], sizes = [32, 32], strides = [1, 1]} : vector<960x32xbf16> to vector<32x32xbf16>
    %c3_i32_42 = arith.constant 3 : i32
    %163 = tpu.dynamic_rotate %161 by %c3_i32_42 dim 1 : vector<32x128xf32>, i32 -> vector<32x128xf32>
    %164 = vector.extract_strided_slice %2 {offsets = [8, 0], sizes = [1, 128], strides = [1, 1]} : vector<12x512xf32> to vector<1x128xf32>
    %165 = vector.broadcast %164 : vector<1x128xf32> to vector<32x128xf32>
    %166 = arith.mulf %163, %165 : vector<32x128xf32>
    %167 = arith.truncf %166 : vector<32x128xf32> to vector<32x128xbf16>
    %cst_43 = arith.constant dense<0.000000e+00> : vector<32x128xf32>
    %168 = tpu.matmul %162, %167, %cst_43 {dimension_numbers = #tpu.dot_dimension_numbers<[1], [0], [0], [1], [0, 0, 1, 1], [], []>} : vector<32x32xbf16>, vector<32x128xbf16>, vector<32x128xf32> -> vector<32x128xf32>
    %169 = vector.extract_strided_slice %0 {offsets = [640, 0], sizes = [32, 32], strides = [1, 1]} : vector<960x32xbf16> to vector<32x32xbf16>
    %170 = arith.truncf %161 : vector<32x128xf32> to vector<32x128xbf16>
    %cst_44 = arith.constant dense<0.000000e+00> : vector<32x128xf32>
    %171 = tpu.matmul %169, %170, %cst_44 {dimension_numbers = #tpu.dot_dimension_numbers<[1], [0], [0], [1], [0, 0, 1, 1], [], []>} : vector<32x32xbf16>, vector<32x128xbf16>, vector<32x128xf32> -> vector<32x128xf32>
    %172 = arith.addf %168, %171 : vector<32x128xf32>
    %173 = vector.extract_strided_slice %0 {offsets = [672, 0], sizes = [32, 32], strides = [1, 1]} : vector<960x32xbf16> to vector<32x32xbf16>
    %c125_i32 = arith.constant 125 : i32
    %174 = tpu.dynamic_rotate %161 by %c125_i32 dim 1 : vector<32x128xf32>, i32 -> vector<32x128xf32>
    %175 = vector.extract_strided_slice %2 {offsets = [9, 0], sizes = [1, 128], strides = [1, 1]} : vector<12x512xf32> to vector<1x128xf32>
    %176 = vector.broadcast %175 : vector<1x128xf32> to vector<32x128xf32>
    %177 = arith.mulf %174, %176 : vector<32x128xf32>
    %178 = arith.truncf %177 : vector<32x128xf32> to vector<32x128xbf16>
    %cst_45 = arith.constant dense<0.000000e+00> : vector<32x128xf32>
    %179 = tpu.matmul %173, %178, %cst_45 {dimension_numbers = #tpu.dot_dimension_numbers<[1], [0], [0], [1], [0, 0, 1, 1], [], []>} : vector<32x32xbf16>, vector<32x128xbf16>, vector<32x128xf32> -> vector<32x128xf32>
    %180 = arith.addf %172, %179 : vector<32x128xf32>
    %181 = vector.extract_strided_slice %1 {offsets = [0, 7], sizes = [32, 1], strides = [1, 1]} : vector<32x12xf32> to vector<32x1xf32>
    %182 = vector.broadcast %181 : vector<32x1xf32> to vector<32x128xf32>
    %183 = arith.addf %180, %182 : vector<32x128xf32>
    %cst_46 = arith.constant 0.000000e+00 : f32
    %184 = vector.broadcast %cst_46 : f32 to vector<32x128xf32>
    %185 = arith.maximumf %183, %184 : vector<32x128xf32>
    %186 = arith.truncf %185 : vector<32x128xf32> to vector<32x128xbf16>
    %187 = vector.extract_strided_slice %0 {offsets = [704, 0], sizes = [32, 32], strides = [1, 1]} : vector<960x32xbf16> to vector<32x32xbf16>
    %cst_47 = arith.constant dense<0.000000e+00> : vector<32x128xf32>
    %188 = tpu.matmul %187, %186, %cst_47 {dimension_numbers = #tpu.dot_dimension_numbers<[1], [0], [0], [1], [0, 0, 1, 1], [], []>} : vector<32x32xbf16>, vector<32x128xbf16>, vector<32x128xf32> -> vector<32x128xf32>
    %189 = arith.addf %159, %188 : vector<32x128xf32>
    %190 = vector.extract_strided_slice %1 {offsets = [0, 8], sizes = [32, 1], strides = [1, 1]} : vector<32x12xf32> to vector<32x1xf32>
    %191 = vector.broadcast %190 : vector<32x1xf32> to vector<32x128xf32>
    %192 = arith.addf %189, %191 : vector<32x128xf32>
    %cst_48 = arith.constant 0.000000e+00 : f32
    %193 = vector.broadcast %cst_48 : f32 to vector<32x128xf32>
    %194 = arith.maximumf %192, %193 : vector<32x128xf32>
    %195 = vector.extract_strided_slice %0 {offsets = [736, 0], sizes = [32, 32], strides = [1, 1]} : vector<960x32xbf16> to vector<32x32xbf16>
    %c1_i32_49 = arith.constant 1 : i32
    %196 = tpu.dynamic_rotate %194 by %c1_i32_49 dim 1 : vector<32x128xf32>, i32 -> vector<32x128xf32>
    %197 = vector.extract_strided_slice %2 {offsets = [10, 0], sizes = [1, 128], strides = [1, 1]} : vector<12x512xf32> to vector<1x128xf32>
    %198 = vector.broadcast %197 : vector<1x128xf32> to vector<32x128xf32>
    %199 = arith.mulf %196, %198 : vector<32x128xf32>
    %200 = arith.truncf %199 : vector<32x128xf32> to vector<32x128xbf16>
    %cst_50 = arith.constant dense<0.000000e+00> : vector<32x128xf32>
    %201 = tpu.matmul %195, %200, %cst_50 {dimension_numbers = #tpu.dot_dimension_numbers<[1], [0], [0], [1], [0, 0, 1, 1], [], []>} : vector<32x32xbf16>, vector<32x128xbf16>, vector<32x128xf32> -> vector<32x128xf32>
    %202 = vector.extract_strided_slice %0 {offsets = [768, 0], sizes = [32, 32], strides = [1, 1]} : vector<960x32xbf16> to vector<32x32xbf16>
    %203 = arith.truncf %194 : vector<32x128xf32> to vector<32x128xbf16>
    %cst_51 = arith.constant dense<0.000000e+00> : vector<32x128xf32>
    %204 = tpu.matmul %202, %203, %cst_51 {dimension_numbers = #tpu.dot_dimension_numbers<[1], [0], [0], [1], [0, 0, 1, 1], [], []>} : vector<32x32xbf16>, vector<32x128xbf16>, vector<32x128xf32> -> vector<32x128xf32>
    %205 = arith.addf %201, %204 : vector<32x128xf32>
    %206 = vector.extract_strided_slice %0 {offsets = [800, 0], sizes = [32, 32], strides = [1, 1]} : vector<960x32xbf16> to vector<32x32xbf16>
    %c127_i32 = arith.constant 127 : i32
    %207 = tpu.dynamic_rotate %194 by %c127_i32 dim 1 : vector<32x128xf32>, i32 -> vector<32x128xf32>
    %208 = vector.extract_strided_slice %2 {offsets = [11, 0], sizes = [1, 128], strides = [1, 1]} : vector<12x512xf32> to vector<1x128xf32>
    %209 = vector.broadcast %208 : vector<1x128xf32> to vector<32x128xf32>
    %210 = arith.mulf %207, %209 : vector<32x128xf32>
    %211 = arith.truncf %210 : vector<32x128xf32> to vector<32x128xbf16>
    %cst_52 = arith.constant dense<0.000000e+00> : vector<32x128xf32>
    %212 = tpu.matmul %206, %211, %cst_52 {dimension_numbers = #tpu.dot_dimension_numbers<[1], [0], [0], [1], [0, 0, 1, 1], [], []>} : vector<32x32xbf16>, vector<32x128xbf16>, vector<32x128xf32> -> vector<32x128xf32>
    %213 = arith.addf %205, %212 : vector<32x128xf32>
    %214 = vector.extract_strided_slice %1 {offsets = [0, 9], sizes = [32, 1], strides = [1, 1]} : vector<32x12xf32> to vector<32x1xf32>
    %215 = vector.broadcast %214 : vector<32x1xf32> to vector<32x128xf32>
    %216 = arith.addf %213, %215 : vector<32x128xf32>
    %cst_53 = arith.constant 0.000000e+00 : f32
    %217 = vector.broadcast %cst_53 : f32 to vector<32x128xf32>
    %218 = arith.maximumf %216, %217 : vector<32x128xf32>
    %219 = arith.truncf %218 : vector<32x128xf32> to vector<32x128xbf16>
    %220 = vector.extract_strided_slice %0 {offsets = [832, 0], sizes = [32, 32], strides = [1, 1]} : vector<960x32xbf16> to vector<32x32xbf16>
    %cst_54 = arith.constant dense<0.000000e+00> : vector<32x128xf32>
    %221 = tpu.matmul %220, %219, %cst_54 {dimension_numbers = #tpu.dot_dimension_numbers<[1], [0], [0], [1], [0, 0, 1, 1], [], []>} : vector<32x32xbf16>, vector<32x128xbf16>, vector<32x128xf32> -> vector<32x128xf32>
    %222 = arith.addf %192, %221 : vector<32x128xf32>
    %223 = vector.extract_strided_slice %1 {offsets = [0, 10], sizes = [32, 1], strides = [1, 1]} : vector<32x12xf32> to vector<32x1xf32>
    %224 = vector.broadcast %223 : vector<32x1xf32> to vector<32x128xf32>
    %225 = arith.addf %222, %224 : vector<32x128xf32>
    %226 = vector.extract_strided_slice %0 {offsets = [864, 0], sizes = [32, 32], strides = [1, 1]} : vector<960x32xbf16> to vector<32x32xbf16>
    %c1_i32_55 = arith.constant 1 : i32
    %227 = tpu.dynamic_rotate %225 by %c1_i32_55 dim 1 : vector<32x128xf32>, i32 -> vector<32x128xf32>
    %228 = vector.extract_strided_slice %2 {offsets = [10, 0], sizes = [1, 128], strides = [1, 1]} : vector<12x512xf32> to vector<1x128xf32>
    %229 = vector.broadcast %228 : vector<1x128xf32> to vector<32x128xf32>
    %230 = arith.mulf %227, %229 : vector<32x128xf32>
    %231 = arith.truncf %230 : vector<32x128xf32> to vector<32x128xbf16>
    %cst_56 = arith.constant dense<0.000000e+00> : vector<32x128xf32>
    %232 = tpu.matmul %226, %231, %cst_56 {dimension_numbers = #tpu.dot_dimension_numbers<[1], [0], [0], [1], [0, 0, 1, 1], [], []>} : vector<32x32xbf16>, vector<32x128xbf16>, vector<32x128xf32> -> vector<32x128xf32>
    %233 = vector.extract_strided_slice %0 {offsets = [896, 0], sizes = [32, 32], strides = [1, 1]} : vector<960x32xbf16> to vector<32x32xbf16>
    %234 = arith.truncf %225 : vector<32x128xf32> to vector<32x128xbf16>
    %cst_57 = arith.constant dense<0.000000e+00> : vector<32x128xf32>
    %235 = tpu.matmul %233, %234, %cst_57 {dimension_numbers = #tpu.dot_dimension_numbers<[1], [0], [0], [1], [0, 0, 1, 1], [], []>} : vector<32x32xbf16>, vector<32x128xbf16>, vector<32x128xf32> -> vector<32x128xf32>
    %236 = arith.addf %232, %235 : vector<32x128xf32>
    %237 = vector.extract_strided_slice %0 {offsets = [928, 0], sizes = [32, 32], strides = [1, 1]} : vector<960x32xbf16> to vector<32x32xbf16>
    %c127_i32_58 = arith.constant 127 : i32
    %238 = tpu.dynamic_rotate %225 by %c127_i32_58 dim 1 : vector<32x128xf32>, i32 -> vector<32x128xf32>
    %239 = vector.extract_strided_slice %2 {offsets = [11, 0], sizes = [1, 128], strides = [1, 1]} : vector<12x512xf32> to vector<1x128xf32>
    %240 = vector.broadcast %239 : vector<1x128xf32> to vector<32x128xf32>
    %241 = arith.mulf %238, %240 : vector<32x128xf32>
    %242 = arith.truncf %241 : vector<32x128xf32> to vector<32x128xbf16>
    %cst_59 = arith.constant dense<0.000000e+00> : vector<32x128xf32>
    %243 = tpu.matmul %237, %242, %cst_59 {dimension_numbers = #tpu.dot_dimension_numbers<[1], [0], [0], [1], [0, 0, 1, 1], [], []>} : vector<32x32xbf16>, vector<32x128xbf16>, vector<32x128xf32> -> vector<32x128xf32>
    %244 = arith.addf %236, %243 : vector<32x128xf32>
    %245 = vector.extract_strided_slice %1 {offsets = [0, 11], sizes = [32, 1], strides = [1, 1]} : vector<32x12xf32> to vector<32x1xf32>
    %246 = vector.broadcast %245 : vector<32x1xf32> to vector<32x128xf32>
    %247 = arith.addf %244, %246 : vector<32x128xf32>
    %c0_60 = arith.constant 0 : index
    %c0_61 = arith.constant 0 : index
    %248 = vector.load %arg7[%c0_60, %c0_61] : memref<32x128xf32, #tpu.memory_space<vmem>>, vector<32x128xf32>
    tpu.vector_store %arg7[%c0_60, %c0_61], %247 {strides = array<i32>} : memref<32x128xf32, #tpu.memory_space<vmem>>, vector<32x128xf32>,
    return
  }
  func.func @transform_0(%arg0: i32) -> (i32, i32) {
    %c0_i32 = arith.constant 0 : i32
    %c0_i32_0 = arith.constant 0 : i32
    return %c0_i32, %arg0 : i32, i32
  }
  func.func @transform_1(%arg0: i32) -> (i32, i32) {
    %c0_i32 = arith.constant 0 : i32
    %c0_i32_0 = arith.constant 0 : i32
    %c0_i32_1 = arith.constant 0 : i32
    return %c0_i32, %c0_i32_0 : i32, i32
  }
  func.func @transform_2(%arg0: i32) -> (i32, i32) {
    %c0_i32 = arith.constant 0 : i32
    %c0_i32_0 = arith.constant 0 : i32
    %c0_i32_1 = arith.constant 0 : i32
    return %c0_i32, %c0_i32_0 : i32, i32
  }
  func.func @transform_3(%arg0: i32) -> (i32, i32) {
    %c0_i32 = arith.constant 0 : i32
    %c0_i32_0 = arith.constant 0 : i32
    %c0_i32_1 = arith.constant 0 : i32
    return %c0_i32, %c0_i32_0 : i32, i32
  }
  func.func @transform_4(%arg0: i32) -> (i32, i32) {
    %c0_i32 = arith.constant 0 : i32
    %c0_i32_0 = arith.constant 0 : i32
    %c0_i32_1 = arith.constant 0 : i32
    return %c0_i32, %c0_i32_0 : i32, i32
  }
  func.func @transform_5(%arg0: i32) -> (i32, i32) {
    %c0_i32 = arith.constant 0 : i32
    %c0_i32_0 = arith.constant 0 : i32
    %c0_i32_1 = arith.constant 0 : i32
    return %c0_i32, %c0_i32_0 : i32, i32
  }
  func.func @transform_6(%arg0: i32) -> (i32, i32) {
    %c0_i32 = arith.constant 0 : i32
    %c0_i32_0 = arith.constant 0 : i32
    return %c0_i32, %arg0 : i32, i32
  }
}

</mosaic_0001>

<llo_original>
// kernel: _lambda_.1
$region0: #{_lambda_.1}
  #allocation0 [shape = 'u32[]', space=smem, size = 0x4, offset = 0x4, fixed_abs, tag = 'smem constant byte address 0x4 - core index']
  #allocation1 [shape = 'u32[144,128]{1,0:T(1,128)}', space=vmem, size = 0x12000, scoped, tag = 'internal scratch']
  %s0 = inlined_call_operand.vmem [shape: f32[32,1024], index: 0, kind: input, shape index: {}]
  %s1 = inlined_call_operand.vmem [shape: bf16[960,32], index: 1, kind: input, shape index: {}]
  %s2 = inlined_call_operand.vmem [shape: f32[32,12], index: 2, kind: input, shape index: {}]
  %s3 = inlined_call_operand.vmem [shape: f32[12,512], index: 3, kind: input, shape index: {}]
  %s4 = inlined_call_operand.vmem [shape: bf16[512,256], index: 4, kind: input, shape index: {}]
  %s5 = inlined_call_operand.vmem [shape: bf16[256,128], index: 5, kind: input, shape index: {}]
  %s6 = inlined_call_operand.vmem [shape: f32[32,256], index: 6, kind: output, shape index: {}]
  %s7 = sld [smem:[#allocation0]]
  $region114: #{_lambda_.1} parent=0
    _
  %s9 = ssub.s32 1, %s7
  %s10 = scalar_select 0, %s9, %s7
  $region1: #{_lambda_.1} parent=0
    #allocation2 [shape = 'u8[131072]{0}', space=vmem, size = 0x20000, scoped, tag = 'input window, operand 0']
    #allocation3 [shape = 'u8[32768]{0}', space=vmem, size = 0x8000, scoped, tag = 'output window, operand 0']
    loop: start=0, step=1, limit=4
    $region2: #{_lambda_.1} parent=1 // loop_pre_header
      _
    $region3: #{_lambda_.1} parent=1 // loop_header
      %s12 = sphi 0, %s16
      %p13 = scmp.ge.s32.totalorder %s12, 4
      %s22 = sphi 0, %s24
      %s25 = sphi 0, %s22
      %s26 = sphi 0, %s25
      %s42 = sphi 0, %s26
      %s46 = sphi 0, %s46
      %s48 = sphi 0, %s46
      %s49 = sphi 0, %s48
      %s63 = sphi 0, %s49
      %s67 = sphi 0, %s67
      %s69 = sphi 0, %s67
      %s70 = sphi 0, %s69
      %s84 = sphi 0, %s70
      %s88 = sphi 0, %s88
      %s90 = sphi 0, %s88
      %s91 = sphi 0, %s90
      %s105 = sphi 0, %s91
      %s109 = sphi 0, %s109
      %s111 = sphi 0, %s109
      %s112 = sphi 0, %s111
      %s126 = sphi 0, %s112
      %s130 = sphi 0, %s130
      %s132 = sphi 0, %s130
      %s133 = sphi 0, %s132
      %s147 = sphi 0, %s133
      %s153 = sphi 0, %s155
      %s156 = sphi 0, %s153
      %s157 = sphi 0, %s156
      %s173 = sphi 0, %s157
    $region4: #{_lambda_.1} parent=1 // loop_header_branch
      %15 = sbr.rel (%p13) target = $region8
    $region5: #{_lambda_.1} parent=1 // loop_body
      %s17 = ssub.s32 %s12, 1
      %s18 = ssub.s32 %s12, 2
      %s19 = sadd.s32 %s12, 1
      %s20 = ssub.s32 %s12, %s19
      %p21 = scmp.eq.s32.totalorder %s20, 0
      %s23 = sadd.s32 %s22, 1
      %s24 = scalar_select %p21, %s22, %s23
      %p27 = pneg %p21
      %p28 = scmp.eq.s32.totalorder %s12, 1
      %p29 = por %p27, %p28
      %p30 = scmp.ne.s32.totalorder %s22, %s25
      %p31 = scmp.eq.s32.totalorder %s12, 0
      %p32 = por %p30, %p31
      %p33 = scmp.ne.s32.totalorder %s22, %s25
      %p34 = scmp.eq.s32.totalorder %s17, 1
      %p35 = por %p33, %p34
      %p36 = scmp.ne.s32.totalorder %s25, %s26
      %p37 = scmp.eq.s32.totalorder %s17, 0
      %p38 = por %p36, %p37
      %p39 = scmp.ne.s32.totalorder %s25, %s26
      %p40 = scmp.eq.s32.totalorder %s18, 1
      %p41 = por %p39, %p40
      %p43 = scmp.ne.s32.totalorder %s26, %s42
      %p44 = scmp.eq.s32.totalorder %s18, 0
      %p45 = por %p43, %p44
      %s47 = sadd.s32 %s46, 1
      %p50 = scmp.eq.s32.totalorder %s12, 1
      %p51 = scmp.ne.s32.totalorder %s46, %s48
      %p52 = scmp.eq.s32.totalorder %s12, 0
      %p53 = por %p51, %p52
      %p54 = scmp.ne.s32.totalorder %s46, %s48
      %p55 = scmp.eq.s32.totalorder %s17, 1
      %p56 = por %p54, %p55
      %p57 = scmp.ne.s32.totalorder %s48, %s49
      %p58 = scmp.eq.s32.totalorder %s17, 0
      %p59 = por %p57, %p58
      %p60 = scmp.ne.s32.totalorder %s48, %s49
      %p61 = scmp.eq.s32.totalorder %s18, 1
      %p62 = por %p60, %p61
      %p64 = scmp.ne.s32.totalorder %s49, %s63
      %p65 = scmp.eq.s32.totalorder %s18, 0
      %p66 = por %p64, %p65
      %s68 = sadd.s32 %s67, 1
      %p71 = scmp.eq.s32.totalorder %s12, 1
      %p72 = scmp.ne.s32.totalorder %s67, %s69
      %p73 = scmp.eq.s32.totalorder %s12, 0
      %p74 = por %p72, %p73
      %p75 = scmp.ne.s32.totalorder %s67, %s69
      %p76 = scmp.eq.s32.totalorder %s17, 1
      %p77 = por %p75, %p76
      %p78 = scmp.ne.s32.totalorder %s69, %s70
      %p79 = scmp.eq.s32.totalorder %s17, 0
      %p80 = por %p78, %p79
      %p81 = scmp.ne.s32.totalorder %s69, %s70
      %p82 = scmp.eq.s32.totalorder %s18, 1
      %p83 = por %p81, %p82
      %p85 = scmp.ne.s32.totalorder %s70, %s84
      %p86 = scmp.eq.s32.totalorder %s18, 0
      %p87 = por %p85, %p86
      %s89 = sadd.s32 %s88, 1
      %p92 = scmp.eq.s32.totalorder %s12, 1
      %p93 = scmp.ne.s32.totalorder %s88, %s90
      %p94 = scmp.eq.s32.totalorder %s12, 0
      %p95 = por %p93, %p94
      %p96 = scmp.ne.s32.totalorder %s88, %s90
      %p97 = scmp.eq.s32.totalorder %s17, 1
      %p98 = por %p96, %p97
      %p99 = scmp.ne.s32.totalorder %s90, %s91
      %p100 = scmp.eq.s32.totalorder %s17, 0
      %p101 = por %p99, %p100
      %p102 = scmp.ne.s32.totalorder %s90, %s91
      %p103 = scmp.eq.s32.totalorder %s18, 1
      %p104 = por %p102, %p103
      %p106 = scmp.ne.s32.totalorder %s91, %s105
      %p107 = scmp.eq.s32.totalorder %s18, 0
      %p108 = por %p106, %p107
      %s110 = sadd.s32 %s109, 1
      %p113 = scmp.eq.s32.totalorder %s12, 1
      %p114 = scmp.ne.s32.totalorder %s109, %s111
      %p115 = scmp.eq.s32.totalorder %s12, 0
      %p116 = por %p114, %p115
      %p117 = scmp.ne.s32.totalorder %s109, %s111
      %p118 = scmp.eq.s32.totalorder %s17, 1
      %p119 = por %p117, %p118
      %p120 = scmp.ne.s32.totalorder %s111, %s112
      %p121 = scmp.eq.s32.totalorder %s17, 0
      %p122 = por %p120, %p121
      %p123 = scmp.ne.s32.totalorder %s111, %s112
      %p124 = scmp.eq.s32.totalorder %s18, 1
      %p125 = por %p123, %p124
      %p127 = scmp.ne.s32.totalorder %s112, %s126
      %p128 = scmp.eq.s32.totalorder %s18, 0
      %p129 = por %p127, %p128
      %s131 = sadd.s32 %s130, 1
      %p134 = scmp.eq.s32.totalorder %s12, 1
      %p135 = scmp.ne.s32.totalorder %s130, %s132
      %p136 = scmp.eq.s32.totalorder %s12, 0
      %p137 = por %p135, %p136
      %p138 = scmp.ne.s32.totalorder %s130, %s132
      %p139 = scmp.eq.s32.totalorder %s17, 1
      %p140 = por %p138, %p139
      %p141 = scmp.ne.s32.totalorder %s132, %s133
      %p142 = scmp.eq.s32.totalorder %s17, 0
      %p143 = por %p141, %p142
      %p144 = scmp.ne.s32.totalorder %s132, %s133
      %p145 = scmp.eq.s32.totalorder %s18, 1
      %p146 = por %p144, %p145
      %p148 = scmp.ne.s32.totalorder %s133, %s147
      %p149 = scmp.eq.s32.totalorder %s18, 0
      %p150 = por %p148, %p149
      %s151 = ssub.s32 %s12, %s19
      %p152 = scmp.eq.s32.totalorder %s151, 0
      %s154 = sadd.s32 %s153, 1
      %s155 = scalar_select %p152, %s153, %s154
      %p158 = pneg %p152
      %p159 = scmp.eq.s32.totalorder %s12, 1
      %p160 = por %p158, %p159
      %p161 = scmp.ne.s32.totalorder %s153, %s156
      %p162 = scmp.eq.s32.totalorder %s12, 0
      %p163 = por %p161, %p162
      %p164 = scmp.ne.s32.totalorder %s153, %s156
      %p165 = scmp.eq.s32.totalorder %s17, 1
      %p166 = por %p164, %p165
      %p167 = scmp.ne.s32.totalorder %s156, %s157
      %p168 = scmp.eq.s32.totalorder %s17, 0
      %p169 = por %p167, %p168
      %p170 = scmp.ne.s32.totalorder %s156, %s157
      %p171 = scmp.eq.s32.totalorder %s18, 1
      %p172 = por %p170, %p171
      %p174 = scmp.ne.s32.totalorder %s157, %s173
      %p175 = scmp.eq.s32.totalorder %s18, 0
      %p176 = por %p174, %p175
      %p177 = scmp.le.s32.totalorder 1, %s12
      %p178 = scmp.lt.s32.totalorder %s12, 3
      %p179 = pnand %p177, %p178
      %p180 = pneg %p179
      // Predicated region
      $region9: #{_lambda_.1} parent=5 // pred_check
        _
      $region10: #{_lambda_.1} parent=5 // pred_check_branch
        %182 = sbr.rel (%p179) target = $region12
      $region11: #{_lambda_.1} parent=5 // pred_region
        %s183 = ssub.s32 %s12, 1
        // Predicated region
        $region13: #{_lambda_.1} parent=11 // pred_check
          %p184 = pneg %p59
        $region14: #{_lambda_.1} parent=11 // pred_check_branch
          %186 = sbr.rel (%p184) target = $region16
        $region15: #{_lambda_.1} parent=11 // pred_region
          _
        $region16: #{_lambda_.1} parent=11 // pred_fallthru
          _
        // Predicated region
        $region17: #{_lambda_.1} parent=11 // pred_check
          %p187 = pneg %p80
        $region18: #{_lambda_.1} parent=11 // pred_check_branch
          %189 = sbr.rel (%p187) target = $region20
        $region19: #{_lambda_.1} parent=11 // pred_region
          _
        $region20: #{_lambda_.1} parent=11 // pred_fallthru
          _
        // Predicated region
        $region21: #{_lambda_.1} parent=11 // pred_check
          %p190 = pneg %p101
        $region22: #{_lambda_.1} parent=11 // pred_check_branch
          %192 = sbr.rel (%p190) target = $region24
        $region23: #{_lambda_.1} parent=11 // pred_region
          _
        $region24: #{_lambda_.1} parent=11 // pred_fallthru
          _
        // Predicated region
        $region25: #{_lambda_.1} parent=11 // pred_check
          %p193 = pneg %p122
        $region26: #{_lambda_.1} parent=11 // pred_check_branch
          %195 = sbr.rel (%p193) target = $region28
        $region27: #{_lambda_.1} parent=11 // pred_region
          _
        $region28: #{_lambda_.1} parent=11 // pred_fallthru
          _
        // Predicated region
        $region29: #{_lambda_.1} parent=11 // pred_check
          %p196 = pneg %p143
        $region30: #{_lambda_.1} parent=11 // pred_check_branch
          %198 = sbr.rel (%p196) target = $region32
        $region31: #{_lambda_.1} parent=11 // pred_region
          _
        $region32: #{_lambda_.1} parent=11 // pred_fallthru
          _
      $region12: #{_lambda_.1} parent=5 // pred_fallthru
        _
      %p199 = scmp.lt.s32.totalorder %s12, 2
      // Predicated region
      $region33: #{_lambda_.1} parent=5 // pred_check
        %p200 = pneg %p199
      $region34: #{_lambda_.1} parent=5 // pred_check_branch
        %202 = sbr.rel (%p200) target = $region36
      $region35: #{_lambda_.1} parent=5 // pred_region
        // Predicated region
        $region37: #{_lambda_.1} parent=35 // pred_check
          %p203 = pneg %p32
        $region38: #{_lambda_.1} parent=35 // pred_check_branch
          %205 = sbr.rel (%p203) target = $region40
        $region39: #{_lambda_.1} parent=35 // pred_region
          %s206 = sand.u32 %s22, 1
          %s207 = sand.u32 %s22, 1
          %s208 = smul.addr %s207, 128
          %s209 = scalar_lea.vmem [#allocation2], %s208
          %s210 = smul.u32 4, %s12
          %s211 = smul.addr %s210, 8
          %s212 = scalar_lea.vmem %s0, %s211
          // Predicated region
          $region41: #{_lambda_.1} parent=39 // pred_check
            _
          $region42: #{_lambda_.1} parent=39 // pred_check_branch
            %214 = sbr.rel (0) target = $region44
          $region43: #{_lambda_.1} parent=39 // pred_region
            // Predicated region
            $region45: #{_lambda_.1} parent=43 // pred_check
              _
            $region46: #{_lambda_.1} parent=43 // pred_check_branch
              %216 = sbr.rel (0) target = $region48
            $region47: #{_lambda_.1} parent=43 // pred_region
              loop: start=0, step=1, limit=1
              $region49: #{_lambda_.1} parent=47 // loop_pre_header
                _
              $region50: #{_lambda_.1} parent=47 // loop_header
                %s218 = sphi 0, %s222
                %p219 = scmp.ge.s32.totalorder %s218, 1
                %s223 = sphi %s212, %s212
                %s224 = sphi %s209, %s209
              $region51: #{_lambda_.1} parent=47 // loop_header_branch
                %221 = sbr.rel (%p219) target = $region55
              $region52: #{_lambda_.1} parent=47 // loop_body
                %v225 = vld [vmem:[%s223] sm:$0xff]
                %226 = vst [vmem:[%s224] sm:$0xff] %v225
                %v227 = vld [vmem:[%s223 + $0x8] sm:$0xff]
                %228 = vst [vmem:[%s224 + $0x8] sm:$0xff] %v227
                %v229 = vld [vmem:[%s223 + $0x10] sm:$0xff]
                %230 = vst [vmem:[%s224 + $0x10] sm:$0xff] %v229
                %v231 = vld [vmem:[%s223 + $0x18] sm:$0xff]
                %232 = vst [vmem:[%s224 + $0x18] sm:$0xff] %v231
                %v233 = vld [vmem:[%s223 + $0x40] sm:$0xff]
                %234 = vst [vmem:[%s224 + $0x20] sm:$0xff] %v233
                %v235 = vld [vmem:[%s223 + $0x48] sm:$0xff]
                %236 = vst [vmem:[%s224 + $0x28] sm:$0xff] %v235
                %v237 = vld [vmem:[%s223 + $0x50] sm:$0xff]
                %238 = vst [vmem:[%s224 + $0x30] sm:$0xff] %v237
                %v239 = vld [vmem:[%s223 + $0x58] sm:$0xff]
                %240 = vst [vmem:[%s224 + $0x38] sm:$0xff] %v239
                %v241 = vld [vmem:[%s223 + $0x80] sm:$0xff]
                %242 = vst [vmem:[%s224 + $0x40] sm:$0xff] %v241
                %v243 = vld [vmem:[%s223 + $0x88] sm:$0xff]
                %244 = vst [vmem:[%s224 + $0x48] sm:$0xff] %v243
                %v245 = vld [vmem:[%s223 + $0x90] sm:$0xff]
                %246 = vst [vmem:[%s224 + $0x50] sm:$0xff] %v245
                %v247 = vld [vmem:[%s223 + $0x98] sm:$0xff]
                %248 = vst [vmem:[%s224 + $0x58] sm:$0xff] %v247
                %v249 = vld [vmem:[%s223 + $0xc0] sm:$0xff]
                %250 = vst [vmem:[%s224 + $0x60] sm:$0xff] %v249
                %v251 = vld [vmem:[%s223 + $0xc8] sm:$0xff]
                %252 = vst [vmem:[%s224 + $0x68] sm:$0xff] %v251
                %v253 = vld [vmem:[%s223 + $0xd0] sm:$0xff]
                %254 = vst [vmem:[%s224 + $0x70] sm:$0xff] %v253
                %v255 = vld [vmem:[%s223 + $0xd8] sm:$0xff]
                %256 = vst [vmem:[%s224 + $0x78] sm:$0xff] %v255
              $region53: #{_lambda_.1} parent=47 // loop_footer
                %s222 = sadd.s32 1, %s218
              $region54: #{_lambda_.1} parent=47 // loop_footer_branch
                %217 = sbr.rel target = $region50
              $region55: #{_lambda_.1} parent=47 // loop_exit
                _
            $region48: #{_lambda_.1} parent=43 // pred_fallthru
              _
            // Predicated region
            $region56: #{_lambda_.1} parent=43 // pred_check
              _
            $region57: #{_lambda_.1} parent=43 // pred_check_branch
              %258 = sbr.rel target = $region59
            $region58: #{_lambda_.1} parent=43 // pred_region
              _
            $region59: #{_lambda_.1} parent=43 // pred_fallthru
              _
          $region44: #{_lambda_.1} parent=39 // pred_fallthru
            _
          %259 = vnop
        $region40: #{_lambda_.1} parent=35 // pred_fallthru
          _
      $region36: #{_lambda_.1} parent=5 // pred_fallthru
        _
      %p260 = scmp.le.s32.totalorder 1, %s12
      %p261 = scmp.lt.s32.totalorder %s12, 3
      %p262 = pnand %p260, %p261
      %p263 = pneg %p262
      // Predicated region
      $region60: #{_lambda_.1} parent=5 // pred_check
        _
      $region61: #{_lambda_.1} parent=5 // pred_check_branch
        %265 = sbr.rel (%p262) target = $region63
      $region62: #{_lambda_.1} parent=5 // pred_region
        %s266 = ssub.s32 %s12, 1
        %s267 = sand.u32 %s25, 1
        %s268 = sand.u32 %s25, 1
        %s269 = smul.addr %s268, 128
        %s270 = scalar_lea.vmem [#allocation2], %s269
        // Predicated region
        $region64: #{_lambda_.1} parent=62 // pred_check
          %p271 = pneg %p38
        $region65: #{_lambda_.1} parent=62 // pred_check_branch
          %273 = sbr.rel (%p271) target = $region67
        $region66: #{_lambda_.1} parent=62 // pred_region
          _
        $region67: #{_lambda_.1} parent=62 // pred_fallthru
          _
        %s274 = sand.u32 %s25, 1
        %s275 = sand.u32 %s25, 1
        %s276 = smul.addr %s275, 128
        %s277 = scalar_lea.vmem [#allocation2], %s276
        %p278 = pneg %p38
        %p279 = pneg %p35
        %p280 = pneg %p59
        %p281 = pneg %p56
        %p282 = pneg %p80
        %p283 = pneg %p77
        %p284 = pneg %p101
        %p285 = pneg %p98
        %p286 = pneg %p122
        %p287 = pneg %p119
        %p288 = pneg %p143
        %p289 = pneg %p140
        %p290 = pneg %p169
        %p291 = pneg %p166
        %s292 = sand.u32 %s156, 1
        %s293 = sand.u32 %s156, 1
        %s294 = smul.addr %s293, 32
        %s295 = scalar_lea.vmem [#allocation3], %s294
        %s296 = smul.u32 4, %s17
        %v298 = vld [vmem:[%s1] sm:$0xf]
        %v299 = vld [vmem:[%s1 + $0x4] sm:$0xf]
        %v300 = vld [vmem:[%s1 + $0x8] sm:$0xf]
        %v301 = vld [vmem:[%s1 + $0xc] sm:$0xf]
        %v302 = vld [vmem:[%s1 + $0x10] sm:$0xf]
        %v303 = vld [vmem:[%s1 + $0x14] sm:$0xf]
        %v304 = vld [vmem:[%s1 + $0x18] sm:$0xf]
        %v305 = vld [vmem:[%s1 + $0x1c] sm:$0xf]
        %v306 = vld [vmem:[%s1 + $0x20] sm:$0xf]
        %v307 = vld [vmem:[%s1 + $0x24] sm:$0xf]
        %v308 = vld [vmem:[%s1 + $0x28] sm:$0xf]
        %v309 = vld [vmem:[%s1 + $0x2c] sm:$0xf]
        %v310 = vld [vmem:[%s1 + $0x30] sm:$0xf]
        %v311 = vld [vmem:[%s1 + $0x34] sm:$0xf]
        %v312 = vld [vmem:[%s1 + $0x38] sm:$0xf]
        %v313 = vld [vmem:[%s1 + $0x3c] sm:$0xf]
        %v314 = vld [vmem:[%s1 + $0x40] sm:$0xf]
        %v315 = vld [vmem:[%s1 + $0x44] sm:$0xf]
        %v316 = vld [vmem:[%s1 + $0x48] sm:$0xf]
        %v317 = vld [vmem:[%s1 + $0x4c] sm:$0xf]
        %v318 = vld [vmem:[%s1 + $0x50] sm:$0xf]
        %v319 = vld [vmem:[%s1 + $0x54] sm:$0xf]
        %v320 = vld [vmem:[%s1 + $0x58] sm:$0xf]
        %v321 = vld [vmem:[%s1 + $0x5c] sm:$0xf]
        %v322 = vld [vmem:[%s1 + $0x60] sm:$0xf]
        %v323 = vld [vmem:[%s1 + $0x64] sm:$0xf]
        %v324 = vld [vmem:[%s1 + $0x68] sm:$0xf]
        %v325 = vld [vmem:[%s1 + $0x6c] sm:$0xf]
        %v326 = vld [vmem:[%s1 + $0x70] sm:$0xf]
        %v327 = vld [vmem:[%s1 + $0x74] sm:$0xf]
        %v328 = vld [vmem:[%s1 + $0x78] sm:$0xf]
        %v329 = vld [vmem:[%s1 + $0x7c] sm:$0xf]
        %v330 = vld [vmem:[%s1 + $0x80] sm:$0xf]
        %v331 = vld [vmem:[%s1 + $0x84] sm:$0xf]
        %v332 = vld [vmem:[%s1 + $0x88] sm:$0xf]
        %v333 = vld [vmem:[%s1 + $0x8c] sm:$0xf]
        %v334 = vld [vmem:[%s1 + $0x90] sm:$0xf]
        %v335 = vld [vmem:[%s1 + $0x94] sm:$0xf]
        %v336 = vld [vmem:[%s1 + $0x98] sm:$0xf]
        %v337 = vld [vmem:[%s1 + $0x9c] sm:$0xf]
        %v338 = vld [vmem:[%s1 + $0xa0] sm:$0xf]
        %v339 = vld [vmem:[%s1 + $0xa4] sm:$0xf]
        %v340 = vld [vmem:[%s1 + $0xa8] sm:$0xf]
        %v341 = vld [vmem:[%s1 + $0xac] sm:$0xf]
        %v342 = vld [vmem:[%s1 + $0xb0] sm:$0xf]
        %v343 = vld [vmem:[%s1 + $0xb4] sm:$0xf]
        %v344 = vld [vmem:[%s1 + $0xb8] sm:$0xf]
        %v345 = vld [vmem:[%s1 + $0xbc] sm:$0xf]
        %v346 = vld [vmem:[%s1 + $0xc0] sm:$0xf]
        %v347 = vld [vmem:[%s1 + $0xc4] sm:$0xf]
        %v348 = vld [vmem:[%s1 + $0xc8] sm:$0xf]
        %v349 = vld [vmem:[%s1 + $0xcc] sm:$0xf]
        %v350 = vld [vmem:[%s1 + $0xd0] sm:$0xf]
        %v351 = vld [vmem:[%s1 + $0xd4] sm:$0xf]
        %v352 = vld [vmem:[%s1 + $0xd8] sm:$0xf]
        %v353 = vld [vmem:[%s1 + $0xdc] sm:$0xf]
        %v354 = vld [vmem:[%s1 + $0xe0] sm:$0xf]
        %v355 = vld [vmem:[%s1 + $0xe4] sm:$0xf]
        %v356 = vld [vmem:[%s1 + $0xe8] sm:$0xf]
        %v357 = vld [vmem:[%s1 + $0xec] sm:$0xf]
        %v358 = vld [vmem:[%s1 + $0xf0] sm:$0xf]
        %v359 = vld [vmem:[%s1 + $0xf4] sm:$0xf]
        %v360 = vld [vmem:[%s1 + $0xf8] sm:$0xf]
        %v361 = vld [vmem:[%s1 + $0xfc] sm:$0xf]
        %v362 = vld [vmem:[%s1 + $0x100] sm:$0xf]
        %v363 = vld [vmem:[%s1 + $0x104] sm:$0xf]
        %v364 = vld [vmem:[%s1 + $0x108] sm:$0xf]
        %v365 = vld [vmem:[%s1 + $0x10c] sm:$0xf]
        %v366 = vld [vmem:[%s1 + $0x110] sm:$0xf]
        %v367 = vld [vmem:[%s1 + $0x114] sm:$0xf]
        %v368 = vld [vmem:[%s1 + $0x118] sm:$0xf]
        %v369 = vld [vmem:[%s1 + $0x11c] sm:$0xf]
        %v370 = vld [vmem:[%s1 + $0x120] sm:$0xf]
        %v371 = vld [vmem:[%s1 + $0x124] sm:$0xf]
        %v372 = vld [vmem:[%s1 + $0x128] sm:$0xf]
        %v373 = vld [vmem:[%s1 + $0x12c] sm:$0xf]
        %v374 = vld [vmem:[%s1 + $0x130] sm:$0xf]
        %v375 = vld [vmem:[%s1 + $0x134] sm:$0xf]
        %v376 = vld [vmem:[%s1 + $0x138] sm:$0xf]
        %v377 = vld [vmem:[%s1 + $0x13c] sm:$0xf]
        %v378 = vld [vmem:[%s1 + $0x140] sm:$0xf]
        %v379 = vld [vmem:[%s1 + $0x144] sm:$0xf]
        %v380 = vld [vmem:[%s1 + $0x148] sm:$0xf]
        %v381 = vld [vmem:[%s1 + $0x14c] sm:$0xf]
        %v382 = vld [vmem:[%s1 + $0x150] sm:$0xf]
        %v383 = vld [vmem:[%s1 + $0x154] sm:$0xf]
        %v384 = vld [vmem:[%s1 + $0x158] sm:$0xf]
        %v385 = vld [vmem:[%s1 + $0x15c] sm:$0xf]
        %v386 = vld [vmem:[%s1 + $0x160] sm:$0xf]
        %v387 = vld [vmem:[%s1 + $0x164] sm:$0xf]
        %v388 = vld [vmem:[%s1 + $0x168] sm:$0xf]
        %v389 = vld [vmem:[%s1 + $0x16c] sm:$0xf]
        %v390 = vld [vmem:[%s1 + $0x170] sm:$0xf]
        %v391 = vld [vmem:[%s1 + $0x174] sm:$0xf]
        %v392 = vld [vmem:[%s1 + $0x178] sm:$0xf]
        %v393 = vld [vmem:[%s1 + $0x17c] sm:$0xf]
        %v394 = vld [vmem:[%s1 + $0x180] sm:$0xf]
        %v395 = vld [vmem:[%s1 + $0x184] sm:$0xf]
        %v396 = vld [vmem:[%s1 + $0x188] sm:$0xf]
        %v397 = vld [vmem:[%s1 + $0x18c] sm:$0xf]
        %v398 = vld [vmem:[%s1 + $0x190] sm:$0xf]
        %v399 = vld [vmem:[%s1 + $0x194] sm:$0xf]
        %v400 = vld [vmem:[%s1 + $0x198] sm:$0xf]
        %v401 = vld [vmem:[%s1 + $0x19c] sm:$0xf]
        %v402 = vld [vmem:[%s1 + $0x1a0] sm:$0xf]
        %v403 = vld [vmem:[%s1 + $0x1a4] sm:$0xf]
        %v404 = vld [vmem:[%s1 + $0x1a8] sm:$0xf]
        %v405 = vld [vmem:[%s1 + $0x1ac] sm:$0xf]
        %v406 = vld [vmem:[%s1 + $0x1b0] sm:$0xf]
        %v407 = vld [vmem:[%s1 + $0x1b4] sm:$0xf]
        %v408 = vld [vmem:[%s1 + $0x1b8] sm:$0xf]
        %v409 = vld [vmem:[%s1 + $0x1bc] sm:$0xf]
        %v410 = vld [vmem:[%s1 + $0x1c0] sm:$0xf]
        %v411 = vld [vmem:[%s1 + $0x1c4] sm:$0xf]
        %v412 = vld [vmem:[%s1 + $0x1c8] sm:$0xf]
        %v413 = vld [vmem:[%s1 + $0x1cc] sm:$0xf]
        %v414 = vld [vmem:[%s1 + $0x1d0] sm:$0xf]
        %v415 = vld [vmem:[%s1 + $0x1d4] sm:$0xf]
        %v416 = vld [vmem:[%s1 + $0x1d8] sm:$0xf]
        %v417 = vld [vmem:[%s1 + $0x1dc] sm:$0xf]
        %v418 = vld [vmem:[%s2] sm:$0xff]
        %v419 = vld [vmem:[%s2 + $0x8] sm:$0xff]
        %v420 = vld [vmem:[%s2 + $0x10] sm:$0xff]
        %v421 = vld [vmem:[%s2 + $0x18] sm:$0xff]
        %v422 = vld [vmem:[%s3] sm:$0xff]
        %v423 = vld [vmem:[%s3 + $0x8] sm:$0xff]
        %v424 = vld [vmem:[%s3 + $0x10] sm:$0xff]
        %v425 = vld [vmem:[%s3 + $0x18] sm:$0xff]
        %v426 = vld [vmem:[%s3 + $0x20] sm:$0xf]
        %v427 = vld [vmem:[%s270] sm:$0xff]
        %v428 = vld [vmem:[%s270 + $0x8] sm:$0xff]
        %v429 = vld [vmem:[%s270 + $0x10] sm:$0xff]
        %v430 = vld [vmem:[%s270 + $0x18] sm:$0xff]
        %v431 = vld [vmem:[%s270 + $0x20] sm:$0xff]
        %v432 = vld [vmem:[%s270 + $0x28] sm:$0xff]
        %v433 = vld [vmem:[%s270 + $0x30] sm:$0xff]
        %v434 = vld [vmem:[%s270 + $0x38] sm:$0xff]
        %v435 = vld [vmem:[%s270 + $0x40] sm:$0xff]
        %v436 = vld [vmem:[%s270 + $0x48] sm:$0xff]
        %v437 = vld [vmem:[%s270 + $0x50] sm:$0xff]
        %v438 = vld [vmem:[%s270 + $0x58] sm:$0xff]
        %v439 = vld [vmem:[%s270 + $0x60] sm:$0xff]
        %v440 = vld [vmem:[%s270 + $0x68] sm:$0xff]
        %v441 = vld [vmem:[%s270 + $0x70] sm:$0xff]
        %v442 = vld [vmem:[%s270 + $0x78] sm:$0xff]
        %443 = vrot.lane.b32.xlu0 %v427, 1
        %v444 = vpop.permute.xlu0 %443
        %445 = vrot.lane.b32.xlu0 %v431, 1
        %v446 = vpop.permute.xlu0 %445
        %447 = vrot.lane.b32.xlu0 %v435, 1
        %v448 = vpop.permute.xlu0 %447
        %449 = vrot.lane.b32.xlu0 %v439, 1
        %v450 = vpop.permute.xlu0 %449
        %451 = vrot.lane.b32.xlu0 %v428, 1
        %v452 = vpop.permute.xlu0 %451
        %453 = vrot.lane.b32.xlu0 %v432, 1
        %v454 = vpop.permute.xlu0 %453
        %455 = vrot.lane.b32.xlu0 %v436, 1
        %v456 = vpop.permute.xlu0 %455
        %457 = vrot.lane.b32.xlu0 %v440, 1
        %v458 = vpop.permute.xlu0 %457
        %459 = vrot.lane.b32.xlu0 %v429, 1
        %v460 = vpop.permute.xlu0 %459
        %461 = vrot.lane.b32.xlu0 %v433, 1
        %v462 = vpop.permute.xlu0 %461
        %463 = vrot.lane.b32.xlu0 %v437, 1
        %v464 = vpop.permute.xlu0 %463
        %465 = vrot.lane.b32.xlu0 %v441, 1
        %v466 = vpop.permute.xlu0 %465
        %467 = vrot.lane.b32.xlu0 %v430, 1
        %v468 = vpop.permute.xlu0 %467
        %469 = vrot.lane.b32.xlu0 %v434, 1
        %v470 = vpop.permute.xlu0 %469
        %471 = vrot.lane.b32.xlu0 %v438, 1
        %v472 = vpop.permute.xlu0 %471
        %473 = vrot.lane.b32.xlu0 %v442, 1
        %v474 = vpop.permute.xlu0 %473
        %v475 = vlaneseq
        %v476 = vand.u32 %v475, 127
        %vm477 = vcmp.lt.s32.totalorder %v476, 1
        %v478 = vsel %vm477, %v460, %v468
        %v479 = vsel %vm477, %v462, %v470
        %v480 = vsel %vm477, %v464, %v472
        %v481 = vsel %vm477, %v466, %v474
        %v482 = vsel %vm477, %v452, %v460
        %v483 = vsel %vm477, %v454, %v462
        %v484 = vsel %vm477, %v456, %v464
        %v485 = vsel %vm477, %v458, %v466
        %v486 = vsel %vm477, %v444, %v452
        %v487 = vsel %vm477, %v446, %v454
        %v488 = vsel %vm477, %v448, %v456
        %v489 = vsel %vm477, %v450, %v458
        %v490 = vsel %vm477, %v468, %v444
        %v491 = vsel %vm477, %v470, %v446
        %v492 = vsel %vm477, %v472, %v448
        %v493 = vsel %vm477, %v474, %v450
        %v494 = vlaneseq
        %v495 = vshrl.u32 %v494, 7
        %v496 = vsub.s32 0, %v495
        %v497 = vrot.slane %v422, %v496
        %v498 = vlaneseq
        %v499 = vshrl.u32 %v498, 7
        %v500 = vsub.s32 0, %v499
        %v501 = vrot.slane %v423, %v500
        %v502 = vlaneseq
        %v503 = vshrl.u32 %v502, 7
        %v504 = vsub.s32 0, %v503
        %v505 = vrot.slane %v424, %v504
        %v506 = vlaneseq
        %v507 = vshrl.u32 %v506, 7
        %v508 = vsub.s32 0, %v507
        %v509 = vrot.slane %v425, %v508
        %v510 = vmul.f32 %v490, %v497
        %v511 = vmul.f32 %v486, %v501
        %v512 = vmul.f32 %v482, %v505
        %v513 = vmul.f32 %v478, %v509
        %v514 = vmul.f32 %v491, %v497
        %v515 = vmul.f32 %v487, %v501
        %v516 = vmul.f32 %v483, %v505
        %v517 = vmul.f32 %v479, %v509
        %v518 = vmul.f32 %v492, %v497
        %v519 = vmul.f32 %v488, %v501
        %v520 = vmul.f32 %v484, %v505
        %v521 = vmul.f32 %v480, %v509
        %v522 = vmul.f32 %v493, %v497
        %v523 = vmul.f32 %v489, %v501
        %v524 = vmul.f32 %v485, %v505
        %v525 = vmul.f32 %v481, %v509
        %v526 = vpack.c.bf16 %v514, %v510
        %v527 = vpack.c.bf16 %v515, %v511
        %v528 = vpack.c.bf16 %v516, %v512
        %v529 = vpack.c.bf16 %v517, %v513
        %v530 = vpack.c.bf16 %v522, %v518
        %v531 = vpack.c.bf16 %v523, %v519
        %v532 = vpack.c.bf16 %v524, %v520
        %v533 = vpack.c.bf16 %v525, %v521
        %v534 = vpack.c.bf16 %v431, %v427
        %v535 = vpack.c.bf16 %v432, %v428
        %v536 = vpack.c.bf16 %v433, %v429
        %v537 = vpack.c.bf16 %v434, %v430
        %v538 = vpack.c.bf16 %v439, %v435
        %v539 = vpack.c.bf16 %v440, %v436
        %v540 = vpack.c.bf16 %v441, %v437
        %v541 = vpack.c.bf16 %v442, %v438
        %v546 = vunpack.c.l.b16 %v302
        %v547 = vunpack.c.l.b16 %v303
        %v548 = vunpack.c.l.b16 %v304
        %v549 = vunpack.c.l.b16 %v305
        %v550 = vpack.c.b16 %v547, %v546
        %v551 = vpack.c.b16 %v549, %v548
        %vm552 = vcmask 261120
        %v554 = vsel %vm552, %v550, 0
        %v557 = vsel %vm552, %v551, 0
        %559 = vmatprep.subr.bf16.mxu0 %v535
        %560 = vmatpush1.bf16.msra.mxu0 %v534
        %561 = vmatprep.subr.bf16.mxu0 %v539
        %562 = vmatpush1.bf16.msra.mxu0 %v538
        %563 = vmatprep.subr.bf16.mxu0 0
        %564 = vmatpush1.bf16.msra.mxu0 0
        %565 = vmatprep.subr.bf16.mxu0 0
        %566 = vmatpush1.bf16.msra.mxu0 0
        %567 = vmatprep.subr.bf16.mxu0 0
        %568 = vmatpush1.bf16.msra.mxu0 0
        %569 = vmatprep.subr.bf16.mxu0 0
        %570 = vmatpush1.bf16.msra.mxu0 0
        %571 = vmatprep.subr.bf16.mxu0 0
        %572 = vmatpush1.bf16.msra.mxu0 0
        %573 = vmatprep.subr.bf16.mxu0 0
        %574 = vmatpush1.bf16.msra.mxu0 0
        %575 = vmatprep.subr.bf16.mxu0 0
        %576 = vmatpush1.bf16.msra.mxu0 0
        %577 = vmatprep.subr.bf16.mxu0 0
        %578 = vmatpush1.bf16.msra.mxu0 0
        %579 = vmatprep.subr.bf16.mxu0 0
        %580 = vmatpush1.bf16.msra.mxu0 0
        %581 = vmatprep.subr.bf16.mxu0 0
        %582 = vmatpush1.bf16.msra.mxu0 0
        %583 = vmatprep.subr.bf16.mxu0 0
        %584 = vmatpush1.bf16.msra.mxu0 0
        %585 = vmatprep.subr.bf16.mxu0 0
        %586 = vmatpush1.bf16.msra.mxu0 0
        %587 = vmatprep.subr.bf16.mxu0 0
        %588 = vmatpush1.bf16.msra.mxu0 0
        %589 = vmatprep.subr.bf16.mxu0 0
        %590 = vmatpush1.bf16.msra.mxu0 0
        %591 = vmatprep.mubr.bf16.mxu0 0
        %592 = vmatmul.mubr.bf16.gmra.mrb[0].mxu0 %v554
        %v593 = vpop.f32.mrb[0].mxu0
        %v594 = vadd.f32 0.0, %v593
        %v595 = vpop.f32.mrb[0].mxu0
        %v596 = vadd.f32 0.0, %v595
        %v597 = vpop.f32.mrb[0].mxu0
        %v598 = vadd.f32 0.0, %v597
        %v599 = vpop.f32.mrb[0].mxu0
        %v600 = vadd.f32 0.0, %v599
        %601 = vmatprep.mubr.bf16.mxu0 0
        %602 = vmatmul.mubr.bf16.gmra.mrb[0].mxu0 %v557
        %v603 = vpop.f32.mrb[0].mxu0
        %v604 = vadd.f32 0.0, %v603
        %v605 = vpop.f32.mrb[0].mxu0
        %v606 = vadd.f32 0.0, %v605
        %v607 = vpop.f32.mrb[0].mxu0
        %v608 = vadd.f32 0.0, %v607
        %v609 = vpop.f32.mrb[0].mxu0
        %v610 = vadd.f32 0.0, %v609
        %611 = vdwg.mxu0
        %612 = vmatprep.subr.bf16.mxu0 %v537
        %613 = vmatpush1.bf16.msra.mxu0 %v536
        %614 = vmatprep.subr.bf16.mxu0 %v541
        %615 = vmatpush1.bf16.msra.mxu0 %v540
        %616 = vmatprep.subr.bf16.mxu0 0
        %617 = vmatpush1.bf16.msra.mxu0 0
        %618 = vmatprep.subr.bf16.mxu0 0
        %619 = vmatpush1.bf16.msra.mxu0 0
        %620 = vmatprep.subr.bf16.mxu0 0
        %621 = vmatpush1.bf16.msra.mxu0 0
        %622 = vmatprep.subr.bf16.mxu0 0
        %623 = vmatpush1.bf16.msra.mxu0 0
        %624 = vmatprep.subr.bf16.mxu0 0
        %625 = vmatpush1.bf16.msra.mxu0 0
        %626 = vmatprep.subr.bf16.mxu0 0
        %627 = vmatpush1.bf16.msra.mxu0 0
        %628 = vmatprep.subr.bf16.mxu0 0
        %629 = vmatpush1.bf16.msra.mxu0 0
        %630 = vmatprep.subr.bf16.mxu0 0
        %631 = vmatpush1.bf16.msra.mxu0 0
        %632 = vmatprep.subr.bf16.mxu0 0
        %633 = vmatpush1.bf16.msra.mxu0 0
        %634 = vmatprep.subr.bf16.mxu0 0
        %635 = vmatpush1.bf16.msra.mxu0 0
        %636 = vmatprep.subr.bf16.mxu0 0
        %637 = vmatpush1.bf16.msra.mxu0 0
        %638 = vmatprep.subr.bf16.mxu0 0
        %639 = vmatpush1.bf16.msra.mxu0 0
        %640 = vmatprep.subr.bf16.mxu0 0
        %641 = vmatpush1.bf16.msra.mxu0 0
        %642 = vmatprep.subr.bf16.mxu0 0
        %643 = vmatpush1.bf16.msra.mxu0 0
        %644 = vmatprep.mubr.bf16.mxu0 0
        %645 = vmatmul.mubr.bf16.gmra.mrb[0].mxu0 %v554
        %v646 = vpop.f32.mrb[0].mxu0
        %v647 = vadd.f32 0.0, %v646
        %v648 = vpop.f32.mrb[0].mxu0
        %v649 = vadd.f32 0.0, %v648
        %v650 = vpop.f32.mrb[0].mxu0
        %v651 = vadd.f32 0.0, %v650
        %v652 = vpop.f32.mrb[0].mxu0
        %v653 = vadd.f32 0.0, %v652
        %654 = vmatprep.mubr.bf16.mxu0 0
        %655 = vmatmul.mubr.bf16.gmra.mrb[0].mxu0 %v557
        %v656 = vpop.f32.mrb[0].mxu0
        %v657 = vadd.f32 0.0, %v656
        %v658 = vpop.f32.mrb[0].mxu0
        %v659 = vadd.f32 0.0, %v658
        %v660 = vpop.f32.mrb[0].mxu0
        %v661 = vadd.f32 0.0, %v660
        %v662 = vpop.f32.mrb[0].mxu0
        %v663 = vadd.f32 0.0, %v662
        %664 = vdwg.mxu0
        %v669 = vunpack.c.l.b16 %v298
        %v670 = vunpack.c.l.b16 %v299
        %v671 = vunpack.c.l.b16 %v300
        %v672 = vunpack.c.l.b16 %v301
        %v673 = vpack.c.b16 %v670, %v669
        %v674 = vpack.c.b16 %v672, %v671
        %v676 = vsel %vm552, %v673, 0
        %v679 = vsel %vm552, %v674, 0
        %681 = vmatprep.subr.bf16.mxu0 %v527
        %682 = vmatpush1.bf16.msra.mxu0 %v526
        %683 = vmatprep.subr.bf16.mxu0 %v531
        %684 = vmatpush1.bf16.msra.mxu0 %v530
        %685 = vmatprep.subr.bf16.mxu0 0
        %686 = vmatpush1.bf16.msra.mxu0 0
        %687 = vmatprep.subr.bf16.mxu0 0
        %688 = vmatpush1.bf16.msra.mxu0 0
        %689 = vmatprep.subr.bf16.mxu0 0
        %690 = vmatpush1.bf16.msra.mxu0 0
        %691 = vmatprep.subr.bf16.mxu0 0
        %692 = vmatpush1.bf16.msra.mxu0 0
        %693 = vmatprep.subr.bf16.mxu0 0
        %694 = vmatpush1.bf16.msra.mxu0 0
        %695 = vmatprep.subr.bf16.mxu0 0
        %696 = vmatpush1.bf16.msra.mxu0 0
        %697 = vmatprep.subr.bf16.mxu0 0
        %698 = vmatpush1.bf16.msra.mxu0 0
        %699 = vmatprep.subr.bf16.mxu0 0
        %700 = vmatpush1.bf16.msra.mxu0 0
        %701 = vmatprep.subr.bf16.mxu0 0
        %702 = vmatpush1.bf16.msra.mxu0 0
        %703 = vmatprep.subr.bf16.mxu0 0
        %704 = vmatpush1.bf16.msra.mxu0 0
        %705 = vmatprep.subr.bf16.mxu0 0
        %706 = vmatpush1.bf16.msra.mxu0 0
        %707 = vmatprep.subr.bf16.mxu0 0
        %708 = vmatpush1.bf16.msra.mxu0 0
        %709 = vmatprep.subr.bf16.mxu0 0
        %710 = vmatpush1.bf16.msra.mxu0 0
        %711 = vmatprep.subr.bf16.mxu0 0
        %712 = vmatpush1.bf16.msra.mxu0 0
        %713 = vmatprep.mubr.bf16.mxu0 0
        %714 = vmatmul.mubr.bf16.gmra.mrb[0].mxu0 %v676
        %v715 = vpop.f32.mrb[0].mxu0
        %v716 = vadd.f32 %v594, %v715
        %v717 = vpop.f32.mrb[0].mxu0
        %v718 = vadd.f32 %v596, %v717
        %v719 = vpop.f32.mrb[0].mxu0
        %v720 = vadd.f32 %v598, %v719
        %v721 = vpop.f32.mrb[0].mxu0
        %v722 = vadd.f32 %v600, %v721
        %723 = vmatprep.mubr.bf16.mxu0 0
        %724 = vmatmul.mubr.bf16.gmra.mrb[0].mxu0 %v679
        %v725 = vpop.f32.mrb[0].mxu0
        %v726 = vadd.f32 %v604, %v725
        %v727 = vpop.f32.mrb[0].mxu0
        %v728 = vadd.f32 %v606, %v727
        %v729 = vpop.f32.mrb[0].mxu0
        %v730 = vadd.f32 %v608, %v729
        %v731 = vpop.f32.mrb[0].mxu0
        %v732 = vadd.f32 %v610, %v731
        %733 = vdwg.mxu0
        %734 = vmatprep.subr.bf16.mxu0 %v529
        %735 = vmatpush1.bf16.msra.mxu0 %v528
        %736 = vmatprep.subr.bf16.mxu0 %v533
        %737 = vmatpush1.bf16.msra.mxu0 %v532
        %738 = vmatprep.subr.bf16.mxu0 0
        %739 = vmatpush1.bf16.msra.mxu0 0
        %740 = vmatprep.subr.bf16.mxu0 0
        %741 = vmatpush1.bf16.msra.mxu0 0
        %742 = vmatprep.subr.bf16.mxu0 0
        %743 = vmatpush1.bf16.msra.mxu0 0
        %744 = vmatprep.subr.bf16.mxu0 0
        %745 = vmatpush1.bf16.msra.mxu0 0
        %746 = vmatprep.subr.bf16.mxu0 0
        %747 = vmatpush1.bf16.msra.mxu0 0
        %748 = vmatprep.subr.bf16.mxu0 0
        %749 = vmatpush1.bf16.msra.mxu0 0
        %750 = vmatprep.subr.bf16.mxu0 0
        %751 = vmatpush1.bf16.msra.mxu0 0
        %752 = vmatprep.subr.bf16.mxu0 0
        %753 = vmatpush1.bf16.msra.mxu0 0
        %754 = vmatprep.subr.bf16.mxu0 0
        %755 = vmatpush1.bf16.msra.mxu0 0
        %756 = vmatprep.subr.bf16.mxu0 0
        %757 = vmatpush1.bf16.msra.mxu0 0
        %758 = vmatprep.subr.bf16.mxu0 0
        %759 = vmatpush1.bf16.msra.mxu0 0
        %760 = vmatprep.subr.bf16.mxu0 0
        %761 = vmatpush1.bf16.msra.mxu0 0
        %762 = vmatprep.subr.bf16.mxu0 0
        %763 = vmatpush1.bf16.msra.mxu0 0
        %764 = vmatprep.subr.bf16.mxu0 0
        %765 = vmatpush1.bf16.msra.mxu0 0
        %766 = vmatprep.mubr.bf16.mxu0 0
        %767 = vmatmul.mubr.bf16.gmra.mrb[0].mxu0 %v676
        %v768 = vpop.f32.mrb[0].mxu0
        %v769 = vadd.f32 %v647, %v768
        %v770 = vpop.f32.mrb[0].mxu0
        %v771 = vadd.f32 %v649, %v770
        %v772 = vpop.f32.mrb[0].mxu0
        %v773 = vadd.f32 %v651, %v772
        %v774 = vpop.f32.mrb[0].mxu0
        %v775 = vadd.f32 %v653, %v774
        %776 = vmatprep.mubr.bf16.mxu0 0
        %777 = vmatmul.mubr.bf16.gmra.mrb[0].mxu0 %v679
        %v778 = vpop.f32.mrb[0].mxu0
        %v779 = vadd.f32 %v657, %v778
        %v780 = vpop.f32.mrb[0].mxu0
        %v781 = vadd.f32 %v659, %v780
        %v782 = vpop.f32.mrb[0].mxu0
        %v783 = vadd.f32 %v661, %v782
        %v784 = vpop.f32.mrb[0].mxu0
        %v785 = vadd.f32 %v663, %v784
        %786 = vdwg.mxu0
        %787 = vrot.lane.b32.xlu0 %v427, 127
        %v788 = vpop.permute.xlu0 %787
        %789 = vrot.lane.b32.xlu0 %v431, 127
        %v790 = vpop.permute.xlu0 %789
        %791 = vrot.lane.b32.xlu0 %v435, 127
        %v792 = vpop.permute.xlu0 %791
        %793 = vrot.lane.b32.xlu0 %v439, 127
        %v794 = vpop.permute.xlu0 %793
        %795 = vrot.lane.b32.xlu0 %v428, 127
        %v796 = vpop.permute.xlu0 %795
        %797 = vrot.lane.b32.xlu0 %v432, 127
        %v798 = vpop.permute.xlu0 %797
        %799 = vrot.lane.b32.xlu0 %v436, 127
        %v800 = vpop.permute.xlu0 %799
        %801 = vrot.lane.b32.xlu0 %v440, 127
        %v802 = vpop.permute.xlu0 %801
        %803 = vrot.lane.b32.xlu0 %v429, 127
        %v804 = vpop.permute.xlu0 %803
        %805 = vrot.lane.b32.xlu0 %v433, 127
        %v806 = vpop.permute.xlu0 %805
        %807 = vrot.lane.b32.xlu0 %v437, 127
        %v808 = vpop.permute.xlu0 %807
        %809 = vrot.lane.b32.xlu0 %v441, 127
        %v810 = vpop.permute.xlu0 %809
        %811 = vrot.lane.b32.xlu0 %v430, 127
        %v812 = vpop.permute.xlu0 %811
        %813 = vrot.lane.b32.xlu0 %v434, 127
        %v814 = vpop.permute.xlu0 %813
        %815 = vrot.lane.b32.xlu0 %v438, 127
        %v816 = vpop.permute.xlu0 %815
        %817 = vrot.lane.b32.xlu0 %v442, 127
        %v818 = vpop.permute.xlu0 %817
        %vm819 = vcmp.lt.s32.totalorder %v476, 127
        %v820 = vsel %vm819, %v804, %v812
        %v821 = vsel %vm819, %v806, %v814
        %v822 = vsel %vm819, %v808, %v816
        %v823 = vsel %vm819, %v810, %v818
        %v824 = vsel %vm819, %v796, %v804
        %v825 = vsel %vm819, %v798, %v806
        %v826 = vsel %vm819, %v800, %v808
        %v827 = vsel %vm819, %v802, %v810
        %v828 = vsel %vm819, %v788, %v796
        %v829 = vsel %vm819, %v790, %v798
        %v830 = vsel %vm819, %v792, %v800
        %v831 = vsel %vm819, %v794, %v802
        %v832 = vsel %vm819, %v812, %v788
        %v833 = vsel %vm819, %v814, %v790
        %v834 = vsel %vm819, %v816, %v792
        %v835 = vsel %vm819, %v818, %v794
        %v836 = vlaneseq
        %v837 = vshrl.u32 %v836, 7
        %v838 = vsub.s32 1, %v837
        %v839 = vrot.slane %v422, %v838
        %v840 = vlaneseq
        %v841 = vshrl.u32 %v840, 7
        %v842 = vsub.s32 1, %v841
        %v843 = vrot.slane %v423, %v842
        %v844 = vlaneseq
        %v845 = vshrl.u32 %v844, 7
        %v846 = vsub.s32 1, %v845
        %v847 = vrot.slane %v424, %v846
        %v848 = vlaneseq
        %v849 = vshrl.u32 %v848, 7
        %v850 = vsub.s32 1, %v849
        %v851 = vrot.slane %v425, %v850
        %v852 = vmul.f32 %v828, %v839
        %v853 = vmul.f32 %v824, %v843
        %v854 = vmul.f32 %v820, %v847
        %v855 = vmul.f32 %v832, %v851
        %v856 = vmul.f32 %v829, %v839
        %v857 = vmul.f32 %v825, %v843
        %v858 = vmul.f32 %v821, %v847
        %v859 = vmul.f32 %v833, %v851
        %v860 = vmul.f32 %v830, %v839
        %v861 = vmul.f32 %v826, %v843
        %v862 = vmul.f32 %v822, %v847
        %v863 = vmul.f32 %v834, %v851
        %v864 = vmul.f32 %v831, %v839
        %v865 = vmul.f32 %v827, %v843
        %v866 = vmul.f32 %v823, %v847
        %v867 = vmul.f32 %v835, %v851
        %v868 = vpack.c.bf16 %v856, %v852
        %v869 = vpack.c.bf16 %v857, %v853
        %v870 = vpack.c.bf16 %v858, %v854
        %v871 = vpack.c.bf16 %v859, %v855
        %v872 = vpack.c.bf16 %v864, %v860
        %v873 = vpack.c.bf16 %v865, %v861
        %v874 = vpack.c.bf16 %v866, %v862
        %v875 = vpack.c.bf16 %v867, %v863
        %v880 = vunpack.c.l.b16 %v306
        %v881 = vunpack.c.l.b16 %v307
        %v882 = vunpack.c.l.b16 %v308
        %v883 = vunpack.c.l.b16 %v309
        %v884 = vpack.c.b16 %v881, %v880
        %v885 = vpack.c.b16 %v883, %v882
        %v887 = vsel %vm552, %v884, 0
        %v890 = vsel %vm552, %v885, 0
        %892 = vmatprep.subr.bf16.mxu0 %v869
        %893 = vmatpush1.bf16.msra.mxu0 %v868
        %894 = vmatprep.subr.bf16.mxu0 %v873
        %895 = vmatpush1.bf16.msra.mxu0 %v872
        %896 = vmatprep.subr.bf16.mxu0 0
        %897 = vmatpush1.bf16.msra.mxu0 0
        %898 = vmatprep.subr.bf16.mxu0 0
        %899 = vmatpush1.bf16.msra.mxu0 0
        %900 = vmatprep.subr.bf16.mxu0 0
        %901 = vmatpush1.bf16.msra.mxu0 0
        %902 = vmatprep.subr.bf16.mxu0 0
        %903 = vmatpush1.bf16.msra.mxu0 0
        %904 = vmatprep.subr.bf16.mxu0 0
        %905 = vmatpush1.bf16.msra.mxu0 0
        %906 = vmatprep.subr.bf16.mxu0 0
        %907 = vmatpush1.bf16.msra.mxu0 0
        %908 = vmatprep.subr.bf16.mxu0 0
        %909 = vmatpush1.bf16.msra.mxu0 0
        %910 = vmatprep.subr.bf16.mxu0 0
        %911 = vmatpush1.bf16.msra.mxu0 0
        %912 = vmatprep.subr.bf16.mxu0 0
        %913 = vmatpush1.bf16.msra.mxu0 0
        %914 = vmatprep.subr.bf16.mxu0 0
        %915 = vmatpush1.bf16.msra.mxu0 0
        %916 = vmatprep.subr.bf16.mxu0 0
        %917 = vmatpush1.bf16.msra.mxu0 0
        %918 = vmatprep.subr.bf16.mxu0 0
        %919 = vmatpush1.bf16.msra.mxu0 0
        %920 = vmatprep.subr.bf16.mxu0 0
        %921 = vmatpush1.bf16.msra.mxu0 0
        %922 = vmatprep.subr.bf16.mxu0 0
        %923 = vmatpush1.bf16.msra.mxu0 0
        %924 = vmatprep.mubr.bf16.mxu0 0
        %925 = vmatmul.mubr.bf16.gmra.mrb[0].mxu0 %v887
        %v926 = vpop.f32.mrb[0].mxu0
        %v927 = vadd.f32 0.0, %v926
        %v928 = vpop.f32.mrb[0].mxu0
        %v929 = vadd.f32 0.0, %v928
        %v930 = vpop.f32.mrb[0].mxu0
        %v931 = vadd.f32 0.0, %v930
        %v932 = vpop.f32.mrb[0].mxu0
        %v933 = vadd.f32 0.0, %v932
        %934 = vmatprep.mubr.bf16.mxu0 0
        %935 = vmatmul.mubr.bf16.gmra.mrb[0].mxu0 %v890
        %v936 = vpop.f32.mrb[0].mxu0
        %v937 = vadd.f32 0.0, %v936
        %v938 = vpop.f32.mrb[0].mxu0
        %v939 = vadd.f32 0.0, %v938
        %v940 = vpop.f32.mrb[0].mxu0
        %v941 = vadd.f32 0.0, %v940
        %v942 = vpop.f32.mrb[0].mxu0
        %v943 = vadd.f32 0.0, %v942
        %944 = vdwg.mxu0
        %945 = vmatprep.subr.bf16.mxu0 %v871
        %946 = vmatpush1.bf16.msra.mxu0 %v870
        %947 = vmatprep.subr.bf16.mxu0 %v875
        %948 = vmatpush1.bf16.msra.mxu0 %v874
        %949 = vmatprep.subr.bf16.mxu0 0
        %950 = vmatpush1.bf16.msra.mxu0 0
        %951 = vmatprep.subr.bf16.mxu0 0
        %952 = vmatpush1.bf16.msra.mxu0 0
        %953 = vmatprep.subr.bf16.mxu0 0
        %954 = vmatpush1.bf16.msra.mxu0 0
        %955 = vmatprep.subr.bf16.mxu0 0
        %956 = vmatpush1.bf16.msra.mxu0 0
        %957 = vmatprep.subr.bf16.mxu0 0
        %958 = vmatpush1.bf16.msra.mxu0 0
        %959 = vmatprep.subr.bf16.mxu0 0
        %960 = vmatpush1.bf16.msra.mxu0 0
        %961 = vmatprep.subr.bf16.mxu0 0
        %962 = vmatpush1.bf16.msra.mxu0 0
        %963 = vmatprep.subr.bf16.mxu0 0
        %964 = vmatpush1.bf16.msra.mxu0 0
        %965 = vmatprep.subr.bf16.mxu0 0
        %966 = vmatpush1.bf16.msra.mxu0 0
        %967 = vmatprep.subr.bf16.mxu0 0
        %968 = vmatpush1.bf16.msra.mxu0 0
        %969 = vmatprep.subr.bf16.mxu0 0
        %970 = vmatpush1.bf16.msra.mxu0 0
        %971 = vmatprep.subr.bf16.mxu0 0
        %972 = vmatpush1.bf16.msra.mxu0 0
        %973 = vmatprep.subr.bf16.mxu0 0
        %974 = vmatpush1.bf16.msra.mxu0 0
        %975 = vmatprep.subr.bf16.mxu0 0
        %976 = vmatpush1.bf16.msra.mxu0 0
        %977 = vmatprep.mubr.bf16.mxu0 0
        %978 = vmatmul.mubr.bf16.gmra.mrb[0].mxu0 %v887
        %v979 = vpop.f32.mrb[0].mxu0
        %v980 = vadd.f32 0.0, %v979
        %v981 = vpop.f32.mrb[0].mxu0
        %v982 = vadd.f32 0.0, %v981
        %v983 = vpop.f32.mrb[0].mxu0
        %v984 = vadd.f32 0.0, %v983
        %v985 = vpop.f32.mrb[0].mxu0
        %v986 = vadd.f32 0.0, %v985
        %987 = vmatprep.mubr.bf16.mxu0 0
        %988 = vmatmul.mubr.bf16.gmra.mrb[0].mxu0 %v890
        %v989 = vpop.f32.mrb[0].mxu0
        %v990 = vadd.f32 0.0, %v989
        %v991 = vpop.f32.mrb[0].mxu0
        %v992 = vadd.f32 0.0, %v991
        %v993 = vpop.f32.mrb[0].mxu0
        %v994 = vadd.f32 0.0, %v993
        %v995 = vpop.f32.mrb[0].mxu0
        %v996 = vadd.f32 0.0, %v995
        %997 = vdwg.mxu0
        %v998 = vadd.f32 %v716, %v927
        %v999 = vadd.f32 %v718, %v929
        %v1000 = vadd.f32 %v769, %v980
        %v1001 = vadd.f32 %v771, %v982
        %v1002 = vadd.f32 %v720, %v931
        %v1003 = vadd.f32 %v722, %v933
        %v1004 = vadd.f32 %v773, %v984
        %v1005 = vadd.f32 %v775, %v986
        %v1006 = vadd.f32 %v726, %v937
        %v1007 = vadd.f32 %v728, %v939
        %v1008 = vadd.f32 %v779, %v990
        %v1009 = vadd.f32 %v781, %v992
        %v1010 = vadd.f32 %v730, %v941
        %v1011 = vadd.f32 %v732, %v943
        %v1012 = vadd.f32 %v783, %v994
        %v1013 = vadd.f32 %v785, %v996
        %1015 = vset.pattern.permute.xlu0 0
        %1016 = vperm.xlu0 %1015, %v418
        %v1017 = vpop.permute.xlu0 %1016
        %1020 = vset.pattern.permute.xlu0 0
        %1021 = vperm.xlu0 %1020, %v419
        %v1022 = vpop.permute.xlu0 %1021
        %1025 = vset.pattern.permute.xlu0 0
        %1026 = vperm.xlu0 %1025, %v420
        %v1027 = vpop.permute.xlu0 %1026
        %1030 = vset.pattern.permute.xlu0 0
        %1031 = vperm.xlu0 %1030, %v421
        %v1032 = vpop.permute.xlu0 %1031
        %v1034 = vadd.f32 %v998, %v1017
        %v1035 = vadd.f32 %v999, %v1017
        %v1036 = vadd.f32 %v1000, %v1017
        %v1037 = vadd.f32 %v1001, %v1017
        %v1038 = vadd.f32 %v1002, %v1022
        %v1039 = vadd.f32 %v1003, %v1022
        %v1040 = vadd.f32 %v1004, %v1022
        %v1041 = vadd.f32 %v1005, %v1022
        %v1042 = vadd.f32 %v1006, %v1027
        %v1043 = vadd.f32 %v1007, %v1027
        %v1044 = vadd.f32 %v1008, %v1027
        %v1045 = vadd.f32 %v1009, %v1027
        %v1046 = vadd.f32 %v1010, %v1032
        %v1047 = vadd.f32 %v1011, %v1032
        %v1048 = vadd.f32 %v1012, %v1032
        %v1049 = vadd.f32 %v1013, %v1032
        %v1050 = vmax.f32 %v1034, 0.0
        %v1051 = vmax.f32 %v1035, 0.0
        %v1052 = vmax.f32 %v1036, 0.0
        %v1053 = vmax.f32 %v1037, 0.0
        %v1054 = vmax.f32 %v1038, 0.0
        %v1055 = vmax.f32 %v1039, 0.0
        %v1056 = vmax.f32 %v1040, 0.0
        %v1057 = vmax.f32 %v1041, 0.0
        %v1058 = vmax.f32 %v1042, 0.0
        %v1059 = vmax.f32 %v1043, 0.0
        %v1060 = vmax.f32 %v1044, 0.0
        %v1061 = vmax.f32 %v1045, 0.0
        %v1062 = vmax.f32 %v1046, 0.0
        %v1063 = vmax.f32 %v1047, 0.0
        %v1064 = vmax.f32 %v1048, 0.0
        %v1065 = vmax.f32 %v1049, 0.0
        %1066 = vrot.lane.b32.xlu0 %v1050, 1
        %v1067 = vpop.permute.xlu0 %1066
        %1068 = vrot.lane.b32.xlu0 %v1054, 1
        %v1069 = vpop.permute.xlu0 %1068
        %1070 = vrot.lane.b32.xlu0 %v1058, 1
        %v1071 = vpop.permute.xlu0 %1070
        %1072 = vrot.lane.b32.xlu0 %v1062, 1
        %v1073 = vpop.permute.xlu0 %1072
        %1074 = vrot.lane.b32.xlu0 %v1051, 1
        %v1075 = vpop.permute.xlu0 %1074
        %1076 = vrot.lane.b32.xlu0 %v1055, 1
        %v1077 = vpop.permute.xlu0 %1076
        %1078 = vrot.lane.b32.xlu0 %v1059, 1
        %v1079 = vpop.permute.xlu0 %1078
        %1080 = vrot.lane.b32.xlu0 %v1063, 1
        %v1081 = vpop.permute.xlu0 %1080
        %1082 = vrot.lane.b32.xlu0 %v1052, 1
        %v1083 = vpop.permute.xlu0 %1082
        %1084 = vrot.lane.b32.xlu0 %v1056, 1
        %v1085 = vpop.permute.xlu0 %1084
        %1086 = vrot.lane.b32.xlu0 %v1060, 1
        %v1087 = vpop.permute.xlu0 %1086
        %1088 = vrot.lane.b32.xlu0 %v1064, 1
        %v1089 = vpop.permute.xlu0 %1088
        %1090 = vrot.lane.b32.xlu0 %v1053, 1
        %v1091 = vpop.permute.xlu0 %1090
        %1092 = vrot.lane.b32.xlu0 %v1057, 1
        %v1093 = vpop.permute.xlu0 %1092
        %1094 = vrot.lane.b32.xlu0 %v1061, 1
        %v1095 = vpop.permute.xlu0 %1094
        %1096 = vrot.lane.b32.xlu0 %v1065, 1
        %v1097 = vpop.permute.xlu0 %1096
        %v1098 = vsel %vm477, %v1083, %v1091
        %v1099 = vsel %vm477, %v1085, %v1093
        %v1100 = vsel %vm477, %v1087, %v1095
        %v1101 = vsel %vm477, %v1089, %v1097
        %v1102 = vsel %vm477, %v1075, %v1083
        %v1103 = vsel %vm477, %v1077, %v1085
        %v1104 = vsel %vm477, %v1079, %v1087
        %v1105 = vsel %vm477, %v1081, %v1089
        %v1106 = vsel %vm477, %v1067, %v1075
        %v1107 = vsel %vm477, %v1069, %v1077
        %v1108 = vsel %vm477, %v1071, %v1079
        %v1109 = vsel %vm477, %v1073, %v1081
        %v1110 = vsel %vm477, %v1091, %v1067
        %v1111 = vsel %vm477, %v1093, %v1069
        %v1112 = vsel %vm477, %v1095, %v1071
        %v1113 = vsel %vm477, %v1097, %v1073
        %v1114 = vmul.f32 %v1110, %v497
        %v1115 = vmul.f32 %v1106, %v501
        %v1116 = vmul.f32 %v1102, %v505
        %v1117 = vmul.f32 %v1098, %v509
        %v1118 = vmul.f32 %v1111, %v497
        %v1119 = vmul.f32 %v1107, %v501
        %v1120 = vmul.f32 %v1103, %v505
        %v1121 = vmul.f32 %v1099, %v509
        %v1122 = vmul.f32 %v1112, %v497
        %v1123 = vmul.f32 %v1108, %v501
        %v1124 = vmul.f32 %v1104, %v505
        %v1125 = vmul.f32 %v1100, %v509
        %v1126 = vmul.f32 %v1113, %v497
        %v1127 = vmul.f32 %v1109, %v501
        %v1128 = vmul.f32 %v1105, %v505
        %v1129 = vmul.f32 %v1101, %v509
        %v1130 = vpack.c.bf16 %v1118, %v1114
        %v1131 = vpack.c.bf16 %v1119, %v1115
        %v1132 = vpack.c.bf16 %v1120, %v1116
        %v1133 = vpack.c.bf16 %v1121, %v1117
        %v1134 = vpack.c.bf16 %v1126, %v1122
        %v1135 = vpack.c.bf16 %v1127, %v1123
        %v1136 = vpack.c.bf16 %v1128, %v1124
        %v1137 = vpack.c.bf16 %v1129, %v1125
        %v1138 = vpack.c.bf16 %v1054, %v1050
        %v1139 = vpack.c.bf16 %v1055, %v1051
        %v1140 = vpack.c.bf16 %v1056, %v1052
        %v1141 = vpack.c.bf16 %v1057, %v1053
        %v1142 = vpack.c.bf16 %v1062, %v1058
        %v1143 = vpack.c.bf16 %v1063, %v1059
        %v1144 = vpack.c.bf16 %v1064, %v1060
        %v1145 = vpack.c.bf16 %v1065, %v1061
        %v1150 = vunpack.c.l.b16 %v314
        %v1151 = vunpack.c.l.b16 %v315
        %v1152 = vunpack.c.l.b16 %v316
        %v1153 = vunpack.c.l.b16 %v317
        %v1154 = vpack.c.b16 %v1151, %v1150
        %v1155 = vpack.c.b16 %v1153, %v1152
        %v1157 = vsel %vm552, %v1154, 0
        %v1160 = vsel %vm552, %v1155, 0
        %1162 = vmatprep.subr.bf16.mxu0 %v1139
        %1163 = vmatpush1.bf16.msra.mxu0 %v1138
        %1164 = vmatprep.subr.bf16.mxu0 %v1143
        %1165 = vmatpush1.bf16.msra.mxu0 %v1142
        %1166 = vmatprep.subr.bf16.mxu0 0
        %1167 = vmatpush1.bf16.msra.mxu0 0
        %1168 = vmatprep.subr.bf16.mxu0 0
        %1169 = vmatpush1.bf16.msra.mxu0 0
        %1170 = vmatprep.subr.bf16.mxu0 0
        %1171 = vmatpush1.bf16.msra.mxu0 0
        %1172 = vmatprep.subr.bf16.mxu0 0
        %1173 = vmatpush1.bf16.msra.mxu0 0
        %1174 = vmatprep.subr.bf16.mxu0 0
        %1175 = vmatpush1.bf16.msra.mxu0 0
        %1176 = vmatprep.subr.bf16.mxu0 0
        %1177 = vmatpush1.bf16.msra.mxu0 0
        %1178 = vmatprep.subr.bf16.mxu0 0
        %1179 = vmatpush1.bf16.msra.mxu0 0
        %1180 = vmatprep.subr.bf16.mxu0 0
        %1181 = vmatpush1.bf16.msra.mxu0 0
        %1182 = vmatprep.subr.bf16.mxu0 0
        %1183 = vmatpush1.bf16.msra.mxu0 0
        %1184 = vmatprep.subr.bf16.mxu0 0
        %1185 = vmatpush1.bf16.msra.mxu0 0
        %1186 = vmatprep.subr.bf16.mxu0 0
        %1187 = vmatpush1.bf16.msra.mxu0 0
        %1188 = vmatprep.subr.bf16.mxu0 0
        %1189 = vmatpush1.bf16.msra.mxu0 0
        %1190 = vmatprep.subr.bf16.mxu0 0
        %1191 = vmatpush1.bf16.msra.mxu0 0
        %1192 = vmatprep.subr.bf16.mxu0 0
        %1193 = vmatpush1.bf16.msra.mxu0 0
        %1194 = vmatprep.mubr.bf16.mxu0 0
        %1195 = vmatmul.mubr.bf16.gmra.mrb[0].mxu0 %v1157
        %v1196 = vpop.f32.mrb[0].mxu0
        %v1197 = vadd.f32 0.0, %v1196
        %v1198 = vpop.f32.mrb[0].mxu0
        %v1199 = vadd.f32 0.0, %v1198
        %v1200 = vpop.f32.mrb[0].mxu0
        %v1201 = vadd.f32 0.0, %v1200
        %v1202 = vpop.f32.mrb[0].mxu0
        %v1203 = vadd.f32 0.0, %v1202
        %1204 = vmatprep.mubr.bf16.mxu0 0
        %1205 = vmatmul.mubr.bf16.gmra.mrb[0].mxu0 %v1160
        %v1206 = vpop.f32.mrb[0].mxu0
        %v1207 = vadd.f32 0.0, %v1206
        %v1208 = vpop.f32.mrb[0].mxu0
        %v1209 = vadd.f32 0.0, %v1208
        %v1210 = vpop.f32.mrb[0].mxu0
        %v1211 = vadd.f32 0.0, %v1210
        %v1212 = vpop.f32.mrb[0].mxu0
        %v1213 = vadd.f32 0.0, %v1212
        %1214 = vdwg.mxu0
        %1215 = vmatprep.subr.bf16.mxu0 %v1141
        %1216 = vmatpush1.bf16.msra.mxu0 %v1140
        %1217 = vmatprep.subr.bf16.mxu0 %v1145
        %1218 = vmatpush1.bf16.msra.mxu0 %v1144
        %1219 = vmatprep.subr.bf16.mxu0 0
        %1220 = vmatpush1.bf16.msra.mxu0 0
        %1221 = vmatprep.subr.bf16.mxu0 0
        %1222 = vmatpush1.bf16.msra.mxu0 0
        %1223 = vmatprep.subr.bf16.mxu0 0
        %1224 = vmatpush1.bf16.msra.mxu0 0
        %1225 = vmatprep.subr.bf16.mxu0 0
        %1226 = vmatpush1.bf16.msra.mxu0 0
        %1227 = vmatprep.subr.bf16.mxu0 0
        %1228 = vmatpush1.bf16.msra.mxu0 0
        %1229 = vmatprep.subr.bf16.mxu0 0
        %1230 = vmatpush1.bf16.msra.mxu0 0
        %1231 = vmatprep.subr.bf16.mxu0 0
        %1232 = vmatpush1.bf16.msra.mxu0 0
        %1233 = vmatprep.subr.bf16.mxu0 0
        %1234 = vmatpush1.bf16.msra.mxu0 0
        %1235 = vmatprep.subr.bf16.mxu0 0
        %1236 = vmatpush1.bf16.msra.mxu0 0
        %1237 = vmatprep.subr.bf16.mxu0 0
        %1238 = vmatpush1.bf16.msra.mxu0 0
        %1239 = vmatprep.subr.bf16.mxu0 0
        %1240 = vmatpush1.bf16.msra.mxu0 0
        %1241 = vmatprep.subr.bf16.mxu0 0
        %1242 = vmatpush1.bf16.msra.mxu0 0
        %1243 = vmatprep.subr.bf16.mxu0 0
        %1244 = vmatpush1.bf16.msra.mxu0 0
        %1245 = vmatprep.subr.bf16.mxu0 0
        %1246 = vmatpush1.bf16.msra.mxu0 0
        %1247 = vmatprep.mubr.bf16.mxu0 0
        %1248 = vmatmul.mubr.bf16.gmra.mrb[0].mxu0 %v1157
        %v1249 = vpop.f32.mrb[0].mxu0
        %v1250 = vadd.f32 0.0, %v1249
        %v1251 = vpop.f32.mrb[0].mxu0
        %v1252 = vadd.f32 0.0, %v1251
        %v1253 = vpop.f32.mrb[0].mxu0
        %v1254 = vadd.f32 0.0, %v1253
        %v1255 = vpop.f32.mrb[0].mxu0
        %v1256 = vadd.f32 0.0, %v1255
        %1257 = vmatprep.mubr.bf16.mxu0 0
        %1258 = vmatmul.mubr.bf16.gmra.mrb[0].mxu0 %v1160
        %v1259 = vpop.f32.mrb[0].mxu0
        %v1260 = vadd.f32 0.0, %v1259
        %v1261 = vpop.f32.mrb[0].mxu0
        %v1262 = vadd.f32 0.0, %v1261
        %v1263 = vpop.f32.mrb[0].mxu0
        %v1264 = vadd.f32 0.0, %v1263
        %v1265 = vpop.f32.mrb[0].mxu0
        %v1266 = vadd.f32 0.0, %v1265
        %1267 = vdwg.mxu0
        %v1272 = vunpack.c.l.b16 %v310
        %v1273 = vunpack.c.l.b16 %v311
        %v1274 = vunpack.c.l.b16 %v312
        %v1275 = vunpack.c.l.b16 %v313
        %v1276 = vpack.c.b16 %v1273, %v1272
        %v1277 = vpack.c.b16 %v1275, %v1274
        %v1279 = vsel %vm552, %v1276, 0
        %v1282 = vsel %vm552, %v1277, 0
        %1284 = vmatprep.subr.bf16.mxu0 %v1131
        %1285 = vmatpush1.bf16.msra.mxu0 %v1130
        %1286 = vmatprep.subr.bf16.mxu0 %v1135
        %1287 = vmatpush1.bf16.msra.mxu0 %v1134
        %1288 = vmatprep.subr.bf16.mxu0 0
        %1289 = vmatpush1.bf16.msra.mxu0 0
        %1290 = vmatprep.subr.bf16.mxu0 0
        %1291 = vmatpush1.bf16.msra.mxu0 0
        %1292 = vmatprep.subr.bf16.mxu0 0
        %1293 = vmatpush1.bf16.msra.mxu0 0
        %1294 = vmatprep.subr.bf16.mxu0 0
        %1295 = vmatpush1.bf16.msra.mxu0 0
        %1296 = vmatprep.subr.bf16.mxu0 0
        %1297 = vmatpush1.bf16.msra.mxu0 0
        %1298 = vmatprep.subr.bf16.mxu0 0
        %1299 = vmatpush1.bf16.msra.mxu0 0
        %1300 = vmatprep.subr.bf16.mxu0 0
        %1301 = vmatpush1.bf16.msra.mxu0 0
        %1302 = vmatprep.subr.bf16.mxu0 0
        %1303 = vmatpush1.bf16.msra.mxu0 0
        %1304 = vmatprep.subr.bf16.mxu0 0
        %1305 = vmatpush1.bf16.msra.mxu0 0
        %1306 = vmatprep.subr.bf16.mxu0 0
        %1307 = vmatpush1.bf16.msra.mxu0 0
        %1308 = vmatprep.subr.bf16.mxu0 0
        %1309 = vmatpush1.bf16.msra.mxu0 0
        %1310 = vmatprep.subr.bf16.mxu0 0
        %1311 = vmatpush1.bf16.msra.mxu0 0
        %1312 = vmatprep.subr.bf16.mxu0 0
        %1313 = vmatpush1.bf16.msra.mxu0 0
        %1314 = vmatprep.subr.bf16.mxu0 0
        %1315 = vmatpush1.bf16.msra.mxu0 0
        %1316 = vmatprep.mubr.bf16.mxu0 0
        %1317 = vmatmul.mubr.bf16.gmra.mrb[0].mxu0 %v1279
        %v1318 = vpop.f32.mrb[0].mxu0
        %v1319 = vadd.f32 %v1197, %v1318
        %v1320 = vpop.f32.mrb[0].mxu0
        %v1321 = vadd.f32 %v1199, %v1320
        %v1322 = vpop.f32.mrb[0].mxu0
        %v1323 = vadd.f32 %v1201, %v1322
        %v1324 = vpop.f32.mrb[0].mxu0
        %v1325 = vadd.f32 %v1203, %v1324
        %1326 = vmatprep.mubr.bf16.mxu0 0
        %1327 = vmatmul.mubr.bf16.gmra.mrb[0].mxu0 %v1282
        %v1328 = vpop.f32.mrb[0].mxu0
        %v1329 = vadd.f32 %v1207, %v1328
        %v1330 = vpop.f32.mrb[0].mxu0
        %v1331 = vadd.f32 %v1209, %v1330
        %v1332 = vpop.f32.mrb[0].mxu0
        %v1333 = vadd.f32 %v1211, %v1332
        %v1334 = vpop.f32.mrb[0].mxu0
        %v1335 = vadd.f32 %v1213, %v1334
        %1336 = vdwg.mxu0
        %1337 = vmatprep.subr.bf16.mxu0 %v1133
        %1338 = vmatpush1.bf16.msra.mxu0 %v1132
        %1339 = vmatprep.subr.bf16.mxu0 %v1137
        %1340 = vmatpush1.bf16.msra.mxu0 %v1136
        %1341 = vmatprep.subr.bf16.mxu0 0
        %1342 = vmatpush1.bf16.msra.mxu0 0
        %1343 = vmatprep.subr.bf16.mxu0 0
        %1344 = vmatpush1.bf16.msra.mxu0 0
        %1345 = vmatprep.subr.bf16.mxu0 0
        %1346 = vmatpush1.bf16.msra.mxu0 0
        %1347 = vmatprep.subr.bf16.mxu0 0
        %1348 = vmatpush1.bf16.msra.mxu0 0
        %1349 = vmatprep.subr.bf16.mxu0 0
        %1350 = vmatpush1.bf16.msra.mxu0 0
        %1351 = vmatprep.subr.bf16.mxu0 0
        %1352 = vmatpush1.bf16.msra.mxu0 0
        %1353 = vmatprep.subr.bf16.mxu0 0
        %1354 = vmatpush1.bf16.msra.mxu0 0
        %1355 = vmatprep.subr.bf16.mxu0 0
        %1356 = vmatpush1.bf16.msra.mxu0 0
        %1357 = vmatprep.subr.bf16.mxu0 0
        %1358 = vmatpush1.bf16.msra.mxu0 0
        %1359 = vmatprep.subr.bf16.mxu0 0
        %1360 = vmatpush1.bf16.msra.mxu0 0
        %1361 = vmatprep.subr.bf16.mxu0 0
        %1362 = vmatpush1.bf16.msra.mxu0 0
        %1363 = vmatprep.subr.bf16.mxu0 0
        %1364 = vmatpush1.bf16.msra.mxu0 0
        %1365 = vmatprep.subr.bf16.mxu0 0
        %1366 = vmatpush1.bf16.msra.mxu0 0
        %1367 = vmatprep.subr.bf16.mxu0 0
        %1368 = vmatpush1.bf16.msra.mxu0 0
        %1369 = vmatprep.mubr.bf16.mxu0 0
        %1370 = vmatmul.mubr.bf16.gmra.mrb[0].mxu0 %v1279
        %v1371 = vpop.f32.mrb[0].mxu0
        %v1372 = vadd.f32 %v1250, %v1371
        %v1373 = vpop.f32.mrb[0].mxu0
        %v1374 = vadd.f32 %v1252, %v1373
        %v1375 = vpop.f32.mrb[0].mxu0
        %v1376 = vadd.f32 %v1254, %v1375
        %v1377 = vpop.f32.mrb[0].mxu0
        %v1378 = vadd.f32 %v1256, %v1377
        %1379 = vmatprep.mubr.bf16.mxu0 0
        %1380 = vmatmul.mubr.bf16.gmra.mrb[0].mxu0 %v1282
        %v1381 = vpop.f32.mrb[0].mxu0
        %v1382 = vadd.f32 %v1260, %v1381
        %v1383 = vpop.f32.mrb[0].mxu0
        %v1384 = vadd.f32 %v1262, %v1383
        %v1385 = vpop.f32.mrb[0].mxu0
        %v1386 = vadd.f32 %v1264, %v1385
        %v1387 = vpop.f32.mrb[0].mxu0
        %v1388 = vadd.f32 %v1266, %v1387
        %1389 = vdwg.mxu0
        %1390 = vrot.lane.b32.xlu0 %v1050, 127
        %v1391 = vpop.permute.xlu0 %1390
        %1392 = vrot.lane.b32.xlu0 %v1054, 127
        %v1393 = vpop.permute.xlu0 %1392
        %1394 = vrot.lane.b32.xlu0 %v1058, 127
        %v1395 = vpop.permute.xlu0 %1394
        %1396 = vrot.lane.b32.xlu0 %v1062, 127
        %v1397 = vpop.permute.xlu0 %1396
        %1398 = vrot.lane.b32.xlu0 %v1051, 127
        %v1399 = vpop.permute.xlu0 %1398
        %1400 = vrot.lane.b32.xlu0 %v1055, 127
        %v1401 = vpop.permute.xlu0 %1400
        %1402 = vrot.lane.b32.xlu0 %v1059, 127
        %v1403 = vpop.permute.xlu0 %1402
        %1404 = vrot.lane.b32.xlu0 %v1063, 127
        %v1405 = vpop.permute.xlu0 %1404
        %1406 = vrot.lane.b32.xlu0 %v1052, 127
        %v1407 = vpop.permute.xlu0 %1406
        %1408 = vrot.lane.b32.xlu0 %v1056, 127
        %v1409 = vpop.permute.xlu0 %1408
        %1410 = vrot.lane.b32.xlu0 %v1060, 127
        %v1411 = vpop.permute.xlu0 %1410
        %1412 = vrot.lane.b32.xlu0 %v1064, 127
        %v1413 = vpop.permute.xlu0 %1412
        %1414 = vrot.lane.b32.xlu0 %v1053, 127
        %v1415 = vpop.permute.xlu0 %1414
        %1416 = vrot.lane.b32.xlu0 %v1057, 127
        %v1417 = vpop.permute.xlu0 %1416
        %1418 = vrot.lane.b32.xlu0 %v1061, 127
        %v1419 = vpop.permute.xlu0 %1418
        %1420 = vrot.lane.b32.xlu0 %v1065, 127
        %v1421 = vpop.permute.xlu0 %1420
        %v1422 = vsel %vm819, %v1407, %v1415
        %v1423 = vsel %vm819, %v1409, %v1417
        %v1424 = vsel %vm819, %v1411, %v1419
        %v1425 = vsel %vm819, %v1413, %v1421
        %v1426 = vsel %vm819, %v1399, %v1407
        %v1427 = vsel %vm819, %v1401, %v1409
        %v1428 = vsel %vm819, %v1403, %v1411
        %v1429 = vsel %vm819, %v1405, %v1413
        %v1430 = vsel %vm819, %v1391, %v1399
        %v1431 = vsel %vm819, %v1393, %v1401
        %v1432 = vsel %vm819, %v1395, %v1403
        %v1433 = vsel %vm819, %v1397, %v1405
        %v1434 = vsel %vm819, %v1415, %v1391
        %v1435 = vsel %vm819, %v1417, %v1393
        %v1436 = vsel %vm819, %v1419, %v1395
        %v1437 = vsel %vm819, %v1421, %v1397
        %v1438 = vmul.f32 %v1430, %v839
        %v1439 = vmul.f32 %v1426, %v843
        %v1440 = vmul.f32 %v1422, %v847
        %v1441 = vmul.f32 %v1434, %v851
        %v1442 = vmul.f32 %v1431, %v839
        %v1443 = vmul.f32 %v1427, %v843
        %v1444 = vmul.f32 %v1423, %v847
        %v1445 = vmul.f32 %v1435, %v851
        %v1446 = vmul.f32 %v1432, %v839
        %v1447 = vmul.f32 %v1428, %v843
        %v1448 = vmul.f32 %v1424, %v847
        %v1449 = vmul.f32 %v1436, %v851
        %v1450 = vmul.f32 %v1433, %v839
        %v1451 = vmul.f32 %v1429, %v843
        %v1452 = vmul.f32 %v1425, %v847
        %v1453 = vmul.f32 %v1437, %v851
        %v1454 = vpack.c.bf16 %v1442, %v1438
        %v1455 = vpack.c.bf16 %v1443, %v1439
        %v1456 = vpack.c.bf16 %v1444, %v1440
        %v1457 = vpack.c.bf16 %v1445, %v1441
        %v1458 = vpack.c.bf16 %v1450, %v1446
        %v1459 = vpack.c.bf16 %v1451, %v1447
        %v1460 = vpack.c.bf16 %v1452, %v1448
        %v1461 = vpack.c.bf16 %v1453, %v1449
        %v1466 = vunpack.c.l.b16 %v318
        %v1467 = vunpack.c.l.b16 %v319
        %v1468 = vunpack.c.l.b16 %v320
        %v1469 = vunpack.c.l.b16 %v321
        %v1470 = vpack.c.b16 %v1467, %v1466
        %v1471 = vpack.c.b16 %v1469, %v1468
        %v1473 = vsel %vm552, %v1470, 0
        %v1476 = vsel %vm552, %v1471, 0
        %1478 = vmatprep.subr.bf16.mxu0 %v1455
        %1479 = vmatpush1.bf16.msra.mxu0 %v1454
        %1480 = vmatprep.subr.bf16.mxu0 %v1459
        %1481 = vmatpush1.bf16.msra.mxu0 %v1458
        %1482 = vmatprep.subr.bf16.mxu0 0
        %1483 = vmatpush1.bf16.msra.mxu0 0
        %1484 = vmatprep.subr.bf16.mxu0 0
        %1485 = vmatpush1.bf16.msra.mxu0 0
        %1486 = vmatprep.subr.bf16.mxu0 0
        %1487 = vmatpush1.bf16.msra.mxu0 0
        %1488 = vmatprep.subr.bf16.mxu0 0
        %1489 = vmatpush1.bf16.msra.mxu0 0
        %1490 = vmatprep.subr.bf16.mxu0 0
        %1491 = vmatpush1.bf16.msra.mxu0 0
        %1492 = vmatprep.subr.bf16.mxu0 0
        %1493 = vmatpush1.bf16.msra.mxu0 0
        %1494 = vmatprep.subr.bf16.mxu0 0
        %1495 = vmatpush1.bf16.msra.mxu0 0
        %1496 = vmatprep.subr.bf16.mxu0 0
        %1497 = vmatpush1.bf16.msra.mxu0 0
        %1498 = vmatprep.subr.bf16.mxu0 0
        %1499 = vmatpush1.bf16.msra.mxu0 0
        %1500 = vmatprep.subr.bf16.mxu0 0
        %1501 = vmatpush1.bf16.msra.mxu0 0
        %1502 = vmatprep.subr.bf16.mxu0 0
        %1503 = vmatpush1.bf16.msra.mxu0 0
        %1504 = vmatprep.subr.bf16.mxu0 0
        %1505 = vmatpush1.bf16.msra.mxu0 0
        %1506 = vmatprep.subr.bf16.mxu0 0
        %1507 = vmatpush1.bf16.msra.mxu0 0
        %1508 = vmatprep.subr.bf16.mxu0 0
        %1509 = vmatpush1.bf16.msra.mxu0 0
        %1510 = vmatprep.mubr.bf16.mxu0 0
        %1511 = vmatmul.mubr.bf16.gmra.mrb[0].mxu0 %v1473
        %v1512 = vpop.f32.mrb[0].mxu0
        %v1513 = vadd.f32 0.0, %v1512
        %v1514 = vpop.f32.mrb[0].mxu0
        %v1515 = vadd.f32 0.0, %v1514
        %v1516 = vpop.f32.mrb[0].mxu0
        %v1517 = vadd.f32 0.0, %v1516
        %v1518 = vpop.f32.mrb[0].mxu0
        %v1519 = vadd.f32 0.0, %v1518
        %1520 = vmatprep.mubr.bf16.mxu0 0
        %1521 = vmatmul.mubr.bf16.gmra.mrb[0].mxu0 %v1476
        %v1522 = vpop.f32.mrb[0].mxu0
        %v1523 = vadd.f32 0.0, %v1522
        %v1524 = vpop.f32.mrb[0].mxu0
        %v1525 = vadd.f32 0.0, %v1524
        %v1526 = vpop.f32.mrb[0].mxu0
        %v1527 = vadd.f32 0.0, %v1526
        %v1528 = vpop.f32.mrb[0].mxu0
        %v1529 = vadd.f32 0.0, %v1528
        %1530 = vdwg.mxu0
        %1531 = vmatprep.subr.bf16.mxu0 %v1457
        %1532 = vmatpush1.bf16.msra.mxu0 %v1456
        %1533 = vmatprep.subr.bf16.mxu0 %v1461
        %1534 = vmatpush1.bf16.msra.mxu0 %v1460
        %1535 = vmatprep.subr.bf16.mxu0 0
        %1536 = vmatpush1.bf16.msra.mxu0 0
        %1537 = vmatprep.subr.bf16.mxu0 0
        %1538 = vmatpush1.bf16.msra.mxu0 0
        %1539 = vmatprep.subr.bf16.mxu0 0
        %1540 = vmatpush1.bf16.msra.mxu0 0
        %1541 = vmatprep.subr.bf16.mxu0 0
        %1542 = vmatpush1.bf16.msra.mxu0 0
        %1543 = vmatprep.subr.bf16.mxu0 0
        %1544 = vmatpush1.bf16.msra.mxu0 0
        %1545 = vmatprep.subr.bf16.mxu0 0
        %1546 = vmatpush1.bf16.msra.mxu0 0
        %1547 = vmatprep.subr.bf16.mxu0 0
        %1548 = vmatpush1.bf16.msra.mxu0 0
        %1549 = vmatprep.subr.bf16.mxu0 0
        %1550 = vmatpush1.bf16.msra.mxu0 0
        %1551 = vmatprep.subr.bf16.mxu0 0
        %1552 = vmatpush1.bf16.msra.mxu0 0
        %1553 = vmatprep.subr.bf16.mxu0 0
        %1554 = vmatpush1.bf16.msra.mxu0 0
        %1555 = vmatprep.subr.bf16.mxu0 0
        %1556 = vmatpush1.bf16.msra.mxu0 0
        %1557 = vmatprep.subr.bf16.mxu0 0
        %1558 = vmatpush1.bf16.msra.mxu0 0
        %1559 = vmatprep.subr.bf16.mxu0 0
        %1560 = vmatpush1.bf16.msra.mxu0 0
        %1561 = vmatprep.subr.bf16.mxu0 0
        %1562 = vmatpush1.bf16.msra.mxu0 0
        %1563 = vmatprep.mubr.bf16.mxu0 0
        %1564 = vmatmul.mubr.bf16.gmra.mrb[0].mxu0 %v1473
        %v1565 = vpop.f32.mrb[0].mxu0
        %v1566 = vadd.f32 0.0, %v1565
        %v1567 = vpop.f32.mrb[0].mxu0
        %v1568 = vadd.f32 0.0, %v1567
        %v1569 = vpop.f32.mrb[0].mxu0
        %v1570 = vadd.f32 0.0, %v1569
        %v1571 = vpop.f32.mrb[0].mxu0
        %v1572 = vadd.f32 0.0, %v1571
        %1573 = vmatprep.mubr.bf16.mxu0 0
        %1574 = vmatmul.mubr.bf16.gmra.mrb[0].mxu0 %v1476
        %v1575 = vpop.f32.mrb[0].mxu0
        %v1576 = vadd.f32 0.0, %v1575
        %v1577 = vpop.f32.mrb[0].mxu0
        %v1578 = vadd.f32 0.0, %v1577
        %v1579 = vpop.f32.mrb[0].mxu0
        %v1580 = vadd.f32 0.0, %v1579
        %v1581 = vpop.f32.mrb[0].mxu0
        %v1582 = vadd.f32 0.0, %v1581
        %1583 = vdwg.mxu0
        %v1584 = vadd.f32 %v1319, %v1513
        %v1585 = vadd.f32 %v1321, %v1515
        %v1586 = vadd.f32 %v1372, %v1566
        %v1587 = vadd.f32 %v1374, %v1568
        %v1588 = vadd.f32 %v1323, %v1517
        %v1589 = vadd.f32 %v1325, %v1519
        %v1590 = vadd.f32 %v1376, %v1570
        %v1591 = vadd.f32 %v1378, %v1572
        %v1592 = vadd.f32 %v1329, %v1523
        %v1593 = vadd.f32 %v1331, %v1525
        %v1594 = vadd.f32 %v1382, %v1576
        %v1595 = vadd.f32 %v1384, %v1578
        %v1596 = vadd.f32 %v1333, %v1527
        %v1597 = vadd.f32 %v1335, %v1529
        %v1598 = vadd.f32 %v1386, %v1580
        %v1599 = vadd.f32 %v1388, %v1582
        %1600 = vrot.lane.b32.xlu0 %v1050, 126
        %v1601 = vpop.permute.xlu0 %1600
        %1602 = vrot.lane.b32.xlu0 %v1054, 126
        %v1603 = vpop.permute.xlu0 %1602
        %1604 = vrot.lane.b32.xlu0 %v1058, 126
        %v1605 = vpop.permute.xlu0 %1604
        %1606 = vrot.lane.b32.xlu0 %v1062, 126
        %v1607 = vpop.permute.xlu0 %1606
        %1608 = vrot.lane.b32.xlu0 %v1051, 126
        %v1609 = vpop.permute.xlu0 %1608
        %1610 = vrot.lane.b32.xlu0 %v1055, 126
        %v1611 = vpop.permute.xlu0 %1610
        %1612 = vrot.lane.b32.xlu0 %v1059, 126
        %v1613 = vpop.permute.xlu0 %1612
        %1614 = vrot.lane.b32.xlu0 %v1063, 126
        %v1615 = vpop.permute.xlu0 %1614
        %1616 = vrot.lane.b32.xlu0 %v1052, 126
        %v1617 = vpop.permute.xlu0 %1616
        %1618 = vrot.lane.b32.xlu0 %v1056, 126
        %v1619 = vpop.permute.xlu0 %1618
        %1620 = vrot.lane.b32.xlu0 %v1060, 126
        %v1621 = vpop.permute.xlu0 %1620
        %1622 = vrot.lane.b32.xlu0 %v1064, 126
        %v1623 = vpop.permute.xlu0 %1622
        %1624 = vrot.lane.b32.xlu0 %v1053, 126
        %v1625 = vpop.permute.xlu0 %1624
        %1626 = vrot.lane.b32.xlu0 %v1057, 126
        %v1627 = vpop.permute.xlu0 %1626
        %1628 = vrot.lane.b32.xlu0 %v1061, 126
        %v1629 = vpop.permute.xlu0 %1628
        %1630 = vrot.lane.b32.xlu0 %v1065, 126
        %v1631 = vpop.permute.xlu0 %1630
        %vm1632 = vcmp.lt.s32.totalorder %v476, 126
        %v1633 = vsel %vm1632, %v1617, %v1625
        %v1634 = vsel %vm1632, %v1619, %v1627
        %v1635 = vsel %vm1632, %v1621, %v1629
        %v1636 = vsel %vm1632, %v1623, %v1631
        %v1637 = vsel %vm1632, %v1609, %v1617
        %v1638 = vsel %vm1632, %v1611, %v1619
        %v1639 = vsel %vm1632, %v1613, %v1621
        %v1640 = vsel %vm1632, %v1615, %v1623
        %v1641 = vsel %vm1632, %v1601, %v1609
        %v1642 = vsel %vm1632, %v1603, %v1611
        %v1643 = vsel %vm1632, %v1605, %v1613
        %v1644 = vsel %vm1632, %v1607, %v1615
        %v1645 = vsel %vm1632, %v1625, %v1601
        %v1646 = vsel %vm1632, %v1627, %v1603
        %v1647 = vsel %vm1632, %v1629, %v1605
        %v1648 = vsel %vm1632, %v1631, %v1607
        %v1649 = vlaneseq
        %v1650 = vshrl.u32 %v1649, 7
        %v1651 = vsub.s32 2, %v1650
        %v1652 = vrot.slane %v422, %v1651
        %v1653 = vlaneseq
        %v1654 = vshrl.u32 %v1653, 7
        %v1655 = vsub.s32 2, %v1654
        %v1656 = vrot.slane %v423, %v1655
        %v1657 = vlaneseq
        %v1658 = vshrl.u32 %v1657, 7
        %v1659 = vsub.s32 2, %v1658
        %v1660 = vrot.slane %v424, %v1659
        %v1661 = vlaneseq
        %v1662 = vshrl.u32 %v1661, 7
        %v1663 = vsub.s32 2, %v1662
        %v1664 = vrot.slane %v425, %v1663
        %v1665 = vmul.f32 %v1641, %v1652
        %v1666 = vmul.f32 %v1637, %v1656
        %v1667 = vmul.f32 %v1633, %v1660
        %v1668 = vmul.f32 %v1645, %v1664
        %v1669 = vmul.f32 %v1642, %v1652
        %v1670 = vmul.f32 %v1638, %v1656
        %v1671 = vmul.f32 %v1634, %v1660
        %v1672 = vmul.f32 %v1646, %v1664
        %v1673 = vmul.f32 %v1643, %v1652
        %v1674 = vmul.f32 %v1639, %v1656
        %v1675 = vmul.f32 %v1635, %v1660
        %v1676 = vmul.f32 %v1647, %v1664
        %v1677 = vmul.f32 %v1644, %v1652
        %v1678 = vmul.f32 %v1640, %v1656
        %v1679 = vmul.f32 %v1636, %v1660
        %v1680 = vmul.f32 %v1648, %v1664
        %v1681 = vpack.c.bf16 %v1669, %v1665
        %v1682 = vpack.c.bf16 %v1670, %v1666
        %v1683 = vpack.c.bf16 %v1671, %v1667
        %v1684 = vpack.c.bf16 %v1672, %v1668
        %v1685 = vpack.c.bf16 %v1677, %v1673
        %v1686 = vpack.c.bf16 %v1678, %v1674
        %v1687 = vpack.c.bf16 %v1679, %v1675
        %v1688 = vpack.c.bf16 %v1680, %v1676
        %v1693 = vunpack.c.l.b16 %v322
        %v1694 = vunpack.c.l.b16 %v323
        %v1695 = vunpack.c.l.b16 %v324
        %v1696 = vunpack.c.l.b16 %v325
        %v1697 = vpack.c.b16 %v1694, %v1693
        %v1698 = vpack.c.b16 %v1696, %v1695
        %v1700 = vsel %vm552, %v1697, 0
        %v1703 = vsel %vm552, %v1698, 0
        %1705 = vmatprep.subr.bf16.mxu0 %v1682
        %1706 = vmatpush1.bf16.msra.mxu0 %v1681
        %1707 = vmatprep.subr.bf16.mxu0 %v1686
        %1708 = vmatpush1.bf16.msra.mxu0 %v1685
        %1709 = vmatprep.subr.bf16.mxu0 0
        %1710 = vmatpush1.bf16.msra.mxu0 0
        %1711 = vmatprep.subr.bf16.mxu0 0
        %1712 = vmatpush1.bf16.msra.mxu0 0
        %1713 = vmatprep.subr.bf16.mxu0 0
        %1714 = vmatpush1.bf16.msra.mxu0 0
        %1715 = vmatprep.subr.bf16.mxu0 0
        %1716 = vmatpush1.bf16.msra.mxu0 0
        %1717 = vmatprep.subr.bf16.mxu0 0
        %1718 = vmatpush1.bf16.msra.mxu0 0
        %1719 = vmatprep.subr.bf16.mxu0 0
        %1720 = vmatpush1.bf16.msra.mxu0 0
        %1721 = vmatprep.subr.bf16.mxu0 0
        %1722 = vmatpush1.bf16.msra.mxu0 0
        %1723 = vmatprep.subr.bf16.mxu0 0
        %1724 = vmatpush1.bf16.msra.mxu0 0
        %1725 = vmatprep.subr.bf16.mxu0 0
        %1726 = vmatpush1.bf16.msra.mxu0 0
        %1727 = vmatprep.subr.bf16.mxu0 0
        %1728 = vmatpush1.bf16.msra.mxu0 0
        %1729 = vmatprep.subr.bf16.mxu0 0
        %1730 = vmatpush1.bf16.msra.mxu0 0
        %1731 = vmatprep.subr.bf16.mxu0 0
        %1732 = vmatpush1.bf16.msra.mxu0 0
        %1733 = vmatprep.subr.bf16.mxu0 0
        %1734 = vmatpush1.bf16.msra.mxu0 0
        %1735 = vmatprep.subr.bf16.mxu0 0
        %1736 = vmatpush1.bf16.msra.mxu0 0
        %1737 = vmatprep.mubr.bf16.mxu0 0
        %1738 = vmatmul.mubr.bf16.gmra.mrb[0].mxu0 %v1700
        %v1739 = vpop.f32.mrb[0].mxu0
        %v1740 = vadd.f32 0.0, %v1739
        %v1741 = vpop.f32.mrb[0].mxu0
        %v1742 = vadd.f32 0.0, %v1741
        %v1743 = vpop.f32.mrb[0].mxu0
        %v1744 = vadd.f32 0.0, %v1743
        %v1745 = vpop.f32.mrb[0].mxu0
        %v1746 = vadd.f32 0.0, %v1745
        %1747 = vmatprep.mubr.bf16.mxu0 0
        %1748 = vmatmul.mubr.bf16.gmra.mrb[0].mxu0 %v1703
        %v1749 = vpop.f32.mrb[0].mxu0
        %v1750 = vadd.f32 0.0, %v1749
        %v1751 = vpop.f32.mrb[0].mxu0
        %v1752 = vadd.f32 0.0, %v1751
        %v1753 = vpop.f32.mrb[0].mxu0
        %v1754 = vadd.f32 0.0, %v1753
        %v1755 = vpop.f32.mrb[0].mxu0
        %v1756 = vadd.f32 0.0, %v1755
        %1757 = vdwg.mxu0
        %1758 = vmatprep.subr.bf16.mxu0 %v1684
        %1759 = vmatpush1.bf16.msra.mxu0 %v1683
        %1760 = vmatprep.subr.bf16.mxu0 %v1688
        %1761 = vmatpush1.bf16.msra.mxu0 %v1687
        %1762 = vmatprep.subr.bf16.mxu0 0
        %1763 = vmatpush1.bf16.msra.mxu0 0
        %1764 = vmatprep.subr.bf16.mxu0 0
        %1765 = vmatpush1.bf16.msra.mxu0 0
        %1766 = vmatprep.subr.bf16.mxu0 0
        %1767 = vmatpush1.bf16.msra.mxu0 0
        %1768 = vmatprep.subr.bf16.mxu0 0
        %1769 = vmatpush1.bf16.msra.mxu0 0
        %1770 = vmatprep.subr.bf16.mxu0 0
        %1771 = vmatpush1.bf16.msra.mxu0 0
        %1772 = vmatprep.subr.bf16.mxu0 0
        %1773 = vmatpush1.bf16.msra.mxu0 0
        %1774 = vmatprep.subr.bf16.mxu0 0
        %1775 = vmatpush1.bf16.msra.mxu0 0
        %1776 = vmatprep.subr.bf16.mxu0 0
        %1777 = vmatpush1.bf16.msra.mxu0 0
        %1778 = vmatprep.subr.bf16.mxu0 0
        %1779 = vmatpush1.bf16.msra.mxu0 0
        %1780 = vmatprep.subr.bf16.mxu0 0
        %1781 = vmatpush1.bf16.msra.mxu0 0
        %1782 = vmatprep.subr.bf16.mxu0 0
        %1783 = vmatpush1.bf16.msra.mxu0 0
        %1784 = vmatprep.subr.bf16.mxu0 0
        %1785 = vmatpush1.bf16.msra.mxu0 0
        %1786 = vmatprep.subr.bf16.mxu0 0
        %1787 = vmatpush1.bf16.msra.mxu0 0
        %1788 = vmatprep.subr.bf16.mxu0 0
        %1789 = vmatpush1.bf16.msra.mxu0 0
        %1790 = vmatprep.mubr.bf16.mxu0 0
        %1791 = vmatmul.mubr.bf16.gmra.mrb[0].mxu0 %v1700
        %v1792 = vpop.f32.mrb[0].mxu0
        %v1793 = vadd.f32 0.0, %v1792
        %v1794 = vpop.f32.mrb[0].mxu0
        %v1795 = vadd.f32 0.0, %v1794
        %v1796 = vpop.f32.mrb[0].mxu0
        %v1797 = vadd.f32 0.0, %v1796
        %v1798 = vpop.f32.mrb[0].mxu0
        %v1799 = vadd.f32 0.0, %v1798
        %1800 = vmatprep.mubr.bf16.mxu0 0
        %1801 = vmatmul.mubr.bf16.gmra.mrb[0].mxu0 %v1703
        %v1802 = vpop.f32.mrb[0].mxu0
        %v1803 = vadd.f32 0.0, %v1802
        %v1804 = vpop.f32.mrb[0].mxu0
        %v1805 = vadd.f32 0.0, %v1804
        %v1806 = vpop.f32.mrb[0].mxu0
        %v1807 = vadd.f32 0.0, %v1806
        %v1808 = vpop.f32.mrb[0].mxu0
        %v1809 = vadd.f32 0.0, %v1808
        %1810 = vdwg.mxu0
        %v1811 = vadd.f32 %v1584, %v1740
        %v1812 = vadd.f32 %v1585, %v1742
        %v1813 = vadd.f32 %v1586, %v1793
        %v1814 = vadd.f32 %v1587, %v1795
        %v1815 = vadd.f32 %v1588, %v1744
        %v1816 = vadd.f32 %v1589, %v1746
        %v1817 = vadd.f32 %v1590, %v1797
        %v1818 = vadd.f32 %v1591, %v1799
        %v1819 = vadd.f32 %v1592, %v1750
        %v1820 = vadd.f32 %v1593, %v1752
        %v1821 = vadd.f32 %v1594, %v1803
        %v1822 = vadd.f32 %v1595, %v1805
        %v1823 = vadd.f32 %v1596, %v1754
        %v1824 = vadd.f32 %v1597, %v1756
        %v1825 = vadd.f32 %v1598, %v1807
        %v1826 = vadd.f32 %v1599, %v1809
        %1827 = vset.pattern.permute.xlu0 1
        %1828 = vperm.xlu0 %1827, %v418
        %v1829 = vpop.permute.xlu0 %1828
        %1831 = vset.pattern.permute.xlu0 1
        %1832 = vperm.xlu0 %1831, %v419
        %v1833 = vpop.permute.xlu0 %1832
        %1835 = vset.pattern.permute.xlu0 1
        %1836 = vperm.xlu0 %1835, %v420
        %v1837 = vpop.permute.xlu0 %1836
        %1839 = vset.pattern.permute.xlu0 1
        %1840 = vperm.xlu0 %1839, %v421
        %v1841 = vpop.permute.xlu0 %1840
        %v1843 = vadd.f32 %v1811, %v1829
        %v1844 = vadd.f32 %v1812, %v1829
        %v1845 = vadd.f32 %v1813, %v1829
        %v1846 = vadd.f32 %v1814, %v1829
        %v1847 = vadd.f32 %v1815, %v1833
        %v1848 = vadd.f32 %v1816, %v1833
        %v1849 = vadd.f32 %v1817, %v1833
        %v1850 = vadd.f32 %v1818, %v1833
        %v1851 = vadd.f32 %v1819, %v1837
        %v1852 = vadd.f32 %v1820, %v1837
        %v1853 = vadd.f32 %v1821, %v1837
        %v1854 = vadd.f32 %v1822, %v1837
        %v1855 = vadd.f32 %v1823, %v1841
        %v1856 = vadd.f32 %v1824, %v1841
        %v1857 = vadd.f32 %v1825, %v1841
        %v1858 = vadd.f32 %v1826, %v1841
        %v1859 = vpack.c.bf16 %v1847, %v1843
        %v1860 = vpack.c.bf16 %v1848, %v1844
        %v1861 = vpack.c.bf16 %v1849, %v1845
        %v1862 = vpack.c.bf16 %v1850, %v1846
        %v1863 = vpack.c.bf16 %v1855, %v1851
        %v1864 = vpack.c.bf16 %v1856, %v1852
        %v1865 = vpack.c.bf16 %v1857, %v1853
        %v1866 = vpack.c.bf16 %v1858, %v1854
        %v1867 = vld [vmem:[%s4] sm:$0xff]
        %v1868 = vld [vmem:[%s4 + $0x8] sm:$0xff]
        %v1869 = vld [vmem:[%s4 + $0x10] sm:$0xff]
        %v1870 = vld [vmem:[%s4 + $0x18] sm:$0xff]
        %v1871 = vld [vmem:[%s4 + $0x20] sm:$0xff]
        %v1872 = vld [vmem:[%s4 + $0x28] sm:$0xff]
        %v1873 = vld [vmem:[%s4 + $0x30] sm:$0xff]
        %v1874 = vld [vmem:[%s4 + $0x38] sm:$0xff]
        %v1875 = vld [vmem:[%s4 + $0x40] sm:$0xff]
        %v1876 = vld [vmem:[%s4 + $0x48] sm:$0xff]
        %v1877 = vld [vmem:[%s4 + $0x50] sm:$0xff]
        %v1878 = vld [vmem:[%s4 + $0x58] sm:$0xff]
        %v1879 = vld [vmem:[%s4 + $0x60] sm:$0xff]
        %v1880 = vld [vmem:[%s4 + $0x68] sm:$0xff]
        %v1881 = vld [vmem:[%s4 + $0x70] sm:$0xff]
        %v1882 = vld [vmem:[%s4 + $0x78] sm:$0xff]
        %v1883 = vld [vmem:[%s4 + $0x80] sm:$0xff]
        %v1884 = vld [vmem:[%s4 + $0x88] sm:$0xff]
        %v1885 = vld [vmem:[%s4 + $0x90] sm:$0xff]
        %v1886 = vld [vmem:[%s4 + $0x98] sm:$0xff]
        %v1887 = vld [vmem:[%s4 + $0xa0] sm:$0xff]
        %v1888 = vld [vmem:[%s4 + $0xa8] sm:$0xff]
        %v1889 = vld [vmem:[%s4 + $0xb0] sm:$0xff]
        %v1890 = vld [vmem:[%s4 + $0xb8] sm:$0xff]
        %v1891 = vld [vmem:[%s4 + $0xc0] sm:$0xff]
        %v1892 = vld [vmem:[%s4 + $0xc8] sm:$0xff]
        %v1893 = vld [vmem:[%s4 + $0xd0] sm:$0xff]
        %v1894 = vld [vmem:[%s4 + $0xd8] sm:$0xff]
        %v1895 = vld [vmem:[%s4 + $0xe0] sm:$0xff]
        %v1896 = vld [vmem:[%s4 + $0xe8] sm:$0xff]
        %v1897 = vld [vmem:[%s4 + $0xf0] sm:$0xff]
        %v1898 = vld [vmem:[%s4 + $0xf8] sm:$0xff]
        %v1899 = vld [vmem:[%s4 + $0x100] sm:$0xff]
        %v1900 = vld [vmem:[%s4 + $0x108] sm:$0xff]
        %v1901 = vld [vmem:[%s4 + $0x110] sm:$0xff]
        %v1902 = vld [vmem:[%s4 + $0x118] sm:$0xff]
        %v1903 = vld [vmem:[%s4 + $0x120] sm:$0xff]
        %v1904 = vld [vmem:[%s4 + $0x128] sm:$0xff]
        %v1905 = vld [vmem:[%s4 + $0x130] sm:$0xff]
        %v1906 = vld [vmem:[%s4 + $0x138] sm:$0xff]
        %v1907 = vld [vmem:[%s4 + $0x140] sm:$0xff]
        %v1908 = vld [vmem:[%s4 + $0x148] sm:$0xff]
        %v1909 = vld [vmem:[%s4 + $0x150] sm:$0xff]
        %v1910 = vld [vmem:[%s4 + $0x158] sm:$0xff]
        %v1911 = vld [vmem:[%s4 + $0x160] sm:$0xff]
        %v1912 = vld [vmem:[%s4 + $0x168] sm:$0xff]
        %v1913 = vld [vmem:[%s4 + $0x170] sm:$0xff]
        %v1914 = vld [vmem:[%s4 + $0x178] sm:$0xff]
        %v1915 = vld [vmem:[%s4 + $0x180] sm:$0xff]
        %v1916 = vld [vmem:[%s4 + $0x188] sm:$0xff]
        %v1917 = vld [vmem:[%s4 + $0x190] sm:$0xff]
        %v1918 = vld [vmem:[%s4 + $0x198] sm:$0xff]
        %v1919 = vld [vmem:[%s4 + $0x1a0] sm:$0xff]
        %v1920 = vld [vmem:[%s4 + $0x1a8] sm:$0xff]
        %v1921 = vld [vmem:[%s4 + $0x1b0] sm:$0xff]
        %v1922 = vld [vmem:[%s4 + $0x1b8] sm:$0xff]
        %v1923 = vld [vmem:[%s4 + $0x1c0] sm:$0xff]
        %v1924 = vld [vmem:[%s4 + $0x1c8] sm:$0xff]
        %v1925 = vld [vmem:[%s4 + $0x1d0] sm:$0xff]
        %v1926 = vld [vmem:[%s4 + $0x1d8] sm:$0xff]
        %v1927 = vld [vmem:[%s4 + $0x1e0] sm:$0xff]
        %v1928 = vld [vmem:[%s4 + $0x1e8] sm:$0xff]
        %v1929 = vld [vmem:[%s4 + $0x1f0] sm:$0xff]
        %v1930 = vld [vmem:[%s4 + $0x1f8] sm:$0xff]
        %v1995 = vunpack.c.l.b16 %v1867
        %v1996 = vunpack.c.h.b16 %v1867
        %v1997 = vunpack.c.l.b16 %v1868
        %v1998 = vunpack.c.h.b16 %v1868
        %v1999 = vunpack.c.l.b16 %v1869
        %v2000 = vunpack.c.h.b16 %v1869
        %v2001 = vunpack.c.l.b16 %v1870
        %v2002 = vunpack.c.h.b16 %v1870
        %v2003 = vunpack.c.l.b16 %v1871
        %v2004 = vunpack.c.h.b16 %v1871
        %v2005 = vunpack.c.l.b16 %v1872
        %v2006 = vunpack.c.h.b16 %v1872
        %v2007 = vunpack.c.l.b16 %v1873
        %v2008 = vunpack.c.h.b16 %v1873
        %v2009 = vunpack.c.l.b16 %v1874
        %v2010 = vunpack.c.h.b16 %v1874
        %v2011 = vunpack.c.l.b16 %v1875
        %v2012 = vunpack.c.h.b16 %v1875
        %v2013 = vunpack.c.l.b16 %v1876
        %v2014 = vunpack.c.h.b16 %v1876
        %v2015 = vunpack.c.l.b16 %v1877
        %v2016 = vunpack.c.h.b16 %v1877
        %v2017 = vunpack.c.l.b16 %v1878
        %v2018 = vunpack.c.h.b16 %v1878
        %v2019 = vunpack.c.l.b16 %v1879
        %v2020 = vunpack.c.h.b16 %v1879
        %v2021 = vunpack.c.l.b16 %v1880
        %v2022 = vunpack.c.h.b16 %v1880
        %v2023 = vunpack.c.l.b16 %v1881
        %v2024 = vunpack.c.h.b16 %v1881
        %v2025 = vunpack.c.l.b16 %v1882
        %v2026 = vunpack.c.h.b16 %v1882
        %v2027 = vunpack.c.l.b16 %v1883
        %v2028 = vunpack.c.h.b16 %v1883
        %v2029 = vunpack.c.l.b16 %v1884
        %v2030 = vunpack.c.h.b16 %v1884
        %v2031 = vunpack.c.l.b16 %v1885
        %v2032 = vunpack.c.h.b16 %v1885
        %v2033 = vunpack.c.l.b16 %v1886
        %v2034 = vunpack.c.h.b16 %v1886
        %v2035 = vunpack.c.l.b16 %v1887
        %v2036 = vunpack.c.h.b16 %v1887
        %v2037 = vunpack.c.l.b16 %v1888
        %v2038 = vunpack.c.h.b16 %v1888
        %v2039 = vunpack.c.l.b16 %v1889
        %v2040 = vunpack.c.h.b16 %v1889
        %v2041 = vunpack.c.l.b16 %v1890
        %v2042 = vunpack.c.h.b16 %v1890
        %v2043 = vunpack.c.l.b16 %v1891
        %v2044 = vunpack.c.h.b16 %v1891
        %v2045 = vunpack.c.l.b16 %v1892
        %v2046 = vunpack.c.h.b16 %v1892
        %v2047 = vunpack.c.l.b16 %v1893
        %v2048 = vunpack.c.h.b16 %v1893
        %v2049 = vunpack.c.l.b16 %v1894
        %v2050 = vunpack.c.h.b16 %v1894
        %v2051 = vunpack.c.l.b16 %v1895
        %v2052 = vunpack.c.h.b16 %v1895
        %v2053 = vunpack.c.l.b16 %v1896
        %v2054 = vunpack.c.h.b16 %v1896
        %v2055 = vunpack.c.l.b16 %v1897
        %v2056 = vunpack.c.h.b16 %v1897
        %v2057 = vunpack.c.l.b16 %v1898
        %v2058 = vunpack.c.h.b16 %v1898
        %v2059 = vunpack.c.l.b16 %v1899
        %v2060 = vunpack.c.h.b16 %v1899
        %v2061 = vunpack.c.l.b16 %v1900
        %v2062 = vunpack.c.h.b16 %v1900
        %v2063 = vunpack.c.l.b16 %v1901
        %v2064 = vunpack.c.h.b16 %v1901
        %v2065 = vunpack.c.l.b16 %v1902
        %v2066 = vunpack.c.h.b16 %v1902
        %v2067 = vunpack.c.l.b16 %v1903
        %v2068 = vunpack.c.h.b16 %v1903
        %v2069 = vunpack.c.l.b16 %v1904
        %v2070 = vunpack.c.h.b16 %v1904
        %v2071 = vunpack.c.l.b16 %v1905
        %v2072 = vunpack.c.h.b16 %v1905
        %v2073 = vunpack.c.l.b16 %v1906
        %v2074 = vunpack.c.h.b16 %v1906
        %v2075 = vunpack.c.l.b16 %v1907
        %v2076 = vunpack.c.h.b16 %v1907
        %v2077 = vunpack.c.l.b16 %v1908
        %v2078 = vunpack.c.h.b16 %v1908
        %v2079 = vunpack.c.l.b16 %v1909
        %v2080 = vunpack.c.h.b16 %v1909
        %v2081 = vunpack.c.l.b16 %v1910
        %v2082 = vunpack.c.h.b16 %v1910
        %v2083 = vunpack.c.l.b16 %v1911
        %v2084 = vunpack.c.h.b16 %v1911
        %v2085 = vunpack.c.l.b16 %v1912
        %v2086 = vunpack.c.h.b16 %v1912
        %v2087 = vunpack.c.l.b16 %v1913
        %v2088 = vunpack.c.h.b16 %v1913
        %v2089 = vunpack.c.l.b16 %v1914
        %v2090 = vunpack.c.h.b16 %v1914
        %v2091 = vunpack.c.l.b16 %v1915
        %v2092 = vunpack.c.h.b16 %v1915
        %v2093 = vunpack.c.l.b16 %v1916
        %v2094 = vunpack.c.h.b16 %v1916
        %v2095 = vunpack.c.l.b16 %v1917
        %v2096 = vunpack.c.h.b16 %v1917
        %v2097 = vunpack.c.l.b16 %v1918
        %v2098 = vunpack.c.h.b16 %v1918
        %v2099 = vunpack.c.l.b16 %v1919
        %v2100 = vunpack.c.h.b16 %v1919
        %v2101 = vunpack.c.l.b16 %v1920
        %v2102 = vunpack.c.h.b16 %v1920
        %v2103 = vunpack.c.l.b16 %v1921
        %v2104 = vunpack.c.h.b16 %v1921
        %v2105 = vunpack.c.l.b16 %v1922
        %v2106 = vunpack.c.h.b16 %v1922
        %v2107 = vunpack.c.l.b16 %v1923
        %v2108 = vunpack.c.h.b16 %v1923
        %v2109 = vunpack.c.l.b16 %v1924
        %v2110 = vunpack.c.h.b16 %v1924
        %v2111 = vunpack.c.l.b16 %v1925
        %v2112 = vunpack.c.h.b16 %v1925
        %v2113 = vunpack.c.l.b16 %v1926
        %v2114 = vunpack.c.h.b16 %v1926
        %v2115 = vunpack.c.l.b16 %v1927
        %v2116 = vunpack.c.h.b16 %v1927
        %v2117 = vunpack.c.l.b16 %v1928
        %v2118 = vunpack.c.h.b16 %v1928
        %v2119 = vunpack.c.l.b16 %v1929
        %v2120 = vunpack.c.h.b16 %v1929
        %v2121 = vunpack.c.l.b16 %v1930
        %v2122 = vunpack.c.h.b16 %v1930
        %v2123 = vpack.c.b16 %v1997, %v1995
        %v2124 = vpack.c.b16 %v1998, %v1996
        %v2125 = vpack.c.b16 %v2001, %v1999
        %v2126 = vpack.c.b16 %v2002, %v2000
        %v2127 = vpack.c.b16 %v2005, %v2003
        %v2128 = vpack.c.b16 %v2006, %v2004
        %v2129 = vpack.c.b16 %v2009, %v2007
        %v2130 = vpack.c.b16 %v2010, %v2008
        %v2131 = vpack.c.b16 %v2013, %v2011
        %v2132 = vpack.c.b16 %v2014, %v2012
        %v2133 = vpack.c.b16 %v2017, %v2015
        %v2134 = vpack.c.b16 %v2018, %v2016
        %v2135 = vpack.c.b16 %v2021, %v2019
        %v2136 = vpack.c.b16 %v2022, %v2020
        %v2137 = vpack.c.b16 %v2025, %v2023
        %v2138 = vpack.c.b16 %v2026, %v2024
        %v2139 = vpack.c.b16 %v2029, %v2027
        %v2140 = vpack.c.b16 %v2030, %v2028
        %v2141 = vpack.c.b16 %v2033, %v2031
        %v2142 = vpack.c.b16 %v2034, %v2032
        %v2143 = vpack.c.b16 %v2037, %v2035
        %v2144 = vpack.c.b16 %v2038, %v2036
        %v2145 = vpack.c.b16 %v2041, %v2039
        %v2146 = vpack.c.b16 %v2042, %v2040
        %v2147 = vpack.c.b16 %v2045, %v2043
        %v2148 = vpack.c.b16 %v2046, %v2044
        %v2149 = vpack.c.b16 %v2049, %v2047
        %v2150 = vpack.c.b16 %v2050, %v2048
        %v2151 = vpack.c.b16 %v2053, %v2051
        %v2152 = vpack.c.b16 %v2054, %v2052
        %v2153 = vpack.c.b16 %v2057, %v2055
        %v2154 = vpack.c.b16 %v2058, %v2056
        %v2155 = vpack.c.b16 %v2061, %v2059
        %v2156 = vpack.c.b16 %v2062, %v2060
        %v2157 = vpack.c.b16 %v2065, %v2063
        %v2158 = vpack.c.b16 %v2066, %v2064
        %v2159 = vpack.c.b16 %v2069, %v2067
        %v2160 = vpack.c.b16 %v2070, %v2068
        %v2161 = vpack.c.b16 %v2073, %v2071
        %v2162 = vpack.c.b16 %v2074, %v2072
        %v2163 = vpack.c.b16 %v2077, %v2075
        %v2164 = vpack.c.b16 %v2078, %v2076
        %v2165 = vpack.c.b16 %v2081, %v2079
        %v2166 = vpack.c.b16 %v2082, %v2080
        %v2167 = vpack.c.b16 %v2085, %v2083
        %v2168 = vpack.c.b16 %v2086, %v2084
        %v2169 = vpack.c.b16 %v2089, %v2087
        %v2170 = vpack.c.b16 %v2090, %v2088
        %v2171 = vpack.c.b16 %v2093, %v2091
        %v2172 = vpack.c.b16 %v2094, %v2092
        %v2173 = vpack.c.b16 %v2097, %v2095
        %v2174 = vpack.c.b16 %v2098, %v2096
        %v2175 = vpack.c.b16 %v2101, %v2099
        %v2176 = vpack.c.b16 %v2102, %v2100
        %v2177 = vpack.c.b16 %v2105, %v2103
        %v2178 = vpack.c.b16 %v2106, %v2104
        %v2179 = vpack.c.b16 %v2109, %v2107
        %v2180 = vpack.c.b16 %v2110, %v2108
        %v2181 = vpack.c.b16 %v2113, %v2111
        %v2182 = vpack.c.b16 %v2114, %v2112
        %v2183 = vpack.c.b16 %v2117, %v2115
        %v2184 = vpack.c.b16 %v2118, %v2116
        %v2185 = vpack.c.b16 %v2121, %v2119
        %v2186 = vpack.c.b16 %v2122, %v2120
        %2251 = vmatprep.subr.bf16.mxu0 %v2124
        %2252 = vmatpush1.bf16.msra.mxu0 %v2123
        %2253 = vmatprep.subr.bf16.mxu0 %v2126
        %2254 = vmatpush1.bf16.msra.mxu0 %v2125
        %2255 = vmatprep.subr.bf16.mxu0 %v2128
        %2256 = vmatpush1.bf16.msra.mxu0 %v2127
        %2257 = vmatprep.subr.bf16.mxu0 %v2130
        %2258 = vmatpush1.bf16.msra.mxu0 %v2129
        %2259 = vmatprep.subr.bf16.mxu0 %v2132
        %2260 = vmatpush1.bf16.msra.mxu0 %v2131
        %2261 = vmatprep.subr.bf16.mxu0 %v2134
        %2262 = vmatpush1.bf16.msra.mxu0 %v2133
        %2263 = vmatprep.subr.bf16.mxu0 %v2136
        %2264 = vmatpush1.bf16.msra.mxu0 %v2135
        %2265 = vmatprep.subr.bf16.mxu0 %v2138
        %2266 = vmatpush1.bf16.msra.mxu0 %v2137
        %2267 = vmatprep.subr.bf16.mxu0 %v2140
        %2268 = vmatpush1.bf16.msra.mxu0 %v2139
        %2269 = vmatprep.subr.bf16.mxu0 %v2142
        %2270 = vmatpush1.bf16.msra.mxu0 %v2141
        %2271 = vmatprep.subr.bf16.mxu0 %v2144
        %2272 = vmatpush1.bf16.msra.mxu0 %v2143
        %2273 = vmatprep.subr.bf16.mxu0 %v2146
        %2274 = vmatpush1.bf16.msra.mxu0 %v2145
        %2275 = vmatprep.subr.bf16.mxu0 %v2148
        %2276 = vmatpush1.bf16.msra.mxu0 %v2147
        %2277 = vmatprep.subr.bf16.mxu0 %v2150
        %2278 = vmatpush1.bf16.msra.mxu0 %v2149
        %2279 = vmatprep.subr.bf16.mxu0 %v2152
        %2280 = vmatpush1.bf16.msra.mxu0 %v2151
        %2281 = vmatprep.subr.bf16.mxu0 %v2154
        %2282 = vmatpush1.bf16.msra.mxu0 %v2153
        %2283 = vmatprep.mubr.bf16.mxu0 %v1860
        %2284 = vmatmul.mubr.bf16.gmra.mrb[0].mxu0 %v1859
        %v2285 = vpop.f32.mrb[0].mxu0
        %v2286 = vadd.f32 0.0, %v2285
        %v2287 = vpop.f32.mrb[0].mxu0
        %v2288 = vadd.f32 0.0, %v2287
        %v2289 = vpop.f32.mrb[0].mxu0
        %v2290 = vadd.f32 0.0, %v2289
        %v2291 = vpop.f32.mrb[0].mxu0
        %v2292 = vadd.f32 0.0, %v2291
        %2293 = vmatprep.mubr.bf16.mxu0 %v1864
        %2294 = vmatmul.mubr.bf16.gmra.mrb[0].mxu0 %v1863
        %v2295 = vpop.f32.mrb[0].mxu0
        %v2296 = vadd.f32 0.0, %v2295
        %v2297 = vpop.f32.mrb[0].mxu0
        %v2298 = vadd.f32 0.0, %v2297
        %v2299 = vpop.f32.mrb[0].mxu0
        %v2300 = vadd.f32 0.0, %v2299
        %v2301 = vpop.f32.mrb[0].mxu0
        %v2302 = vadd.f32 0.0, %v2301
        %2303 = vdwg.mxu0
        %2304 = vmatprep.subr.bf16.mxu0 %v2156
        %2305 = vmatpush1.bf16.msra.mxu0 %v2155
        %2306 = vmatprep.subr.bf16.mxu0 %v2158
        %2307 = vmatpush1.bf16.msra.mxu0 %v2157
        %2308 = vmatprep.subr.bf16.mxu0 %v2160
        %2309 = vmatpush1.bf16.msra.mxu0 %v2159
        %2310 = vmatprep.subr.bf16.mxu0 %v2162
        %2311 = vmatpush1.bf16.msra.mxu0 %v2161
        %2312 = vmatprep.subr.bf16.mxu0 %v2164
        %2313 = vmatpush1.bf16.msra.mxu0 %v2163
        %2314 = vmatprep.subr.bf16.mxu0 %v2166
        %2315 = vmatpush1.bf16.msra.mxu0 %v2165
        %2316 = vmatprep.subr.bf16.mxu0 %v2168
        %2317 = vmatpush1.bf16.msra.mxu0 %v2167
        %2318 = vmatprep.subr.bf16.mxu0 %v2170
        %2319 = vmatpush1.bf16.msra.mxu0 %v2169
        %2320 = vmatprep.subr.bf16.mxu0 %v2172
        %2321 = vmatpush1.bf16.msra.mxu0 %v2171
        %2322 = vmatprep.subr.bf16.mxu0 %v2174
        %2323 = vmatpush1.bf16.msra.mxu0 %v2173
        %2324 = vmatprep.subr.bf16.mxu0 %v2176
        %2325 = vmatpush1.bf16.msra.mxu0 %v2175
        %2326 = vmatprep.subr.bf16.mxu0 %v2178
        %2327 = vmatpush1.bf16.msra.mxu0 %v2177
        %2328 = vmatprep.subr.bf16.mxu0 %v2180
        %2329 = vmatpush1.bf16.msra.mxu0 %v2179
        %2330 = vmatprep.subr.bf16.mxu0 %v2182
        %2331 = vmatpush1.bf16.msra.mxu0 %v2181
        %2332 = vmatprep.subr.bf16.mxu0 %v2184
        %2333 = vmatpush1.bf16.msra.mxu0 %v2183
        %2334 = vmatprep.subr.bf16.mxu0 %v2186
        %2335 = vmatpush1.bf16.msra.mxu0 %v2185
        %2336 = vmatprep.mubr.bf16.mxu0 %v1862
        %2337 = vmatmul.mubr.bf16.gmra.mrb[0].mxu0 %v1861
        %v2338 = vpop.f32.mrb[0].mxu0
        %v2339 = vadd.f32 %v2286, %v2338
        %v2340 = vpop.f32.mrb[0].mxu0
        %v2341 = vadd.f32 %v2288, %v2340
        %v2342 = vpop.f32.mrb[0].mxu0
        %v2343 = vadd.f32 %v2290, %v2342
        %v2344 = vpop.f32.mrb[0].mxu0
        %v2345 = vadd.f32 %v2292, %v2344
        %2346 = vmatprep.mubr.bf16.mxu0 %v1866
        %2347 = vmatmul.mubr.bf16.gmra.mrb[0].mxu0 %v1865
        %v2348 = vpop.f32.mrb[0].mxu0
        %v2349 = vadd.f32 %v2296, %v2348
        %v2350 = vpop.f32.mrb[0].mxu0
        %v2351 = vadd.f32 %v2298, %v2350
        %v2352 = vpop.f32.mrb[0].mxu0
        %v2353 = vadd.f32 %v2300, %v2352
        %v2354 = vpop.f32.mrb[0].mxu0
        %v2355 = vadd.f32 %v2302, %v2354
        %2356 = vdwg.mxu0
        %v2357 = vmax.f32 %v2339, 0.0
        %v2358 = vmax.f32 %v2341, 0.0
        %v2359 = vmax.f32 %v2343, 0.0
        %v2360 = vmax.f32 %v2345, 0.0
        %v2361 = vmax.f32 %v2349, 0.0
        %v2362 = vmax.f32 %v2351, 0.0
        %v2363 = vmax.f32 %v2353, 0.0
        %v2364 = vmax.f32 %v2355, 0.0
        %2365 = vrot.lane.b32.xlu0 %v2357, 3
        %v2366 = vpop.permute.xlu0 %2365
        %2367 = vrot.lane.b32.xlu0 %v2359, 3
        %v2368 = vpop.permute.xlu0 %2367
        %2369 = vrot.lane.b32.xlu0 %v2361, 3
        %v2370 = vpop.permute.xlu0 %2369
        %2371 = vrot.lane.b32.xlu0 %v2363, 3
        %v2372 = vpop.permute.xlu0 %2371
        %2373 = vrot.lane.b32.xlu0 %v2358, 3
        %v2374 = vpop.permute.xlu0 %2373
        %2375 = vrot.lane.b32.xlu0 %v2360, 3
        %v2376 = vpop.permute.xlu0 %2375
        %2377 = vrot.lane.b32.xlu0 %v2362, 3
        %v2378 = vpop.permute.xlu0 %2377
        %2379 = vrot.lane.b32.xlu0 %v2364, 3
        %v2380 = vpop.permute.xlu0 %2379
        %vm2381 = vcmp.lt.s32.totalorder %v476, 3
        %v2382 = vsel %vm2381, %v2366, %v2374
        %v2383 = vsel %vm2381, %v2368, %v2376
        %v2384 = vsel %vm2381, %v2370, %v2378
        %v2385 = vsel %vm2381, %v2372, %v2380
        %v2386 = vsel %vm2381, %v2374, %v2366
        %v2387 = vsel %vm2381, %v2376, %v2368
        %v2388 = vsel %vm2381, %v2378, %v2370
        %v2389 = vsel %vm2381, %v2380, %v2372
        %v2390 = vlaneseq
        %v2391 = vshrl.u32 %v2390, 7
        %v2392 = vsub.s32 3, %v2391
        %v2393 = vrot.slane %v422, %v2392
        %v2394 = vlaneseq
        %v2395 = vshrl.u32 %v2394, 7
        %v2396 = vsub.s32 3, %v2395
        %v2397 = vrot.slane %v423, %v2396
        %v2398 = vmul.f32 %v2386, %v2393
        %v2399 = vmul.f32 %v2382, %v2397
        %v2400 = vmul.f32 %v2387, %v2393
        %v2401 = vmul.f32 %v2383, %v2397
        %v2402 = vmul.f32 %v2388, %v2393
        %v2403 = vmul.f32 %v2384, %v2397
        %v2404 = vmul.f32 %v2389, %v2393
        %v2405 = vmul.f32 %v2385, %v2397
        %v2406 = vpack.c.bf16 %v2400, %v2398
        %v2407 = vpack.c.bf16 %v2401, %v2399
        %v2408 = vpack.c.bf16 %v2404, %v2402
        %v2409 = vpack.c.bf16 %v2405, %v2403
        %v2410 = vpack.c.bf16 %v2359, %v2357
        %v2411 = vpack.c.bf16 %v2360, %v2358
        %v2412 = vpack.c.bf16 %v2363, %v2361
        %v2413 = vpack.c.bf16 %v2364, %v2362
        %v2418 = vunpack.c.l.b16 %v330
        %v2419 = vunpack.c.l.b16 %v331
        %v2420 = vunpack.c.l.b16 %v332
        %v2421 = vunpack.c.l.b16 %v333
        %v2422 = vpack.c.b16 %v2419, %v2418
        %v2423 = vpack.c.b16 %v2421, %v2420
        %v2425 = vsel %vm552, %v2422, 0
        %v2428 = vsel %vm552, %v2423, 0
        %2430 = vmatprep.subr.bf16.mxu0 %v2411
        %2431 = vmatpush1.bf16.msra.mxu0 %v2410
        %2432 = vmatprep.subr.bf16.mxu0 %v2413
        %2433 = vmatpush1.bf16.msra.mxu0 %v2412
        %2434 = vmatprep.subr.bf16.mxu0 0
        %2435 = vmatpush1.bf16.msra.mxu0 0
        %2436 = vmatprep.subr.bf16.mxu0 0
        %2437 = vmatpush1.bf16.msra.mxu0 0
        %2438 = vmatprep.subr.bf16.mxu0 0
        %2439 = vmatpush1.bf16.msra.mxu0 0
        %2440 = vmatprep.subr.bf16.mxu0 0
        %2441 = vmatpush1.bf16.msra.mxu0 0
        %2442 = vmatprep.subr.bf16.mxu0 0
        %2443 = vmatpush1.bf16.msra.mxu0 0
        %2444 = vmatprep.subr.bf16.mxu0 0
        %2445 = vmatpush1.bf16.msra.mxu0 0
        %2446 = vmatprep.subr.bf16.mxu0 0
        %2447 = vmatpush1.bf16.msra.mxu0 0
        %2448 = vmatprep.subr.bf16.mxu0 0
        %2449 = vmatpush1.bf16.msra.mxu0 0
        %2450 = vmatprep.subr.bf16.mxu0 0
        %2451 = vmatpush1.bf16.msra.mxu0 0
        %2452 = vmatprep.subr.bf16.mxu0 0
        %2453 = vmatpush1.bf16.msra.mxu0 0
        %2454 = vmatprep.subr.bf16.mxu0 0
        %2455 = vmatpush1.bf16.msra.mxu0 0
        %2456 = vmatprep.subr.bf16.mxu0 0
        %2457 = vmatpush1.bf16.msra.mxu0 0
        %2458 = vmatprep.subr.bf16.mxu0 0
        %2459 = vmatpush1.bf16.msra.mxu0 0
        %2460 = vmatprep.subr.bf16.mxu0 0
        %2461 = vmatpush1.bf16.msra.mxu0 0
        %2462 = vmatprep.mubr.bf16.mxu0 0
        %2463 = vmatmul.mubr.bf16.gmra.mrb[0].mxu0 %v2425
        %v2464 = vpop.f32.mrb[0].mxu0
        %v2465 = vadd.f32 0.0, %v2464
        %v2466 = vpop.f32.mrb[0].mxu0
        %v2467 = vadd.f32 0.0, %v2466
        %v2468 = vpop.f32.mrb[0].mxu0
        %v2469 = vadd.f32 0.0, %v2468
        %v2470 = vpop.f32.mrb[0].mxu0
        %v2471 = vadd.f32 0.0, %v2470
        %2472 = vmatprep.mubr.bf16.mxu0 0
        %2473 = vmatmul.mubr.bf16.gmra.mrb[0].mxu0 %v2428
        %v2474 = vpop.f32.mrb[0].mxu0
        %v2475 = vadd.f32 0.0, %v2474
        %v2476 = vpop.f32.mrb[0].mxu0
        %v2477 = vadd.f32 0.0, %v2476
        %v2478 = vpop.f32.mrb[0].mxu0
        %v2479 = vadd.f32 0.0, %v2478
        %v2480 = vpop.f32.mrb[0].mxu0
        %v2481 = vadd.f32 0.0, %v2480
        %2482 = vdwg.mxu0
        %v2487 = vunpack.c.l.b16 %v326
        %v2488 = vunpack.c.l.b16 %v327
        %v2489 = vunpack.c.l.b16 %v328
        %v2490 = vunpack.c.l.b16 %v329
        %v2491 = vpack.c.b16 %v2488, %v2487
        %v2492 = vpack.c.b16 %v2490, %v2489
        %v2494 = vsel %vm552, %v2491, 0
        %v2497 = vsel %vm552, %v2492, 0
        %2499 = vmatprep.subr.bf16.mxu0 %v2407
        %2500 = vmatpush1.bf16.msra.mxu0 %v2406
        %2501 = vmatprep.subr.bf16.mxu0 %v2409
        %2502 = vmatpush1.bf16.msra.mxu0 %v2408
        %2503 = vmatprep.subr.bf16.mxu0 0
        %2504 = vmatpush1.bf16.msra.mxu0 0
        %2505 = vmatprep.subr.bf16.mxu0 0
        %2506 = vmatpush1.bf16.msra.mxu0 0
        %2507 = vmatprep.subr.bf16.mxu0 0
        %2508 = vmatpush1.bf16.msra.mxu0 0
        %2509 = vmatprep.subr.bf16.mxu0 0
        %2510 = vmatpush1.bf16.msra.mxu0 0
        %2511 = vmatprep.subr.bf16.mxu0 0
        %2512 = vmatpush1.bf16.msra.mxu0 0
        %2513 = vmatprep.subr.bf16.mxu0 0
        %2514 = vmatpush1.bf16.msra.mxu0 0
        %2515 = vmatprep.subr.bf16.mxu0 0
        %2516 = vmatpush1.bf16.msra.mxu0 0
        %2517 = vmatprep.subr.bf16.mxu0 0
        %2518 = vmatpush1.bf16.msra.mxu0 0
        %2519 = vmatprep.subr.bf16.mxu0 0
        %2520 = vmatpush1.bf16.msra.mxu0 0
        %2521 = vmatprep.subr.bf16.mxu0 0
        %2522 = vmatpush1.bf16.msra.mxu0 0
        %2523 = vmatprep.subr.bf16.mxu0 0
        %2524 = vmatpush1.bf16.msra.mxu0 0
        %2525 = vmatprep.subr.bf16.mxu0 0
        %2526 = vmatpush1.bf16.msra.mxu0 0
        %2527 = vmatprep.subr.bf16.mxu0 0
        %2528 = vmatpush1.bf16.msra.mxu0 0
        %2529 = vmatprep.subr.bf16.mxu0 0
        %2530 = vmatpush1.bf16.msra.mxu0 0
        %2531 = vmatprep.mubr.bf16.mxu0 0
        %2532 = vmatmul.mubr.bf16.gmra.mrb[0].mxu0 %v2494
        %v2533 = vpop.f32.mrb[0].mxu0
        %v2534 = vadd.f32 %v2465, %v2533
        %v2535 = vpop.f32.mrb[0].mxu0
        %v2536 = vadd.f32 %v2467, %v2535
        %v2537 = vpop.f32.mrb[0].mxu0
        %v2538 = vadd.f32 %v2469, %v2537
        %v2539 = vpop.f32.mrb[0].mxu0
        %v2540 = vadd.f32 %v2471, %v2539
        %2541 = vmatprep.mubr.bf16.mxu0 0
        %2542 = vmatmul.mubr.bf16.gmra.mrb[0].mxu0 %v2497
        %v2543 = vpop.f32.mrb[0].mxu0
        %v2544 = vadd.f32 %v2475, %v2543
        %v2545 = vpop.f32.mrb[0].mxu0
        %v2546 = vadd.f32 %v2477, %v2545
        %v2547 = vpop.f32.mrb[0].mxu0
        %v2548 = vadd.f32 %v2479, %v2547
        %v2549 = vpop.f32.mrb[0].mxu0
        %v2550 = vadd.f32 %v2481, %v2549
        %2551 = vdwg.mxu0
        %2552 = vrot.lane.b32.xlu0 %v2357, 125
        %v2553 = vpop.permute.xlu0 %2552
        %2554 = vrot.lane.b32.xlu0 %v2359, 125
        %v2555 = vpop.permute.xlu0 %2554
        %2556 = vrot.lane.b32.xlu0 %v2361, 125
        %v2557 = vpop.permute.xlu0 %2556
        %2558 = vrot.lane.b32.xlu0 %v2363, 125
        %v2559 = vpop.permute.xlu0 %2558
        %2560 = vrot.lane.b32.xlu0 %v2358, 125
        %v2561 = vpop.permute.xlu0 %2560
        %2562 = vrot.lane.b32.xlu0 %v2360, 125
        %v2563 = vpop.permute.xlu0 %2562
        %2564 = vrot.lane.b32.xlu0 %v2362, 125
        %v2565 = vpop.permute.xlu0 %2564
        %2566 = vrot.lane.b32.xlu0 %v2364, 125
        %v2567 = vpop.permute.xlu0 %2566
        %vm2568 = vcmp.lt.s32.totalorder %v476, 125
        %v2569 = vsel %vm2568, %v2553, %v2561
        %v2570 = vsel %vm2568, %v2555, %v2563
        %v2571 = vsel %vm2568, %v2557, %v2565
        %v2572 = vsel %vm2568, %v2559, %v2567
        %v2573 = vsel %vm2568, %v2561, %v2553
        %v2574 = vsel %vm2568, %v2563, %v2555
        %v2575 = vsel %vm2568, %v2565, %v2557
        %v2576 = vsel %vm2568, %v2567, %v2559
        %v2577 = vlaneseq
        %v2578 = vshrl.u32 %v2577, 7
        %v2579 = vsub.s32 4, %v2578
        %v2580 = vrot.slane %v422, %v2579
        %v2581 = vlaneseq
        %v2582 = vshrl.u32 %v2581, 7
        %v2583 = vsub.s32 4, %v2582
        %v2584 = vrot.slane %v423, %v2583
        %v2585 = vmul.f32 %v2569, %v2580
        %v2586 = vmul.f32 %v2573, %v2584
        %v2587 = vmul.f32 %v2570, %v2580
        %v2588 = vmul.f32 %v2574, %v2584
        %v2589 = vmul.f32 %v2571, %v2580
        %v2590 = vmul.f32 %v2575, %v2584
        %v2591 = vmul.f32 %v2572, %v2580
        %v2592 = vmul.f32 %v2576, %v2584
        %v2593 = vpack.c.bf16 %v2587, %v2585
        %v2594 = vpack.c.bf16 %v2588, %v2586
        %v2595 = vpack.c.bf16 %v2591, %v2589
        %v2596 = vpack.c.bf16 %v2592, %v2590
        %v2601 = vunpack.c.l.b16 %v334
        %v2602 = vunpack.c.l.b16 %v335
        %v2603 = vunpack.c.l.b16 %v336
        %v2604 = vunpack.c.l.b16 %v337
        %v2605 = vpack.c.b16 %v2602, %v2601
        %v2606 = vpack.c.b16 %v2604, %v2603
        %v2608 = vsel %vm552, %v2605, 0
        %v2611 = vsel %vm552, %v2606, 0
        %2613 = vmatprep.subr.bf16.mxu0 %v2594
        %2614 = vmatpush1.bf16.msra.mxu0 %v2593
        %2615 = vmatprep.subr.bf16.mxu0 %v2596
        %2616 = vmatpush1.bf16.msra.mxu0 %v2595
        %2617 = vmatprep.subr.bf16.mxu0 0
        %2618 = vmatpush1.bf16.msra.mxu0 0
        %2619 = vmatprep.subr.bf16.mxu0 0
        %2620 = vmatpush1.bf16.msra.mxu0 0
        %2621 = vmatprep.subr.bf16.mxu0 0
        %2622 = vmatpush1.bf16.msra.mxu0 0
        %2623 = vmatprep.subr.bf16.mxu0 0
        %2624 = vmatpush1.bf16.msra.mxu0 0
        %2625 = vmatprep.subr.bf16.mxu0 0
        %2626 = vmatpush1.bf16.msra.mxu0 0
        %2627 = vmatprep.subr.bf16.mxu0 0
        %2628 = vmatpush1.bf16.msra.mxu0 0
        %2629 = vmatprep.subr.bf16.mxu0 0
        %2630 = vmatpush1.bf16.msra.mxu0 0
        %2631 = vmatprep.subr.bf16.mxu0 0
        %2632 = vmatpush1.bf16.msra.mxu0 0
        %2633 = vmatprep.subr.bf16.mxu0 0
        %2634 = vmatpush1.bf16.msra.mxu0 0
        %2635 = vmatprep.subr.bf16.mxu0 0
        %2636 = vmatpush1.bf16.msra.mxu0 0
        %2637 = vmatprep.subr.bf16.mxu0 0
        %2638 = vmatpush1.bf16.msra.mxu0 0
        %2639 = vmatprep.subr.bf16.mxu0 0
        %2640 = vmatpush1.bf16.msra.mxu0 0
        %2641 = vmatprep.subr.bf16.mxu0 0
        %2642 = vmatpush1.bf16.msra.mxu0 0
        %2643 = vmatprep.subr.bf16.mxu0 0
        %2644 = vmatpush1.bf16.msra.mxu0 0
        %2645 = vmatprep.mubr.bf16.mxu0 0
        %2646 = vmatmul.mubr.bf16.gmra.mrb[0].mxu0 %v2608
        %v2647 = vpop.f32.mrb[0].mxu0
        %v2648 = vadd.f32 0.0, %v2647
        %v2649 = vpop.f32.mrb[0].mxu0
        %v2650 = vadd.f32 0.0, %v2649
        %v2651 = vpop.f32.mrb[0].mxu0
        %v2652 = vadd.f32 0.0, %v2651
        %v2653 = vpop.f32.mrb[0].mxu0
        %v2654 = vadd.f32 0.0, %v2653
        %2655 = vmatprep.mubr.bf16.mxu0 0
        %2656 = vmatmul.mubr.bf16.gmra.mrb[0].mxu0 %v2611
        %v2657 = vpop.f32.mrb[0].mxu0
        %v2658 = vadd.f32 0.0, %v2657
        %v2659 = vpop.f32.mrb[0].mxu0
        %v2660 = vadd.f32 0.0, %v2659
        %v2661 = vpop.f32.mrb[0].mxu0
        %v2662 = vadd.f32 0.0, %v2661
        %v2663 = vpop.f32.mrb[0].mxu0
        %v2664 = vadd.f32 0.0, %v2663
        %2665 = vdwg.mxu0
        %v2666 = vadd.f32 %v2534, %v2648
        %v2667 = vadd.f32 %v2536, %v2650
        %v2668 = vadd.f32 %v2538, %v2652
        %v2669 = vadd.f32 %v2540, %v2654
        %v2670 = vadd.f32 %v2544, %v2658
        %v2671 = vadd.f32 %v2546, %v2660
        %v2672 = vadd.f32 %v2548, %v2662
        %v2673 = vadd.f32 %v2550, %v2664
        %2674 = vset.pattern.permute.xlu0 2
        %2675 = vperm.xlu0 %2674, %v418
        %v2676 = vpop.permute.xlu0 %2675
        %2678 = vset.pattern.permute.xlu0 2
        %2679 = vperm.xlu0 %2678, %v419
        %v2680 = vpop.permute.xlu0 %2679
        %2682 = vset.pattern.permute.xlu0 2
        %2683 = vperm.xlu0 %2682, %v420
        %v2684 = vpop.permute.xlu0 %2683
        %2686 = vset.pattern.permute.xlu0 2
        %2687 = vperm.xlu0 %2686, %v421
        %v2688 = vpop.permute.xlu0 %2687
        %v2690 = vadd.f32 %v2666, %v2676
        %v2691 = vadd.f32 %v2667, %v2676
        %v2692 = vadd.f32 %v2668, %v2680
        %v2693 = vadd.f32 %v2669, %v2680
        %v2694 = vadd.f32 %v2670, %v2684
        %v2695 = vadd.f32 %v2671, %v2684
        %v2696 = vadd.f32 %v2672, %v2688
        %v2697 = vadd.f32 %v2673, %v2688
        %v2698 = vmax.f32 %v2690, 0.0
        %v2699 = vmax.f32 %v2691, 0.0
        %v2700 = vmax.f32 %v2692, 0.0
        %v2701 = vmax.f32 %v2693, 0.0
        %v2702 = vmax.f32 %v2694, 0.0
        %v2703 = vmax.f32 %v2695, 0.0
        %v2704 = vmax.f32 %v2696, 0.0
        %v2705 = vmax.f32 %v2697, 0.0
        %v2706 = vpack.c.bf16 %v2700, %v2698
        %v2707 = vpack.c.bf16 %v2701, %v2699
        %v2708 = vpack.c.bf16 %v2704, %v2702
        %v2709 = vpack.c.bf16 %v2705, %v2703
        %v2714 = vunpack.c.l.b16 %v338
        %v2715 = vunpack.c.l.b16 %v339
        %v2716 = vunpack.c.l.b16 %v340
        %v2717 = vunpack.c.l.b16 %v341
        %v2718 = vpack.c.b16 %v2715, %v2714
        %v2719 = vpack.c.b16 %v2717, %v2716
        %v2721 = vsel %vm552, %v2718, 0
        %v2724 = vsel %vm552, %v2719, 0
        %2726 = vmatprep.subr.bf16.mxu0 %v2707
        %2727 = vmatpush1.bf16.msra.mxu0 %v2706
        %2728 = vmatprep.subr.bf16.mxu0 %v2709
        %2729 = vmatpush1.bf16.msra.mxu0 %v2708
        %2730 = vmatprep.subr.bf16.mxu0 0
        %2731 = vmatpush1.bf16.msra.mxu0 0
        %2732 = vmatprep.subr.bf16.mxu0 0
        %2733 = vmatpush1.bf16.msra.mxu0 0
        %2734 = vmatprep.subr.bf16.mxu0 0
        %2735 = vmatpush1.bf16.msra.mxu0 0
        %2736 = vmatprep.subr.bf16.mxu0 0
        %2737 = vmatpush1.bf16.msra.mxu0 0
        %2738 = vmatprep.subr.bf16.mxu0 0
        %2739 = vmatpush1.bf16.msra.mxu0 0
        %2740 = vmatprep.subr.bf16.mxu0 0
        %2741 = vmatpush1.bf16.msra.mxu0 0
        %2742 = vmatprep.subr.bf16.mxu0 0
        %2743 = vmatpush1.bf16.msra.mxu0 0
        %2744 = vmatprep.subr.bf16.mxu0 0
        %2745 = vmatpush1.bf16.msra.mxu0 0
        %2746 = vmatprep.subr.bf16.mxu0 0
        %2747 = vmatpush1.bf16.msra.mxu0 0
        %2748 = vmatprep.subr.bf16.mxu0 0
        %2749 = vmatpush1.bf16.msra.mxu0 0
        %2750 = vmatprep.subr.bf16.mxu0 0
        %2751 = vmatpush1.bf16.msra.mxu0 0
        %2752 = vmatprep.subr.bf16.mxu0 0
        %2753 = vmatpush1.bf16.msra.mxu0 0
        %2754 = vmatprep.subr.bf16.mxu0 0
        %2755 = vmatpush1.bf16.msra.mxu0 0
        %2756 = vmatprep.subr.bf16.mxu0 0
        %2757 = vmatpush1.bf16.msra.mxu0 0
        %2758 = vmatprep.mubr.bf16.mxu0 0
        %2759 = vmatmul.mubr.bf16.gmra.mrb[0].mxu0 %v2721
        %v2760 = vpop.f32.mrb[0].mxu0
        %v2761 = vadd.f32 0.0, %v2760
        %v2762 = vpop.f32.mrb[0].mxu0
        %v2763 = vadd.f32 0.0, %v2762
        %v2764 = vpop.f32.mrb[0].mxu0
        %v2765 = vadd.f32 0.0, %v2764
        %v2766 = vpop.f32.mrb[0].mxu0
        %v2767 = vadd.f32 0.0, %v2766
        %2768 = vmatprep.mubr.bf16.mxu0 0
        %2769 = vmatmul.mubr.bf16.gmra.mrb[0].mxu0 %v2724
        %v2770 = vpop.f32.mrb[0].mxu0
        %v2771 = vadd.f32 0.0, %v2770
        %v2772 = vpop.f32.mrb[0].mxu0
        %v2773 = vadd.f32 0.0, %v2772
        %v2774 = vpop.f32.mrb[0].mxu0
        %v2775 = vadd.f32 0.0, %v2774
        %v2776 = vpop.f32.mrb[0].mxu0
        %v2777 = vadd.f32 0.0, %v2776
        %2778 = vdwg.mxu0
        %v2779 = vadd.f32 %v2339, %v2761
        %v2780 = vadd.f32 %v2341, %v2763
        %v2781 = vadd.f32 %v2343, %v2765
        %v2782 = vadd.f32 %v2345, %v2767
        %v2783 = vadd.f32 %v2349, %v2771
        %v2784 = vadd.f32 %v2351, %v2773
        %v2785 = vadd.f32 %v2353, %v2775
        %v2786 = vadd.f32 %v2355, %v2777
        %2787 = vset.pattern.permute.xlu0 3
        %2788 = vperm.xlu0 %2787, %v418
        %v2789 = vpop.permute.xlu0 %2788
        %2791 = vset.pattern.permute.xlu0 3
        %2792 = vperm.xlu0 %2791, %v419
        %v2793 = vpop.permute.xlu0 %2792
        %2795 = vset.pattern.permute.xlu0 3
        %2796 = vperm.xlu0 %2795, %v420
        %v2797 = vpop.permute.xlu0 %2796
        %2799 = vset.pattern.permute.xlu0 3
        %2800 = vperm.xlu0 %2799, %v421
        %v2801 = vpop.permute.xlu0 %2800
        %v2803 = vadd.f32 %v2779, %v2789
        %v2804 = vadd.f32 %v2780, %v2789
        %v2805 = vadd.f32 %v2781, %v2793
        %v2806 = vadd.f32 %v2782, %v2793
        %v2807 = vadd.f32 %v2783, %v2797
        %v2808 = vadd.f32 %v2784, %v2797
        %v2809 = vadd.f32 %v2785, %v2801
        %v2810 = vadd.f32 %v2786, %v2801
        %v2811 = vmax.f32 %v2803, 0.0
        %v2812 = vmax.f32 %v2804, 0.0
        %v2813 = vmax.f32 %v2805, 0.0
        %v2814 = vmax.f32 %v2806, 0.0
        %v2815 = vmax.f32 %v2807, 0.0
        %v2816 = vmax.f32 %v2808, 0.0
        %v2817 = vmax.f32 %v2809, 0.0
        %v2818 = vmax.f32 %v2810, 0.0
        %2819 = vrot.lane.b32.xlu0 %v2811, 1
        %v2820 = vpop.permute.xlu0 %2819
        %2821 = vrot.lane.b32.xlu0 %v2813, 1
        %v2822 = vpop.permute.xlu0 %2821
        %2823 = vrot.lane.b32.xlu0 %v2815, 1
        %v2824 = vpop.permute.xlu0 %2823
        %2825 = vrot.lane.b32.xlu0 %v2817, 1
        %v2826 = vpop.permute.xlu0 %2825
        %2827 = vrot.lane.b32.xlu0 %v2812, 1
        %v2828 = vpop.permute.xlu0 %2827
        %2829 = vrot.lane.b32.xlu0 %v2814, 1
        %v2830 = vpop.permute.xlu0 %2829
        %2831 = vrot.lane.b32.xlu0 %v2816, 1
        %v2832 = vpop.permute.xlu0 %2831
        %2833 = vrot.lane.b32.xlu0 %v2818, 1
        %v2834 = vpop.permute.xlu0 %2833
        %v2835 = vsel %vm477, %v2820, %v2828
        %v2836 = vsel %vm477, %v2822, %v2830
        %v2837 = vsel %vm477, %v2824, %v2832
        %v2838 = vsel %vm477, %v2826, %v2834
        %v2839 = vsel %vm477, %v2828, %v2820
        %v2840 = vsel %vm477, %v2830, %v2822
        %v2841 = vsel %vm477, %v2832, %v2824
        %v2842 = vsel %vm477, %v2834, %v2826
        %v2843 = vlaneseq
        %v2844 = vshrl.u32 %v2843, 7
        %v2845 = vsub.s32 5, %v2844
        %v2846 = vrot.slane %v422, %v2845
        %v2847 = vlaneseq
        %v2848 = vshrl.u32 %v2847, 7
        %v2849 = vsub.s32 5, %v2848
        %v2850 = vrot.slane %v423, %v2849
        %v2851 = vmul.f32 %v2839, %v2846
        %v2852 = vmul.f32 %v2835, %v2850
        %v2853 = vmul.f32 %v2840, %v2846
        %v2854 = vmul.f32 %v2836, %v2850
        %v2855 = vmul.f32 %v2841, %v2846
        %v2856 = vmul.f32 %v2837, %v2850
        %v2857 = vmul.f32 %v2842, %v2846
        %v2858 = vmul.f32 %v2838, %v2850
        %v2859 = vpack.c.bf16 %v2853, %v2851
        %v2860 = vpack.c.bf16 %v2854, %v2852
        %v2861 = vpack.c.bf16 %v2857, %v2855
        %v2862 = vpack.c.bf16 %v2858, %v2856
        %v2863 = vpack.c.bf16 %v2813, %v2811
        %v2864 = vpack.c.bf16 %v2814, %v2812
        %v2865 = vpack.c.bf16 %v2817, %v2815
        %v2866 = vpack.c.bf16 %v2818, %v2816
        %v2871 = vunpack.c.l.b16 %v346
        %v2872 = vunpack.c.l.b16 %v347
        %v2873 = vunpack.c.l.b16 %v348
        %v2874 = vunpack.c.l.b16 %v349
        %v2875 = vpack.c.b16 %v2872, %v2871
        %v2876 = vpack.c.b16 %v2874, %v2873
        %v2878 = vsel %vm552, %v2875, 0
        %v2881 = vsel %vm552, %v2876, 0
        %2883 = vmatprep.subr.bf16.mxu0 %v2864
        %2884 = vmatpush1.bf16.msra.mxu0 %v2863
        %2885 = vmatprep.subr.bf16.mxu0 %v2866
        %2886 = vmatpush1.bf16.msra.mxu0 %v2865
        %2887 = vmatprep.subr.bf16.mxu0 0
        %2888 = vmatpush1.bf16.msra.mxu0 0
        %2889 = vmatprep.subr.bf16.mxu0 0
        %2890 = vmatpush1.bf16.msra.mxu0 0
        %2891 = vmatprep.subr.bf16.mxu0 0
        %2892 = vmatpush1.bf16.msra.mxu0 0
        %2893 = vmatprep.subr.bf16.mxu0 0
        %2894 = vmatpush1.bf16.msra.mxu0 0
        %2895 = vmatprep.subr.bf16.mxu0 0
        %2896 = vmatpush1.bf16.msra.mxu0 0
        %2897 = vmatprep.subr.bf16.mxu0 0
        %2898 = vmatpush1.bf16.msra.mxu0 0
        %2899 = vmatprep.subr.bf16.mxu0 0
        %2900 = vmatpush1.bf16.msra.mxu0 0
        %2901 = vmatprep.subr.bf16.mxu0 0
        %2902 = vmatpush1.bf16.msra.mxu0 0
        %2903 = vmatprep.subr.bf16.mxu0 0
        %2904 = vmatpush1.bf16.msra.mxu0 0
        %2905 = vmatprep.subr.bf16.mxu0 0
        %2906 = vmatpush1.bf16.msra.mxu0 0
        %2907 = vmatprep.subr.bf16.mxu0 0
        %2908 = vmatpush1.bf16.msra.mxu0 0
        %2909 = vmatprep.subr.bf16.mxu0 0
        %2910 = vmatpush1.bf16.msra.mxu0 0
        %2911 = vmatprep.subr.bf16.mxu0 0
        %2912 = vmatpush1.bf16.msra.mxu0 0
        %2913 = vmatprep.subr.bf16.mxu0 0
        %2914 = vmatpush1.bf16.msra.mxu0 0
        %2915 = vmatprep.mubr.bf16.mxu0 0
        %2916 = vmatmul.mubr.bf16.gmra.mrb[0].mxu0 %v2878
        %v2917 = vpop.f32.mrb[0].mxu0
        %v2918 = vadd.f32 0.0, %v2917
        %v2919 = vpop.f32.mrb[0].mxu0
        %v2920 = vadd.f32 0.0, %v2919
        %v2921 = vpop.f32.mrb[0].mxu0
        %v2922 = vadd.f32 0.0, %v2921
        %v2923 = vpop.f32.mrb[0].mxu0
        %v2924 = vadd.f32 0.0, %v2923
        %2925 = vmatprep.mubr.bf16.mxu0 0
        %2926 = vmatmul.mubr.bf16.gmra.mrb[0].mxu0 %v2881
        %v2927 = vpop.f32.mrb[0].mxu0
        %v2928 = vadd.f32 0.0, %v2927
        %v2929 = vpop.f32.mrb[0].mxu0
        %v2930 = vadd.f32 0.0, %v2929
        %v2931 = vpop.f32.mrb[0].mxu0
        %v2932 = vadd.f32 0.0, %v2931
        %v2933 = vpop.f32.mrb[0].mxu0
        %v2934 = vadd.f32 0.0, %v2933
        %2935 = vdwg.mxu0
        %v2940 = vunpack.c.l.b16 %v342
        %v2941 = vunpack.c.l.b16 %v343
        %v2942 = vunpack.c.l.b16 %v344
        %v2943 = vunpack.c.l.b16 %v345
        %v2944 = vpack.c.b16 %v2941, %v2940
        %v2945 = vpack.c.b16 %v2943, %v2942
        %v2947 = vsel %vm552, %v2944, 0
        %v2950 = vsel %vm552, %v2945, 0
        %2952 = vmatprep.subr.bf16.mxu0 %v2860
        %2953 = vmatpush1.bf16.msra.mxu0 %v2859
        %2954 = vmatprep.subr.bf16.mxu0 %v2862
        %2955 = vmatpush1.bf16.msra.mxu0 %v2861
        %2956 = vmatprep.subr.bf16.mxu0 0
        %2957 = vmatpush1.bf16.msra.mxu0 0
        %2958 = vmatprep.subr.bf16.mxu0 0
        %2959 = vmatpush1.bf16.msra.mxu0 0
        %2960 = vmatprep.subr.bf16.mxu0 0
        %2961 = vmatpush1.bf16.msra.mxu0 0
        %2962 = vmatprep.subr.bf16.mxu0 0
        %2963 = vmatpush1.bf16.msra.mxu0 0
        %2964 = vmatprep.subr.bf16.mxu0 0
        %2965 = vmatpush1.bf16.msra.mxu0 0
        %2966 = vmatprep.subr.bf16.mxu0 0
        %2967 = vmatpush1.bf16.msra.mxu0 0
        %2968 = vmatprep.subr.bf16.mxu0 0
        %2969 = vmatpush1.bf16.msra.mxu0 0
        %2970 = vmatprep.subr.bf16.mxu0 0
        %2971 = vmatpush1.bf16.msra.mxu0 0
        %2972 = vmatprep.subr.bf16.mxu0 0
        %2973 = vmatpush1.bf16.msra.mxu0 0
        %2974 = vmatprep.subr.bf16.mxu0 0
        %2975 = vmatpush1.bf16.msra.mxu0 0
        %2976 = vmatprep.subr.bf16.mxu0 0
        %2977 = vmatpush1.bf16.msra.mxu0 0
        %2978 = vmatprep.subr.bf16.mxu0 0
        %2979 = vmatpush1.bf16.msra.mxu0 0
        %2980 = vmatprep.subr.bf16.mxu0 0
        %2981 = vmatpush1.bf16.msra.mxu0 0
        %2982 = vmatprep.subr.bf16.mxu0 0
        %2983 = vmatpush1.bf16.msra.mxu0 0
        %2984 = vmatprep.mubr.bf16.mxu0 0
        %2985 = vmatmul.mubr.bf16.gmra.mrb[0].mxu0 %v2947
        %v2986 = vpop.f32.mrb[0].mxu0
        %v2987 = vadd.f32 %v2918, %v2986
        %v2988 = vpop.f32.mrb[0].mxu0
        %v2989 = vadd.f32 %v2920, %v2988
        %v2990 = vpop.f32.mrb[0].mxu0
        %v2991 = vadd.f32 %v2922, %v2990
        %v2992 = vpop.f32.mrb[0].mxu0
        %v2993 = vadd.f32 %v2924, %v2992
        %2994 = vmatprep.mubr.bf16.mxu0 0
        %2995 = vmatmul.mubr.bf16.gmra.mrb[0].mxu0 %v2950
        %v2996 = vpop.f32.mrb[0].mxu0
        %v2997 = vadd.f32 %v2928, %v2996
        %v2998 = vpop.f32.mrb[0].mxu0
        %v2999 = vadd.f32 %v2930, %v2998
        %v3000 = vpop.f32.mrb[0].mxu0
        %v3001 = vadd.f32 %v2932, %v3000
        %v3002 = vpop.f32.mrb[0].mxu0
        %v3003 = vadd.f32 %v2934, %v3002
        %3004 = vdwg.mxu0
        %3005 = vrot.lane.b32.xlu0 %v2811, 127
        %v3006 = vpop.permute.xlu0 %3005
        %3007 = vrot.lane.b32.xlu0 %v2813, 127
        %v3008 = vpop.permute.xlu0 %3007
        %3009 = vrot.lane.b32.xlu0 %v2815, 127
        %v3010 = vpop.permute.xlu0 %3009
        %3011 = vrot.lane.b32.xlu0 %v2817, 127
        %v3012 = vpop.permute.xlu0 %3011
        %3013 = vrot.lane.b32.xlu0 %v2812, 127
        %v3014 = vpop.permute.xlu0 %3013
        %3015 = vrot.lane.b32.xlu0 %v2814, 127
        %v3016 = vpop.permute.xlu0 %3015
        %3017 = vrot.lane.b32.xlu0 %v2816, 127
        %v3018 = vpop.permute.xlu0 %3017
        %3019 = vrot.lane.b32.xlu0 %v2818, 127
        %v3020 = vpop.permute.xlu0 %3019
        %v3021 = vsel %vm819, %v3006, %v3014
        %v3022 = vsel %vm819, %v3008, %v3016
        %v3023 = vsel %vm819, %v3010, %v3018
        %v3024 = vsel %vm819, %v3012, %v3020
        %v3025 = vsel %vm819, %v3014, %v3006
        %v3026 = vsel %vm819, %v3016, %v3008
        %v3027 = vsel %vm819, %v3018, %v3010
        %v3028 = vsel %vm819, %v3020, %v3012
        %v3029 = vlaneseq
        %v3030 = vshrl.u32 %v3029, 7
        %v3031 = vsub.s32 6, %v3030
        %v3032 = vrot.slane %v422, %v3031
        %v3033 = vlaneseq
        %v3034 = vshrl.u32 %v3033, 7
        %v3035 = vsub.s32 6, %v3034
        %v3036 = vrot.slane %v423, %v3035
        %v3037 = vmul.f32 %v3021, %v3032
        %v3038 = vmul.f32 %v3025, %v3036
        %v3039 = vmul.f32 %v3022, %v3032
        %v3040 = vmul.f32 %v3026, %v3036
        %v3041 = vmul.f32 %v3023, %v3032
        %v3042 = vmul.f32 %v3027, %v3036
        %v3043 = vmul.f32 %v3024, %v3032
        %v3044 = vmul.f32 %v3028, %v3036
        %v3045 = vpack.c.bf16 %v3039, %v3037
        %v3046 = vpack.c.bf16 %v3040, %v3038
        %v3047 = vpack.c.bf16 %v3043, %v3041
        %v3048 = vpack.c.bf16 %v3044, %v3042
        %v3053 = vunpack.c.l.b16 %v350
        %v3054 = vunpack.c.l.b16 %v351
        %v3055 = vunpack.c.l.b16 %v352
        %v3056 = vunpack.c.l.b16 %v353
        %v3057 = vpack.c.b16 %v3054, %v3053
        %v3058 = vpack.c.b16 %v3056, %v3055
        %v3060 = vsel %vm552, %v3057, 0
        %v3063 = vsel %vm552, %v3058, 0
        %3065 = vmatprep.subr.bf16.mxu0 %v3046
        %3066 = vmatpush1.bf16.msra.mxu0 %v3045
        %3067 = vmatprep.subr.bf16.mxu0 %v3048
        %3068 = vmatpush1.bf16.msra.mxu0 %v3047
        %3069 = vmatprep.subr.bf16.mxu0 0
        %3070 = vmatpush1.bf16.msra.mxu0 0
        %3071 = vmatprep.subr.bf16.mxu0 0
        %3072 = vmatpush1.bf16.msra.mxu0 0
        %3073 = vmatprep.subr.bf16.mxu0 0
        %3074 = vmatpush1.bf16.msra.mxu0 0
        %3075 = vmatprep.subr.bf16.mxu0 0
        %3076 = vmatpush1.bf16.msra.mxu0 0
        %3077 = vmatprep.subr.bf16.mxu0 0
        %3078 = vmatpush1.bf16.msra.mxu0 0
        %3079 = vmatprep.subr.bf16.mxu0 0
        %3080 = vmatpush1.bf16.msra.mxu0 0
        %3081 = vmatprep.subr.bf16.mxu0 0
        %3082 = vmatpush1.bf16.msra.mxu0 0
        %3083 = vmatprep.subr.bf16.mxu0 0
        %3084 = vmatpush1.bf16.msra.mxu0 0
        %3085 = vmatprep.subr.bf16.mxu0 0
        %3086 = vmatpush1.bf16.msra.mxu0 0
        %3087 = vmatprep.subr.bf16.mxu0 0
        %3088 = vmatpush1.bf16.msra.mxu0 0
        %3089 = vmatprep.subr.bf16.mxu0 0
        %3090 = vmatpush1.bf16.msra.mxu0 0
        %3091 = vmatprep.subr.bf16.mxu0 0
        %3092 = vmatpush1.bf16.msra.mxu0 0
        %3093 = vmatprep.subr.bf16.mxu0 0
        %3094 = vmatpush1.bf16.msra.mxu0 0
        %3095 = vmatprep.subr.bf16.mxu0 0
        %3096 = vmatpush1.bf16.msra.mxu0 0
        %3097 = vmatprep.mubr.bf16.mxu0 0
        %3098 = vmatmul.mubr.bf16.gmra.mrb[0].mxu0 %v3060
        %v3099 = vpop.f32.mrb[0].mxu0
        %v3100 = vadd.f32 0.0, %v3099
        %v3101 = vpop.f32.mrb[0].mxu0
        %v3102 = vadd.f32 0.0, %v3101
        %v3103 = vpop.f32.mrb[0].mxu0
        %v3104 = vadd.f32 0.0, %v3103
        %v3105 = vpop.f32.mrb[0].mxu0
        %v3106 = vadd.f32 0.0, %v3105
        %3107 = vmatprep.mubr.bf16.mxu0 0
        %3108 = vmatmul.mubr.bf16.gmra.mrb[0].mxu0 %v3063
        %v3109 = vpop.f32.mrb[0].mxu0
        %v3110 = vadd.f32 0.0, %v3109
        %v3111 = vpop.f32.mrb[0].mxu0
        %v3112 = vadd.f32 0.0, %v3111
        %v3113 = vpop.f32.mrb[0].mxu0
        %v3114 = vadd.f32 0.0, %v3113
        %v3115 = vpop.f32.mrb[0].mxu0
        %v3116 = vadd.f32 0.0, %v3115
        %3117 = vdwg.mxu0
        %v3118 = vadd.f32 %v2987, %v3100
        %v3119 = vadd.f32 %v2989, %v3102
        %v3120 = vadd.f32 %v2991, %v3104
        %v3121 = vadd.f32 %v2993, %v3106
        %v3122 = vadd.f32 %v2997, %v3110
        %v3123 = vadd.f32 %v2999, %v3112
        %v3124 = vadd.f32 %v3001, %v3114
        %v3125 = vadd.f32 %v3003, %v3116
        %3126 = vset.pattern.permute.xlu0 4
        %3127 = vperm.xlu0 %3126, %v418
        %v3128 = vpop.permute.xlu0 %3127
        %3130 = vset.pattern.permute.xlu0 4
        %3131 = vperm.xlu0 %3130, %v419
        %v3132 = vpop.permute.xlu0 %3131
        %3134 = vset.pattern.permute.xlu0 4
        %3135 = vperm.xlu0 %3134, %v420
        %v3136 = vpop.permute.xlu0 %3135
        %3138 = vset.pattern.permute.xlu0 4
        %3139 = vperm.xlu0 %3138, %v421
        %v3140 = vpop.permute.xlu0 %3139
        %v3142 = vadd.f32 %v3118, %v3128
        %v3143 = vadd.f32 %v3119, %v3128
        %v3144 = vadd.f32 %v3120, %v3132
        %v3145 = vadd.f32 %v3121, %v3132
        %v3146 = vadd.f32 %v3122, %v3136
        %v3147 = vadd.f32 %v3123, %v3136
        %v3148 = vadd.f32 %v3124, %v3140
        %v3149 = vadd.f32 %v3125, %v3140
        %v3150 = vmax.f32 %v3142, 0.0
        %v3151 = vmax.f32 %v3143, 0.0
        %v3152 = vmax.f32 %v3144, 0.0
        %v3153 = vmax.f32 %v3145, 0.0
        %v3154 = vmax.f32 %v3146, 0.0
        %v3155 = vmax.f32 %v3147, 0.0
        %v3156 = vmax.f32 %v3148, 0.0
        %v3157 = vmax.f32 %v3149, 0.0
        %v3158 = vpack.c.bf16 %v3152, %v3150
        %v3159 = vpack.c.bf16 %v3153, %v3151
        %v3160 = vpack.c.bf16 %v3156, %v3154
        %v3161 = vpack.c.bf16 %v3157, %v3155
        %v3166 = vunpack.c.l.b16 %v354
        %v3167 = vunpack.c.l.b16 %v355
        %v3168 = vunpack.c.l.b16 %v356
        %v3169 = vunpack.c.l.b16 %v357
        %v3170 = vpack.c.b16 %v3167, %v3166
        %v3171 = vpack.c.b16 %v3169, %v3168
        %v3173 = vsel %vm552, %v3170, 0
        %v3176 = vsel %vm552, %v3171, 0
        %3178 = vmatprep.subr.bf16.mxu0 %v3159
        %3179 = vmatpush1.bf16.msra.mxu0 %v3158
        %3180 = vmatprep.subr.bf16.mxu0 %v3161
        %3181 = vmatpush1.bf16.msra.mxu0 %v3160
        %3182 = vmatprep.subr.bf16.mxu0 0
        %3183 = vmatpush1.bf16.msra.mxu0 0
        %3184 = vmatprep.subr.bf16.mxu0 0
        %3185 = vmatpush1.bf16.msra.mxu0 0
        %3186 = vmatprep.subr.bf16.mxu0 0
        %3187 = vmatpush1.bf16.msra.mxu0 0
        %3188 = vmatprep.subr.bf16.mxu0 0
        %3189 = vmatpush1.bf16.msra.mxu0 0
        %3190 = vmatprep.subr.bf16.mxu0 0
        %3191 = vmatpush1.bf16.msra.mxu0 0
        %3192 = vmatprep.subr.bf16.mxu0 0
        %3193 = vmatpush1.bf16.msra.mxu0 0
        %3194 = vmatprep.subr.bf16.mxu0 0
        %3195 = vmatpush1.bf16.msra.mxu0 0
        %3196 = vmatprep.subr.bf16.mxu0 0
        %3197 = vmatpush1.bf16.msra.mxu0 0
        %3198 = vmatprep.subr.bf16.mxu0 0
        %3199 = vmatpush1.bf16.msra.mxu0 0
        %3200 = vmatprep.subr.bf16.mxu0 0
        %3201 = vmatpush1.bf16.msra.mxu0 0
        %3202 = vmatprep.subr.bf16.mxu0 0
        %3203 = vmatpush1.bf16.msra.mxu0 0
        %3204 = vmatprep.subr.bf16.mxu0 0
        %3205 = vmatpush1.bf16.msra.mxu0 0
        %3206 = vmatprep.subr.bf16.mxu0 0
        %3207 = vmatpush1.bf16.msra.mxu0 0
        %3208 = vmatprep.subr.bf16.mxu0 0
        %3209 = vmatpush1.bf16.msra.mxu0 0
        %3210 = vmatprep.mubr.bf16.mxu0 0
        %3211 = vmatmul.mubr.bf16.gmra.mrb[0].mxu0 %v3173
        %v3212 = vpop.f32.mrb[0].mxu0
        %v3213 = vadd.f32 0.0, %v3212
        %v3214 = vpop.f32.mrb[0].mxu0
        %v3215 = vadd.f32 0.0, %v3214
        %v3216 = vpop.f32.mrb[0].mxu0
        %v3217 = vadd.f32 0.0, %v3216
        %v3218 = vpop.f32.mrb[0].mxu0
        %v3219 = vadd.f32 0.0, %v3218
        %3220 = vmatprep.mubr.bf16.mxu0 0
        %3221 = vmatmul.mubr.bf16.gmra.mrb[0].mxu0 %v3176
        %v3222 = vpop.f32.mrb[0].mxu0
        %v3223 = vadd.f32 0.0, %v3222
        %v3224 = vpop.f32.mrb[0].mxu0
        %v3225 = vadd.f32 0.0, %v3224
        %v3226 = vpop.f32.mrb[0].mxu0
        %v3227 = vadd.f32 0.0, %v3226
        %v3228 = vpop.f32.mrb[0].mxu0
        %v3229 = vadd.f32 0.0, %v3228
        %3230 = vdwg.mxu0
        %v3231 = vadd.f32 %v2803, %v3213
        %v3232 = vadd.f32 %v2804, %v3215
        %v3233 = vadd.f32 %v2805, %v3217
        %v3234 = vadd.f32 %v2806, %v3219
        %v3235 = vadd.f32 %v2807, %v3223
        %v3236 = vadd.f32 %v2808, %v3225
        %v3237 = vadd.f32 %v2809, %v3227
        %v3238 = vadd.f32 %v2810, %v3229
        %3239 = vset.pattern.permute.xlu0 5
        %3240 = vperm.xlu0 %3239, %v418
        %v3241 = vpop.permute.xlu0 %3240
        %3243 = vset.pattern.permute.xlu0 5
        %3244 = vperm.xlu0 %3243, %v419
        %v3245 = vpop.permute.xlu0 %3244
        %3247 = vset.pattern.permute.xlu0 5
        %3248 = vperm.xlu0 %3247, %v420
        %v3249 = vpop.permute.xlu0 %3248
        %3251 = vset.pattern.permute.xlu0 5
        %3252 = vperm.xlu0 %3251, %v421
        %v3253 = vpop.permute.xlu0 %3252
        %v3255 = vadd.f32 %v3231, %v3241
        %v3256 = vadd.f32 %v3232, %v3241
        %v3257 = vadd.f32 %v3233, %v3245
        %v3258 = vadd.f32 %v3234, %v3245
        %v3259 = vadd.f32 %v3235, %v3249
        %v3260 = vadd.f32 %v3236, %v3249
        %v3261 = vadd.f32 %v3237, %v3253
        %v3262 = vadd.f32 %v3238, %v3253
        %3263 = vrot.lane.b32.xlu0 %v3255, 1
        %v3264 = vpop.permute.xlu0 %3263
        %3265 = vrot.lane.b32.xlu0 %v3257, 1
        %v3266 = vpop.permute.xlu0 %3265
        %3267 = vrot.lane.b32.xlu0 %v3259, 1
        %v3268 = vpop.permute.xlu0 %3267
        %3269 = vrot.lane.b32.xlu0 %v3261, 1
        %v3270 = vpop.permute.xlu0 %3269
        %3271 = vrot.lane.b32.xlu0 %v3256, 1
        %v3272 = vpop.permute.xlu0 %3271
        %3273 = vrot.lane.b32.xlu0 %v3258, 1
        %v3274 = vpop.permute.xlu0 %3273
        %3275 = vrot.lane.b32.xlu0 %v3260, 1
        %v3276 = vpop.permute.xlu0 %3275
        %3277 = vrot.lane.b32.xlu0 %v3262, 1
        %v3278 = vpop.permute.xlu0 %3277
        %v3279 = vsel %vm477, %v3264, %v3272
        %v3280 = vsel %vm477, %v3266, %v3274
        %v3281 = vsel %vm477, %v3268, %v3276
        %v3282 = vsel %vm477, %v3270, %v3278
        %v3283 = vsel %vm477, %v3272, %v3264
        %v3284 = vsel %vm477, %v3274, %v3266
        %v3285 = vsel %vm477, %v3276, %v3268
        %v3286 = vsel %vm477, %v3278, %v3270
        %v3287 = vmul.f32 %v3283, %v2846
        %v3288 = vmul.f32 %v3279, %v2850
        %v3289 = vmul.f32 %v3284, %v2846
        %v3290 = vmul.f32 %v3280, %v2850
        %v3291 = vmul.f32 %v3285, %v2846
        %v3292 = vmul.f32 %v3281, %v2850
        %v3293 = vmul.f32 %v3286, %v2846
        %v3294 = vmul.f32 %v3282, %v2850
        %v3295 = vpack.c.bf16 %v3289, %v3287
        %v3296 = vpack.c.bf16 %v3290, %v3288
        %v3297 = vpack.c.bf16 %v3293, %v3291
        %v3298 = vpack.c.bf16 %v3294, %v3292
        %v3299 = vpack.c.bf16 %v3257, %v3255
        %v3300 = vpack.c.bf16 %v3258, %v3256
        %v3301 = vpack.c.bf16 %v3261, %v3259
        %v3302 = vpack.c.bf16 %v3262, %v3260
        %v3307 = vunpack.c.l.b16 %v362
        %v3308 = vunpack.c.l.b16 %v363
        %v3309 = vunpack.c.l.b16 %v364
        %v3310 = vunpack.c.l.b16 %v365
        %v3311 = vpack.c.b16 %v3308, %v3307
        %v3312 = vpack.c.b16 %v3310, %v3309
        %v3314 = vsel %vm552, %v3311, 0
        %v3317 = vsel %vm552, %v3312, 0
        %3319 = vmatprep.subr.bf16.mxu0 %v3300
        %3320 = vmatpush1.bf16.msra.mxu0 %v3299
        %3321 = vmatprep.subr.bf16.mxu0 %v3302
        %3322 = vmatpush1.bf16.msra.mxu0 %v3301
        %3323 = vmatprep.subr.bf16.mxu0 0
        %3324 = vmatpush1.bf16.msra.mxu0 0
        %3325 = vmatprep.subr.bf16.mxu0 0
        %3326 = vmatpush1.bf16.msra.mxu0 0
        %3327 = vmatprep.subr.bf16.mxu0 0
        %3328 = vmatpush1.bf16.msra.mxu0 0
        %3329 = vmatprep.subr.bf16.mxu0 0
        %3330 = vmatpush1.bf16.msra.mxu0 0
        %3331 = vmatprep.subr.bf16.mxu0 0
        %3332 = vmatpush1.bf16.msra.mxu0 0
        %3333 = vmatprep.subr.bf16.mxu0 0
        %3334 = vmatpush1.bf16.msra.mxu0 0
        %3335 = vmatprep.subr.bf16.mxu0 0
        %3336 = vmatpush1.bf16.msra.mxu0 0
        %3337 = vmatprep.subr.bf16.mxu0 0
        %3338 = vmatpush1.bf16.msra.mxu0 0
        %3339 = vmatprep.subr.bf16.mxu0 0
        %3340 = vmatpush1.bf16.msra.mxu0 0
        %3341 = vmatprep.subr.bf16.mxu0 0
        %3342 = vmatpush1.bf16.msra.mxu0 0
        %3343 = vmatprep.subr.bf16.mxu0 0
        %3344 = vmatpush1.bf16.msra.mxu0 0
        %3345 = vmatprep.subr.bf16.mxu0 0
        %3346 = vmatpush1.bf16.msra.mxu0 0
        %3347 = vmatprep.subr.bf16.mxu0 0
        %3348 = vmatpush1.bf16.msra.mxu0 0
        %3349 = vmatprep.subr.bf16.mxu0 0
        %3350 = vmatpush1.bf16.msra.mxu0 0
        %3351 = vmatprep.mubr.bf16.mxu0 0
        %3352 = vmatmul.mubr.bf16.gmra.mrb[0].mxu0 %v3314
        %v3353 = vpop.f32.mrb[0].mxu0
        %v3354 = vadd.f32 0.0, %v3353
        %v3355 = vpop.f32.mrb[0].mxu0
        %v3356 = vadd.f32 0.0, %v3355
        %v3357 = vpop.f32.mrb[0].mxu0
        %v3358 = vadd.f32 0.0, %v3357
        %v3359 = vpop.f32.mrb[0].mxu0
        %v3360 = vadd.f32 0.0, %v3359
        %3361 = vmatprep.mubr.bf16.mxu0 0
        %3362 = vmatmul.mubr.bf16.gmra.mrb[0].mxu0 %v3317
        %v3363 = vpop.f32.mrb[0].mxu0
        %v3364 = vadd.f32 0.0, %v3363
        %v3365 = vpop.f32.mrb[0].mxu0
        %v3366 = vadd.f32 0.0, %v3365
        %v3367 = vpop.f32.mrb[0].mxu0
        %v3368 = vadd.f32 0.0, %v3367
        %v3369 = vpop.f32.mrb[0].mxu0
        %v3370 = vadd.f32 0.0, %v3369
        %3371 = vdwg.mxu0
        %v3376 = vunpack.c.l.b16 %v358
        %v3377 = vunpack.c.l.b16 %v359
        %v3378 = vunpack.c.l.b16 %v360
        %v3379 = vunpack.c.l.b16 %v361
        %v3380 = vpack.c.b16 %v3377, %v3376
        %v3381 = vpack.c.b16 %v3379, %v3378
        %v3383 = vsel %vm552, %v3380, 0
        %v3386 = vsel %vm552, %v3381, 0
        %3388 = vmatprep.subr.bf16.mxu0 %v3296
        %3389 = vmatpush1.bf16.msra.mxu0 %v3295
        %3390 = vmatprep.subr.bf16.mxu0 %v3298
        %3391 = vmatpush1.bf16.msra.mxu0 %v3297
        %3392 = vmatprep.subr.bf16.mxu0 0
        %3393 = vmatpush1.bf16.msra.mxu0 0
        %3394 = vmatprep.subr.bf16.mxu0 0
        %3395 = vmatpush1.bf16.msra.mxu0 0
        %3396 = vmatprep.subr.bf16.mxu0 0
        %3397 = vmatpush1.bf16.msra.mxu0 0
        %3398 = vmatprep.subr.bf16.mxu0 0
        %3399 = vmatpush1.bf16.msra.mxu0 0
        %3400 = vmatprep.subr.bf16.mxu0 0
        %3401 = vmatpush1.bf16.msra.mxu0 0
        %3402 = vmatprep.subr.bf16.mxu0 0
        %3403 = vmatpush1.bf16.msra.mxu0 0
        %3404 = vmatprep.subr.bf16.mxu0 0
        %3405 = vmatpush1.bf16.msra.mxu0 0
        %3406 = vmatprep.subr.bf16.mxu0 0
        %3407 = vmatpush1.bf16.msra.mxu0 0
        %3408 = vmatprep.subr.bf16.mxu0 0
        %3409 = vmatpush1.bf16.msra.mxu0 0
        %3410 = vmatprep.subr.bf16.mxu0 0
        %3411 = vmatpush1.bf16.msra.mxu0 0
        %3412 = vmatprep.subr.bf16.mxu0 0
        %3413 = vmatpush1.bf16.msra.mxu0 0
        %3414 = vmatprep.subr.bf16.mxu0 0
        %3415 = vmatpush1.bf16.msra.mxu0 0
        %3416 = vmatprep.subr.bf16.mxu0 0
        %3417 = vmatpush1.bf16.msra.mxu0 0
        %3418 = vmatprep.subr.bf16.mxu0 0
        %3419 = vmatpush1.bf16.msra.mxu0 0
        %3420 = vmatprep.mubr.bf16.mxu0 0
        %3421 = vmatmul.mubr.bf16.gmra.mrb[0].mxu0 %v3383
        %v3422 = vpop.f32.mrb[0].mxu0
        %v3423 = vadd.f32 %v3354, %v3422
        %v3424 = vpop.f32.mrb[0].mxu0
        %v3425 = vadd.f32 %v3356, %v3424
        %v3426 = vpop.f32.mrb[0].mxu0
        %v3427 = vadd.f32 %v3358, %v3426
        %v3428 = vpop.f32.mrb[0].mxu0
        %v3429 = vadd.f32 %v3360, %v3428
        %3430 = vmatprep.mubr.bf16.mxu0 0
        %3431 = vmatmul.mubr.bf16.gmra.mrb[0].mxu0 %v3386
        %v3432 = vpop.f32.mrb[0].mxu0
        %v3433 = vadd.f32 %v3364, %v3432
        %v3434 = vpop.f32.mrb[0].mxu0
        %v3435 = vadd.f32 %v3366, %v3434
        %v3436 = vpop.f32.mrb[0].mxu0
        %v3437 = vadd.f32 %v3368, %v3436
        %v3438 = vpop.f32.mrb[0].mxu0
        %v3439 = vadd.f32 %v3370, %v3438
        %3440 = vdwg.mxu0
        %3441 = vrot.lane.b32.xlu0 %v3255, 127
        %v3442 = vpop.permute.xlu0 %3441
        %3443 = vrot.lane.b32.xlu0 %v3257, 127
        %v3444 = vpop.permute.xlu0 %3443
        %3445 = vrot.lane.b32.xlu0 %v3259, 127
        %v3446 = vpop.permute.xlu0 %3445
        %3447 = vrot.lane.b32.xlu0 %v3261, 127
        %v3448 = vpop.permute.xlu0 %3447
        %3449 = vrot.lane.b32.xlu0 %v3256, 127
        %v3450 = vpop.permute.xlu0 %3449
        %3451 = vrot.lane.b32.xlu0 %v3258, 127
        %v3452 = vpop.permute.xlu0 %3451
        %3453 = vrot.lane.b32.xlu0 %v3260, 127
        %v3454 = vpop.permute.xlu0 %3453
        %3455 = vrot.lane.b32.xlu0 %v3262, 127
        %v3456 = vpop.permute.xlu0 %3455
        %v3457 = vsel %vm819, %v3442, %v3450
        %v3458 = vsel %vm819, %v3444, %v3452
        %v3459 = vsel %vm819, %v3446, %v3454
        %v3460 = vsel %vm819, %v3448, %v3456
        %v3461 = vsel %vm819, %v3450, %v3442
        %v3462 = vsel %vm819, %v3452, %v3444
        %v3463 = vsel %vm819, %v3454, %v3446
        %v3464 = vsel %vm819, %v3456, %v3448
        %v3465 = vmul.f32 %v3457, %v3032
        %v3466 = vmul.f32 %v3461, %v3036
        %v3467 = vmul.f32 %v3458, %v3032
        %v3468 = vmul.f32 %v3462, %v3036
        %v3469 = vmul.f32 %v3459, %v3032
        %v3470 = vmul.f32 %v3463, %v3036
        %v3471 = vmul.f32 %v3460, %v3032
        %v3472 = vmul.f32 %v3464, %v3036
        %v3473 = vpack.c.bf16 %v3467, %v3465
        %v3474 = vpack.c.bf16 %v3468, %v3466
        %v3475 = vpack.c.bf16 %v3471, %v3469
        %v3476 = vpack.c.bf16 %v3472, %v3470
        %v3481 = vunpack.c.l.b16 %v366
        %v3482 = vunpack.c.l.b16 %v367
        %v3483 = vunpack.c.l.b16 %v368
        %v3484 = vunpack.c.l.b16 %v369
        %v3485 = vpack.c.b16 %v3482, %v3481
        %v3486 = vpack.c.b16 %v3484, %v3483
        %v3488 = vsel %vm552, %v3485, 0
        %v3491 = vsel %vm552, %v3486, 0
        %3493 = vmatprep.subr.bf16.mxu0 %v3474
        %3494 = vmatpush1.bf16.msra.mxu0 %v3473
        %3495 = vmatprep.subr.bf16.mxu0 %v3476
        %3496 = vmatpush1.bf16.msra.mxu0 %v3475
        %3497 = vmatprep.subr.bf16.mxu0 0
        %3498 = vmatpush1.bf16.msra.mxu0 0
        %3499 = vmatprep.subr.bf16.mxu0 0
        %3500 = vmatpush1.bf16.msra.mxu0 0
        %3501 = vmatprep.subr.bf16.mxu0 0
        %3502 = vmatpush1.bf16.msra.mxu0 0
        %3503 = vmatprep.subr.bf16.mxu0 0
        %3504 = vmatpush1.bf16.msra.mxu0 0
        %3505 = vmatprep.subr.bf16.mxu0 0
        %3506 = vmatpush1.bf16.msra.mxu0 0
        %3507 = vmatprep.subr.bf16.mxu0 0
        %3508 = vmatpush1.bf16.msra.mxu0 0
        %3509 = vmatprep.subr.bf16.mxu0 0
        %3510 = vmatpush1.bf16.msra.mxu0 0
        %3511 = vmatprep.subr.bf16.mxu0 0
        %3512 = vmatpush1.bf16.msra.mxu0 0
        %3513 = vmatprep.subr.bf16.mxu0 0
        %3514 = vmatpush1.bf16.msra.mxu0 0
        %3515 = vmatprep.subr.bf16.mxu0 0
        %3516 = vmatpush1.bf16.msra.mxu0 0
        %3517 = vmatprep.subr.bf16.mxu0 0
        %3518 = vmatpush1.bf16.msra.mxu0 0
        %3519 = vmatprep.subr.bf16.mxu0 0
        %3520 = vmatpush1.bf16.msra.mxu0 0
        %3521 = vmatprep.subr.bf16.mxu0 0
        %3522 = vmatpush1.bf16.msra.mxu0 0
        %3523 = vmatprep.subr.bf16.mxu0 0
        %3524 = vmatpush1.bf16.msra.mxu0 0
        %3525 = vmatprep.mubr.bf16.mxu0 0
        %3526 = vmatmul.mubr.bf16.gmra.mrb[0].mxu0 %v3488
        %v3527 = vpop.f32.mrb[0].mxu0
        %v3528 = vadd.f32 0.0, %v3527
        %v3529 = vpop.f32.mrb[0].mxu0
        %v3530 = vadd.f32 0.0, %v3529
        %v3531 = vpop.f32.mrb[0].mxu0
        %v3532 = vadd.f32 0.0, %v3531
        %v3533 = vpop.f32.mrb[0].mxu0
        %v3534 = vadd.f32 0.0, %v3533
        %3535 = vmatprep.mubr.bf16.mxu0 0
        %3536 = vmatmul.mubr.bf16.gmra.mrb[0].mxu0 %v3491
        %v3537 = vpop.f32.mrb[0].mxu0
        %v3538 = vadd.f32 0.0, %v3537
        %v3539 = vpop.f32.mrb[0].mxu0
        %v3540 = vadd.f32 0.0, %v3539
        %v3541 = vpop.f32.mrb[0].mxu0
        %v3542 = vadd.f32 0.0, %v3541
        %v3543 = vpop.f32.mrb[0].mxu0
        %v3544 = vadd.f32 0.0, %v3543
        %3545 = vdwg.mxu0
        %v3546 = vadd.f32 %v3423, %v3528
        %v3547 = vadd.f32 %v3425, %v3530
        %v3548 = vadd.f32 %v3427, %v3532
        %v3549 = vadd.f32 %v3429, %v3534
        %v3550 = vadd.f32 %v3433, %v3538
        %v3551 = vadd.f32 %v3435, %v3540
        %v3552 = vadd.f32 %v3437, %v3542
        %v3553 = vadd.f32 %v3439, %v3544
        %3554 = vrot.lane.b32.xlu0 %v3255, 126
        %v3555 = vpop.permute.xlu0 %3554
        %3556 = vrot.lane.b32.xlu0 %v3257, 126
        %v3557 = vpop.permute.xlu0 %3556
        %3558 = vrot.lane.b32.xlu0 %v3259, 126
        %v3559 = vpop.permute.xlu0 %3558
        %3560 = vrot.lane.b32.xlu0 %v3261, 126
        %v3561 = vpop.permute.xlu0 %3560
        %3562 = vrot.lane.b32.xlu0 %v3256, 126
        %v3563 = vpop.permute.xlu0 %3562
        %3564 = vrot.lane.b32.xlu0 %v3258, 126
        %v3565 = vpop.permute.xlu0 %3564
        %3566 = vrot.lane.b32.xlu0 %v3260, 126
        %v3567 = vpop.permute.xlu0 %3566
        %3568 = vrot.lane.b32.xlu0 %v3262, 126
        %v3569 = vpop.permute.xlu0 %3568
        %v3570 = vsel %vm1632, %v3555, %v3563
        %v3571 = vsel %vm1632, %v3557, %v3565
        %v3572 = vsel %vm1632, %v3559, %v3567
        %v3573 = vsel %vm1632, %v3561, %v3569
        %v3574 = vsel %vm1632, %v3563, %v3555
        %v3575 = vsel %vm1632, %v3565, %v3557
        %v3576 = vsel %vm1632, %v3567, %v3559
        %v3577 = vsel %vm1632, %v3569, %v3561
        %v3578 = vlaneseq
        %v3579 = vshrl.u32 %v3578, 7
        %v3580 = vsub.s32 7, %v3579
        %v3581 = vrot.slane %v422, %v3580
        %v3582 = vlaneseq
        %v3583 = vshrl.u32 %v3582, 7
        %v3584 = vsub.s32 7, %v3583
        %v3585 = vrot.slane %v423, %v3584
        %v3586 = vmul.f32 %v3570, %v3581
        %v3587 = vmul.f32 %v3574, %v3585
        %v3588 = vmul.f32 %v3571, %v3581
        %v3589 = vmul.f32 %v3575, %v3585
        %v3590 = vmul.f32 %v3572, %v3581
        %v3591 = vmul.f32 %v3576, %v3585
        %v3592 = vmul.f32 %v3573, %v3581
        %v3593 = vmul.f32 %v3577, %v3585
        %v3594 = vpack.c.bf16 %v3588, %v3586
        %v3595 = vpack.c.bf16 %v3589, %v3587
        %v3596 = vpack.c.bf16 %v3592, %v3590
        %v3597 = vpack.c.bf16 %v3593, %v3591
        %v3602 = vunpack.c.l.b16 %v370
        %v3603 = vunpack.c.l.b16 %v371
        %v3604 = vunpack.c.l.b16 %v372
        %v3605 = vunpack.c.l.b16 %v373
        %v3606 = vpack.c.b16 %v3603, %v3602
        %v3607 = vpack.c.b16 %v3605, %v3604
        %v3609 = vsel %vm552, %v3606, 0
        %v3612 = vsel %vm552, %v3607, 0
        %3614 = vmatprep.subr.bf16.mxu0 %v3595
        %3615 = vmatpush1.bf16.msra.mxu0 %v3594
        %3616 = vmatprep.subr.bf16.mxu0 %v3597
        %3617 = vmatpush1.bf16.msra.mxu0 %v3596
        %3618 = vmatprep.subr.bf16.mxu0 0
        %3619 = vmatpush1.bf16.msra.mxu0 0
        %3620 = vmatprep.subr.bf16.mxu0 0
        %3621 = vmatpush1.bf16.msra.mxu0 0
        %3622 = vmatprep.subr.bf16.mxu0 0
        %3623 = vmatpush1.bf16.msra.mxu0 0
        %3624 = vmatprep.subr.bf16.mxu0 0
        %3625 = vmatpush1.bf16.msra.mxu0 0
        %3626 = vmatprep.subr.bf16.mxu0 0
        %3627 = vmatpush1.bf16.msra.mxu0 0
        %3628 = vmatprep.subr.bf16.mxu0 0
        %3629 = vmatpush1.bf16.msra.mxu0 0
        %3630 = vmatprep.subr.bf16.mxu0 0
        %3631 = vmatpush1.bf16.msra.mxu0 0
        %3632 = vmatprep.subr.bf16.mxu0 0
        %3633 = vmatpush1.bf16.msra.mxu0 0
        %3634 = vmatprep.subr.bf16.mxu0 0
        %3635 = vmatpush1.bf16.msra.mxu0 0
        %3636 = vmatprep.subr.bf16.mxu0 0
        %3637 = vmatpush1.bf16.msra.mxu0 0
        %3638 = vmatprep.subr.bf16.mxu0 0
        %3639 = vmatpush1.bf16.msra.mxu0 0
        %3640 = vmatprep.subr.bf16.mxu0 0
        %3641 = vmatpush1.bf16.msra.mxu0 0
        %3642 = vmatprep.subr.bf16.mxu0 0
        %3643 = vmatpush1.bf16.msra.mxu0 0
        %3644 = vmatprep.subr.bf16.mxu0 0
        %3645 = vmatpush1.bf16.msra.mxu0 0
        %3646 = vmatprep.mubr.bf16.mxu0 0
        %3647 = vmatmul.mubr.bf16.gmra.mrb[0].mxu0 %v3609
        %v3648 = vpop.f32.mrb[0].mxu0
        %v3649 = vadd.f32 0.0, %v3648
        %v3650 = vpop.f32.mrb[0].mxu0
        %v3651 = vadd.f32 0.0, %v3650
        %v3652 = vpop.f32.mrb[0].mxu0
        %v3653 = vadd.f32 0.0, %v3652
        %v3654 = vpop.f32.mrb[0].mxu0
        %v3655 = vadd.f32 0.0, %v3654
        %3656 = vmatprep.mubr.bf16.mxu0 0
        %3657 = vmatmul.mubr.bf16.gmra.mrb[0].mxu0 %v3612
        %v3658 = vpop.f32.mrb[0].mxu0
        %v3659 = vadd.f32 0.0, %v3658
        %v3660 = vpop.f32.mrb[0].mxu0
        %v3661 = vadd.f32 0.0, %v3660
        %v3662 = vpop.f32.mrb[0].mxu0
        %v3663 = vadd.f32 0.0, %v3662
        %v3664 = vpop.f32.mrb[0].mxu0
        %v3665 = vadd.f32 0.0, %v3664
        %3666 = vdwg.mxu0
        %v3667 = vadd.f32 %v3546, %v3649
        %v3668 = vadd.f32 %v3547, %v3651
        %v3669 = vadd.f32 %v3548, %v3653
        %v3670 = vadd.f32 %v3549, %v3655
        %v3671 = vadd.f32 %v3550, %v3659
        %v3672 = vadd.f32 %v3551, %v3661
        %v3673 = vadd.f32 %v3552, %v3663
        %v3674 = vadd.f32 %v3553, %v3665
        %3675 = vset.pattern.permute.xlu0 6
        %3676 = vperm.xlu0 %3675, %v418
        %v3677 = vpop.permute.xlu0 %3676
        %3679 = vset.pattern.permute.xlu0 6
        %3680 = vperm.xlu0 %3679, %v419
        %v3681 = vpop.permute.xlu0 %3680
        %3683 = vset.pattern.permute.xlu0 6
        %3684 = vperm.xlu0 %3683, %v420
        %v3685 = vpop.permute.xlu0 %3684
        %3687 = vset.pattern.permute.xlu0 6
        %3688 = vperm.xlu0 %3687, %v421
        %v3689 = vpop.permute.xlu0 %3688
        %v3691 = vadd.f32 %v3667, %v3677
        %v3692 = vadd.f32 %v3668, %v3677
        %v3693 = vadd.f32 %v3669, %v3681
        %v3694 = vadd.f32 %v3670, %v3681
        %v3695 = vadd.f32 %v3671, %v3685
        %v3696 = vadd.f32 %v3672, %v3685
        %v3697 = vadd.f32 %v3673, %v3689
        %v3698 = vadd.f32 %v3674, %v3689
        %v3699 = vpack.c.bf16 %v3693, %v3691
        %v3700 = vpack.c.bf16 %v3694, %v3692
        %v3701 = vpack.c.bf16 %v3697, %v3695
        %v3702 = vpack.c.bf16 %v3698, %v3696
        %v3703 = vld [vmem:[%s5] sm:$0xf]
        %v3704 = vld [vmem:[%s5 + $0x4] sm:$0xf]
        %v3705 = vld [vmem:[%s5 + $0x8] sm:$0xf]
        %v3706 = vld [vmem:[%s5 + $0xc] sm:$0xf]
        %v3707 = vld [vmem:[%s5 + $0x10] sm:$0xf]
        %v3708 = vld [vmem:[%s5 + $0x14] sm:$0xf]
        %v3709 = vld [vmem:[%s5 + $0x18] sm:$0xf]
        %v3710 = vld [vmem:[%s5 + $0x1c] sm:$0xf]
        %v3711 = vld [vmem:[%s5 + $0x20] sm:$0xf]
        %v3712 = vld [vmem:[%s5 + $0x24] sm:$0xf]
        %v3713 = vld [vmem:[%s5 + $0x28] sm:$0xf]
        %v3714 = vld [vmem:[%s5 + $0x2c] sm:$0xf]
        %v3715 = vld [vmem:[%s5 + $0x30] sm:$0xf]
        %v3716 = vld [vmem:[%s5 + $0x34] sm:$0xf]
        %v3717 = vld [vmem:[%s5 + $0x38] sm:$0xf]
        %v3718 = vld [vmem:[%s5 + $0x3c] sm:$0xf]
        %v3719 = vld [vmem:[%s5 + $0x40] sm:$0xf]
        %v3720 = vld [vmem:[%s5 + $0x44] sm:$0xf]
        %v3721 = vld [vmem:[%s5 + $0x48] sm:$0xf]
        %v3722 = vld [vmem:[%s5 + $0x4c] sm:$0xf]
        %v3723 = vld [vmem:[%s5 + $0x50] sm:$0xf]
        %v3724 = vld [vmem:[%s5 + $0x54] sm:$0xf]
        %v3725 = vld [vmem:[%s5 + $0x58] sm:$0xf]
        %v3726 = vld [vmem:[%s5 + $0x5c] sm:$0xf]
        %v3727 = vld [vmem:[%s5 + $0x60] sm:$0xf]
        %v3728 = vld [vmem:[%s5 + $0x64] sm:$0xf]
        %v3729 = vld [vmem:[%s5 + $0x68] sm:$0xf]
        %v3730 = vld [vmem:[%s5 + $0x6c] sm:$0xf]
        %v3731 = vld [vmem:[%s5 + $0x70] sm:$0xf]
        %v3732 = vld [vmem:[%s5 + $0x74] sm:$0xf]
        %v3733 = vld [vmem:[%s5 + $0x78] sm:$0xf]
        %v3734 = vld [vmem:[%s5 + $0x7c] sm:$0xf]
        %v3767 = vunpack.c.l.b16 %v3703
        %v3768 = vunpack.c.l.b16 %v3704
        %v3769 = vunpack.c.l.b16 %v3705
        %v3770 = vunpack.c.l.b16 %v3706
        %v3771 = vunpack.c.l.b16 %v3707
        %v3772 = vunpack.c.l.b16 %v3708
        %v3773 = vunpack.c.l.b16 %v3709
        %v3774 = vunpack.c.l.b16 %v3710
        %v3775 = vunpack.c.l.b16 %v3711
        %v3776 = vunpack.c.l.b16 %v3712
        %v3777 = vunpack.c.l.b16 %v3713
        %v3778 = vunpack.c.l.b16 %v3714
        %v3779 = vunpack.c.l.b16 %v3715
        %v3780 = vunpack.c.l.b16 %v3716
        %v3781 = vunpack.c.l.b16 %v3717
        %v3782 = vunpack.c.l.b16 %v3718
        %v3783 = vunpack.c.l.b16 %v3719
        %v3784 = vunpack.c.l.b16 %v3720
        %v3785 = vunpack.c.l.b16 %v3721
        %v3786 = vunpack.c.l.b16 %v3722
        %v3787 = vunpack.c.l.b16 %v3723
        %v3788 = vunpack.c.l.b16 %v3724
        %v3789 = vunpack.c.l.b16 %v3725
        %v3790 = vunpack.c.l.b16 %v3726
        %v3791 = vunpack.c.l.b16 %v3727
        %v3792 = vunpack.c.l.b16 %v3728
        %v3793 = vunpack.c.l.b16 %v3729
        %v3794 = vunpack.c.l.b16 %v3730
        %v3795 = vunpack.c.l.b16 %v3731
        %v3796 = vunpack.c.l.b16 %v3732
        %v3797 = vunpack.c.l.b16 %v3733
        %v3798 = vunpack.c.l.b16 %v3734
        %v3799 = vpack.c.b16 %v3768, %v3767
        %v3800 = vpack.c.b16 %v3770, %v3769
        %v3801 = vpack.c.b16 %v3772, %v3771
        %v3802 = vpack.c.b16 %v3774, %v3773
        %v3803 = vpack.c.b16 %v3776, %v3775
        %v3804 = vpack.c.b16 %v3778, %v3777
        %v3805 = vpack.c.b16 %v3780, %v3779
        %v3806 = vpack.c.b16 %v3782, %v3781
        %v3807 = vpack.c.b16 %v3784, %v3783
        %v3808 = vpack.c.b16 %v3786, %v3785
        %v3809 = vpack.c.b16 %v3788, %v3787
        %v3810 = vpack.c.b16 %v3790, %v3789
        %v3811 = vpack.c.b16 %v3792, %v3791
        %v3812 = vpack.c.b16 %v3794, %v3793
        %v3813 = vpack.c.b16 %v3796, %v3795
        %v3814 = vpack.c.b16 %v3798, %v3797
        %3831 = vmatprep.subr.bf16.mxu0 0
        %3832 = vmatpush1.bf16.msra.mxu0 %v3799
        %3833 = vmatprep.subr.bf16.mxu0 0
        %3834 = vmatpush1.bf16.msra.mxu0 %v3800
        %3835 = vmatprep.subr.bf16.mxu0 0
        %3836 = vmatpush1.bf16.msra.mxu0 %v3801
        %3837 = vmatprep.subr.bf16.mxu0 0
        %3838 = vmatpush1.bf16.msra.mxu0 %v3802
        %3839 = vmatprep.subr.bf16.mxu0 0
        %3840 = vmatpush1.bf16.msra.mxu0 %v3803
        %3841 = vmatprep.subr.bf16.mxu0 0
        %3842 = vmatpush1.bf16.msra.mxu0 %v3804
        %3843 = vmatprep.subr.bf16.mxu0 0
        %3844 = vmatpush1.bf16.msra.mxu0 %v3805
        %3845 = vmatprep.subr.bf16.mxu0 0
        %3846 = vmatpush1.bf16.msra.mxu0 %v3806
        %3847 = vmatprep.subr.bf16.mxu0 0
        %3848 = vmatpush1.bf16.msra.mxu0 %v3807
        %3849 = vmatprep.subr.bf16.mxu0 0
        %3850 = vmatpush1.bf16.msra.mxu0 %v3808
        %3851 = vmatprep.subr.bf16.mxu0 0
        %3852 = vmatpush1.bf16.msra.mxu0 %v3809
        %3853 = vmatprep.subr.bf16.mxu0 0
        %3854 = vmatpush1.bf16.msra.mxu0 %v3810
        %3855 = vmatprep.subr.bf16.mxu0 0
        %3856 = vmatpush1.bf16.msra.mxu0 %v3811
        %3857 = vmatprep.subr.bf16.mxu0 0
        %3858 = vmatpush1.bf16.msra.mxu0 %v3812
        %3859 = vmatprep.subr.bf16.mxu0 0
        %3860 = vmatpush1.bf16.msra.mxu0 %v3813
        %3861 = vmatprep.subr.bf16.mxu0 0
        %3862 = vmatpush1.bf16.msra.mxu0 %v3814
        %3863 = vmatprep.mubr.bf16.mxu0 %v3700
        %3864 = vmatmul.mubr.bf16.gmra.mrb[0].mxu0 %v3699
        %v3865 = vpop.f32.mrb[0].mxu0
        %v3866 = vadd.f32 0.0, %v3865
        %v3867 = vpop.f32.mrb[0].mxu0
        %v3868 = vpop.f32.mrb[0].mxu0
        %v3869 = vadd.f32 0.0, %v3868
        %v3870 = vpop.f32.mrb[0].mxu0
        %3871 = vmatprep.mubr.bf16.mxu0 %v3702
        %3872 = vmatmul.mubr.bf16.gmra.mrb[0].mxu0 %v3701
        %v3873 = vpop.f32.mrb[0].mxu0
        %v3874 = vadd.f32 0.0, %v3873
        %v3875 = vpop.f32.mrb[0].mxu0
        %v3876 = vpop.f32.mrb[0].mxu0
        %v3877 = vadd.f32 0.0, %v3876
        %v3878 = vpop.f32.mrb[0].mxu0
        %3879 = vdwg.mxu0
        %v3880 = vmax.f32 %v3866, 0.0
        %v3881 = vmax.f32 %v3869, 0.0
        %v3882 = vmax.f32 %v3874, 0.0
        %v3883 = vmax.f32 %v3877, 0.0
        %3884 = vrot.lane.b32.xlu0 %v3880, 3
        %v3885 = vpop.permute.xlu0 %3884
        %3886 = vrot.lane.b32.xlu0 %v3881, 3
        %v3887 = vpop.permute.xlu0 %3886
        %3888 = vrot.lane.b32.xlu0 %v3882, 3
        %v3889 = vpop.permute.xlu0 %3888
        %3890 = vrot.lane.b32.xlu0 %v3883, 3
        %v3891 = vpop.permute.xlu0 %3890
        %v3892 = vlaneseq
        %v3893 = vshrl.u32 %v3892, 7
        %v3894 = vsub.s32 0, %v3893
        %v3895 = vrot.slane %v426, %v3894
        %v3896 = vmul.f32 %v3885, %v3895
        %v3897 = vmul.f32 %v3887, %v3895
        %v3898 = vmul.f32 %v3889, %v3895
        %v3899 = vmul.f32 %v3891, %v3895
        %v3900 = vpack.c.bf16 %v3897, %v3896
        %v3901 = vpack.c.bf16 %v3899, %v3898
        %v3902 = vpack.c.bf16 %v3881, %v3880
        %v3903 = vpack.c.bf16 %v3883, %v3882
        %v3908 = vunpack.c.l.b16 %v378
        %v3909 = vunpack.c.l.b16 %v379
        %v3910 = vunpack.c.l.b16 %v380
        %v3911 = vunpack.c.l.b16 %v381
        %v3912 = vpack.c.b16 %v3909, %v3908
        %v3913 = vpack.c.b16 %v3911, %v3910
        %v3915 = vsel %vm552, %v3912, 0
        %v3918 = vsel %vm552, %v3913, 0
        %3920 = vmatprep.subr.bf16.mxu0 0
        %3921 = vmatpush1.bf16.msra.mxu0 %v3902
        %3922 = vmatprep.subr.bf16.mxu0 0
        %3923 = vmatpush1.bf16.msra.mxu0 %v3903
        %3924 = vmatprep.subr.bf16.mxu0 0
        %3925 = vmatpush1.bf16.msra.mxu0 0
        %3926 = vmatprep.subr.bf16.mxu0 0
        %3927 = vmatpush1.bf16.msra.mxu0 0
        %3928 = vmatprep.subr.bf16.mxu0 0
        %3929 = vmatpush1.bf16.msra.mxu0 0
        %3930 = vmatprep.subr.bf16.mxu0 0
        %3931 = vmatpush1.bf16.msra.mxu0 0
        %3932 = vmatprep.subr.bf16.mxu0 0
        %3933 = vmatpush1.bf16.msra.mxu0 0
        %3934 = vmatprep.subr.bf16.mxu0 0
        %3935 = vmatpush1.bf16.msra.mxu0 0
        %3936 = vmatprep.subr.bf16.mxu0 0
        %3937 = vmatpush1.bf16.msra.mxu0 0
        %3938 = vmatprep.subr.bf16.mxu0 0
        %3939 = vmatpush1.bf16.msra.mxu0 0
        %3940 = vmatprep.subr.bf16.mxu0 0
        %3941 = vmatpush1.bf16.msra.mxu0 0
        %3942 = vmatprep.subr.bf16.mxu0 0
        %3943 = vmatpush1.bf16.msra.mxu0 0
        %3944 = vmatprep.subr.bf16.mxu0 0
        %3945 = vmatpush1.bf16.msra.mxu0 0
        %3946 = vmatprep.subr.bf16.mxu0 0
        %3947 = vmatpush1.bf16.msra.mxu0 0
        %3948 = vmatprep.subr.bf16.mxu0 0
        %3949 = vmatpush1.bf16.msra.mxu0 0
        %3950 = vmatprep.subr.bf16.mxu0 0
        %3951 = vmatpush1.bf16.msra.mxu0 0
        %3952 = vmatprep.mubr.bf16.mxu0 0
        %3953 = vmatmul.mubr.bf16.gmra.mrb[0].mxu0 %v3915
        %v3954 = vpop.f32.mrb[0].mxu0
        %v3955 = vadd.f32 0.0, %v3954
        %v3956 = vpop.f32.mrb[0].mxu0
        %v3957 = vpop.f32.mrb[0].mxu0
        %v3958 = vadd.f32 0.0, %v3957
        %v3959 = vpop.f32.mrb[0].mxu0
        %3960 = vmatprep.mubr.bf16.mxu0 0
        %3961 = vmatmul.mubr.bf16.gmra.mrb[0].mxu0 %v3918
        %v3962 = vpop.f32.mrb[0].mxu0
        %v3963 = vadd.f32 0.0, %v3962
        %v3964 = vpop.f32.mrb[0].mxu0
        %v3965 = vpop.f32.mrb[0].mxu0
        %v3966 = vadd.f32 0.0, %v3965
        %v3967 = vpop.f32.mrb[0].mxu0
        %3968 = vdwg.mxu0
        %v3973 = vunpack.c.l.b16 %v374
        %v3974 = vunpack.c.l.b16 %v375
        %v3975 = vunpack.c.l.b16 %v376
        %v3976 = vunpack.c.l.b16 %v377
        %v3977 = vpack.c.b16 %v3974, %v3973
        %v3978 = vpack.c.b16 %v3976, %v3975
        %v3980 = vsel %vm552, %v3977, 0
        %v3983 = vsel %vm552, %v3978, 0
        %3985 = vmatprep.subr.bf16.mxu0 0
        %3986 = vmatpush1.bf16.msra.mxu0 %v3900
        %3987 = vmatprep.subr.bf16.mxu0 0
        %3988 = vmatpush1.bf16.msra.mxu0 %v3901
        %3989 = vmatprep.subr.bf16.mxu0 0
        %3990 = vmatpush1.bf16.msra.mxu0 0
        %3991 = vmatprep.subr.bf16.mxu0 0
        %3992 = vmatpush1.bf16.msra.mxu0 0
        %3993 = vmatprep.subr.bf16.mxu0 0
        %3994 = vmatpush1.bf16.msra.mxu0 0
        %3995 = vmatprep.subr.bf16.mxu0 0
        %3996 = vmatpush1.bf16.msra.mxu0 0
        %3997 = vmatprep.subr.bf16.mxu0 0
        %3998 = vmatpush1.bf16.msra.mxu0 0
        %3999 = vmatprep.subr.bf16.mxu0 0
        %4000 = vmatpush1.bf16.msra.mxu0 0
        %4001 = vmatprep.subr.bf16.mxu0 0
        %4002 = vmatpush1.bf16.msra.mxu0 0
        %4003 = vmatprep.subr.bf16.mxu0 0
        %4004 = vmatpush1.bf16.msra.mxu0 0
        %4005 = vmatprep.subr.bf16.mxu0 0
        %4006 = vmatpush1.bf16.msra.mxu0 0
        %4007 = vmatprep.subr.bf16.mxu0 0
        %4008 = vmatpush1.bf16.msra.mxu0 0
        %4009 = vmatprep.subr.bf16.mxu0 0
        %4010 = vmatpush1.bf16.msra.mxu0 0
        %4011 = vmatprep.subr.bf16.mxu0 0
        %4012 = vmatpush1.bf16.msra.mxu0 0
        %4013 = vmatprep.subr.bf16.mxu0 0
        %4014 = vmatpush1.bf16.msra.mxu0 0
        %4015 = vmatprep.subr.bf16.mxu0 0
        %4016 = vmatpush1.bf16.msra.mxu0 0
        %4017 = vmatprep.mubr.bf16.mxu0 0
        %4018 = vmatmul.mubr.bf16.gmra.mrb[0].mxu0 %v3980
        %v4019 = vpop.f32.mrb[0].mxu0
        %v4020 = vadd.f32 %v3955, %v4019
        %v4021 = vpop.f32.mrb[0].mxu0
        %v4022 = vpop.f32.mrb[0].mxu0
        %v4023 = vadd.f32 %v3958, %v4022
        %v4024 = vpop.f32.mrb[0].mxu0
        %4025 = vmatprep.mubr.bf16.mxu0 0
        %4026 = vmatmul.mubr.bf16.gmra.mrb[0].mxu0 %v3983
        %v4027 = vpop.f32.mrb[0].mxu0
        %v4028 = vadd.f32 %v3963, %v4027
        %v4029 = vpop.f32.mrb[0].mxu0
        %v4030 = vpop.f32.mrb[0].mxu0
        %v4031 = vadd.f32 %v3966, %v4030
        %v4032 = vpop.f32.mrb[0].mxu0
        %4033 = vdwg.mxu0
        %4034 = vrot.lane.b32.xlu0 %v3880, 125
        %v4035 = vpop.permute.xlu0 %4034
        %4036 = vrot.lane.b32.xlu0 %v3881, 125
        %v4037 = vpop.permute.xlu0 %4036
        %4038 = vrot.lane.b32.xlu0 %v3882, 125
        %v4039 = vpop.permute.xlu0 %4038
        %4040 = vrot.lane.b32.xlu0 %v3883, 125
        %v4041 = vpop.permute.xlu0 %4040
        %v4042 = vlaneseq
        %v4043 = vshrl.u32 %v4042, 7
        %v4044 = vsub.s32 1, %v4043
        %v4045 = vrot.slane %v426, %v4044
        %v4046 = vmul.f32 %v4035, %v4045
        %v4047 = vmul.f32 %v4037, %v4045
        %v4048 = vmul.f32 %v4039, %v4045
        %v4049 = vmul.f32 %v4041, %v4045
        %v4050 = vpack.c.bf16 %v4047, %v4046
        %v4051 = vpack.c.bf16 %v4049, %v4048
        %v4056 = vunpack.c.l.b16 %v382
        %v4057 = vunpack.c.l.b16 %v383
        %v4058 = vunpack.c.l.b16 %v384
        %v4059 = vunpack.c.l.b16 %v385
        %v4060 = vpack.c.b16 %v4057, %v4056
        %v4061 = vpack.c.b16 %v4059, %v4058
        %v4063 = vsel %vm552, %v4060, 0
        %v4066 = vsel %vm552, %v4061, 0
        %4068 = vmatprep.subr.bf16.mxu0 0
        %4069 = vmatpush1.bf16.msra.mxu0 %v4050
        %4070 = vmatprep.subr.bf16.mxu0 0
        %4071 = vmatpush1.bf16.msra.mxu0 %v4051
        %4072 = vmatprep.subr.bf16.mxu0 0
        %4073 = vmatpush1.bf16.msra.mxu0 0
        %4074 = vmatprep.subr.bf16.mxu0 0
        %4075 = vmatpush1.bf16.msra.mxu0 0
        %4076 = vmatprep.subr.bf16.mxu0 0
        %4077 = vmatpush1.bf16.msra.mxu0 0
        %4078 = vmatprep.subr.bf16.mxu0 0
        %4079 = vmatpush1.bf16.msra.mxu0 0
        %4080 = vmatprep.subr.bf16.mxu0 0
        %4081 = vmatpush1.bf16.msra.mxu0 0
        %4082 = vmatprep.subr.bf16.mxu0 0
        %4083 = vmatpush1.bf16.msra.mxu0 0
        %4084 = vmatprep.subr.bf16.mxu0 0
        %4085 = vmatpush1.bf16.msra.mxu0 0
        %4086 = vmatprep.subr.bf16.mxu0 0
        %4087 = vmatpush1.bf16.msra.mxu0 0
        %4088 = vmatprep.subr.bf16.mxu0 0
        %4089 = vmatpush1.bf16.msra.mxu0 0
        %4090 = vmatprep.subr.bf16.mxu0 0
        %4091 = vmatpush1.bf16.msra.mxu0 0
        %4092 = vmatprep.subr.bf16.mxu0 0
        %4093 = vmatpush1.bf16.msra.mxu0 0
        %4094 = vmatprep.subr.bf16.mxu0 0
        %4095 = vmatpush1.bf16.msra.mxu0 0
        %4096 = vmatprep.subr.bf16.mxu0 0
        %4097 = vmatpush1.bf16.msra.mxu0 0
        %4098 = vmatprep.subr.bf16.mxu0 0
        %4099 = vmatpush1.bf16.msra.mxu0 0
        %4100 = vmatprep.mubr.bf16.mxu0 0
        %4101 = vmatmul.mubr.bf16.gmra.mrb[0].mxu0 %v4063
        %v4102 = vpop.f32.mrb[0].mxu0
        %v4103 = vadd.f32 0.0, %v4102
        %v4104 = vpop.f32.mrb[0].mxu0
        %v4105 = vpop.f32.mrb[0].mxu0
        %v4106 = vadd.f32 0.0, %v4105
        %v4107 = vpop.f32.mrb[0].mxu0
        %4108 = vmatprep.mubr.bf16.mxu0 0
        %4109 = vmatmul.mubr.bf16.gmra.mrb[0].mxu0 %v4066
        %v4110 = vpop.f32.mrb[0].mxu0
        %v4111 = vadd.f32 0.0, %v4110
        %v4112 = vpop.f32.mrb[0].mxu0
        %v4113 = vpop.f32.mrb[0].mxu0
        %v4114 = vadd.f32 0.0, %v4113
        %v4115 = vpop.f32.mrb[0].mxu0
        %4116 = vdwg.mxu0
        %v4117 = vadd.f32 %v4020, %v4103
        %v4118 = vadd.f32 %v4023, %v4106
        %v4119 = vadd.f32 %v4028, %v4111
        %v4120 = vadd.f32 %v4031, %v4114
        %4121 = vset.pattern.permute.xlu0 7
        %4122 = vperm.xlu0 %4121, %v418
        %v4123 = vpop.permute.xlu0 %4122
        %4125 = vset.pattern.permute.xlu0 7
        %4126 = vperm.xlu0 %4125, %v419
        %v4127 = vpop.permute.xlu0 %4126
        %4129 = vset.pattern.permute.xlu0 7
        %4130 = vperm.xlu0 %4129, %v420
        %v4131 = vpop.permute.xlu0 %4130
        %4133 = vset.pattern.permute.xlu0 7
        %4134 = vperm.xlu0 %4133, %v421
        %v4135 = vpop.permute.xlu0 %4134
        %v4137 = vadd.f32 %v4117, %v4123
        %v4138 = vadd.f32 %v4118, %v4127
        %v4139 = vadd.f32 %v4119, %v4131
        %v4140 = vadd.f32 %v4120, %v4135
        %v4141 = vmax.f32 %v4137, 0.0
        %v4142 = vmax.f32 %v4138, 0.0
        %v4143 = vmax.f32 %v4139, 0.0
        %v4144 = vmax.f32 %v4140, 0.0
        %v4145 = vpack.c.bf16 %v4142, %v4141
        %v4146 = vpack.c.bf16 %v4144, %v4143
        %v4151 = vunpack.c.l.b16 %v386
        %v4152 = vunpack.c.l.b16 %v387
        %v4153 = vunpack.c.l.b16 %v388
        %v4154 = vunpack.c.l.b16 %v389
        %v4155 = vpack.c.b16 %v4152, %v4151
        %v4156 = vpack.c.b16 %v4154, %v4153
        %v4158 = vsel %vm552, %v4155, 0
        %v4161 = vsel %vm552, %v4156, 0
        %4163 = vmatprep.subr.bf16.mxu0 0
        %4164 = vmatpush1.bf16.msra.mxu0 %v4145
        %4165 = vmatprep.subr.bf16.mxu0 0
        %4166 = vmatpush1.bf16.msra.mxu0 %v4146
        %4167 = vmatprep.subr.bf16.mxu0 0
        %4168 = vmatpush1.bf16.msra.mxu0 0
        %4169 = vmatprep.subr.bf16.mxu0 0
        %4170 = vmatpush1.bf16.msra.mxu0 0
        %4171 = vmatprep.subr.bf16.mxu0 0
        %4172 = vmatpush1.bf16.msra.mxu0 0
        %4173 = vmatprep.subr.bf16.mxu0 0
        %4174 = vmatpush1.bf16.msra.mxu0 0
        %4175 = vmatprep.subr.bf16.mxu0 0
        %4176 = vmatpush1.bf16.msra.mxu0 0
        %4177 = vmatprep.subr.bf16.mxu0 0
        %4178 = vmatpush1.bf16.msra.mxu0 0
        %4179 = vmatprep.subr.bf16.mxu0 0
        %4180 = vmatpush1.bf16.msra.mxu0 0
        %4181 = vmatprep.subr.bf16.mxu0 0
        %4182 = vmatpush1.bf16.msra.mxu0 0
        %4183 = vmatprep.subr.bf16.mxu0 0
        %4184 = vmatpush1.bf16.msra.mxu0 0
        %4185 = vmatprep.subr.bf16.mxu0 0
        %4186 = vmatpush1.bf16.msra.mxu0 0
        %4187 = vmatprep.subr.bf16.mxu0 0
        %4188 = vmatpush1.bf16.msra.mxu0 0
        %4189 = vmatprep.subr.bf16.mxu0 0
        %4190 = vmatpush1.bf16.msra.mxu0 0
        %4191 = vmatprep.subr.bf16.mxu0 0
        %4192 = vmatpush1.bf16.msra.mxu0 0
        %4193 = vmatprep.subr.bf16.mxu0 0
        %4194 = vmatpush1.bf16.msra.mxu0 0
        %4195 = vmatprep.mubr.bf16.mxu0 0
        %4196 = vmatmul.mubr.bf16.gmra.mrb[0].mxu0 %v4158
        %v4197 = vpop.f32.mrb[0].mxu0
        %v4198 = vadd.f32 0.0, %v4197
        %v4199 = vpop.f32.mrb[0].mxu0
        %v4200 = vpop.f32.mrb[0].mxu0
        %v4201 = vadd.f32 0.0, %v4200
        %v4202 = vpop.f32.mrb[0].mxu0
        %4203 = vmatprep.mubr.bf16.mxu0 0
        %4204 = vmatmul.mubr.bf16.gmra.mrb[0].mxu0 %v4161
        %v4205 = vpop.f32.mrb[0].mxu0
        %v4206 = vadd.f32 0.0, %v4205
        %v4207 = vpop.f32.mrb[0].mxu0
        %v4208 = vpop.f32.mrb[0].mxu0
        %v4209 = vadd.f32 0.0, %v4208
        %v4210 = vpop.f32.mrb[0].mxu0
        %4211 = vdwg.mxu0
        %v4212 = vadd.f32 %v3866, %v4198
        %v4213 = vadd.f32 %v3869, %v4201
        %v4214 = vadd.f32 %v3874, %v4206
        %v4215 = vadd.f32 %v3877, %v4209
        %4216 = vset.pattern.permute.xlu0 8
        %4217 = vperm.xlu0 %4216, %v418
        %v4218 = vpop.permute.xlu0 %4217
        %4220 = vset.pattern.permute.xlu0 8
        %4221 = vperm.xlu0 %4220, %v419
        %v4222 = vpop.permute.xlu0 %4221
        %4224 = vset.pattern.permute.xlu0 8
        %4225 = vperm.xlu0 %4224, %v420
        %v4226 = vpop.permute.xlu0 %4225
        %4228 = vset.pattern.permute.xlu0 8
        %4229 = vperm.xlu0 %4228, %v421
        %v4230 = vpop.permute.xlu0 %4229
        %v4232 = vadd.f32 %v4212, %v4218
        %v4233 = vadd.f32 %v4213, %v4222
        %v4234 = vadd.f32 %v4214, %v4226
        %v4235 = vadd.f32 %v4215, %v4230
        %v4236 = vmax.f32 %v4232, 0.0
        %v4237 = vmax.f32 %v4233, 0.0
        %v4238 = vmax.f32 %v4234, 0.0
        %v4239 = vmax.f32 %v4235, 0.0
        %4240 = vrot.lane.b32.xlu0 %v4236, 1
        %v4241 = vpop.permute.xlu0 %4240
        %4242 = vrot.lane.b32.xlu0 %v4237, 1
        %v4243 = vpop.permute.xlu0 %4242
        %4244 = vrot.lane.b32.xlu0 %v4238, 1
        %v4245 = vpop.permute.xlu0 %4244
        %4246 = vrot.lane.b32.xlu0 %v4239, 1
        %v4247 = vpop.permute.xlu0 %4246
        %v4248 = vlaneseq
        %v4249 = vshrl.u32 %v4248, 7
        %v4250 = vsub.s32 2, %v4249
        %v4251 = vrot.slane %v426, %v4250
        %v4252 = vmul.f32 %v4241, %v4251
        %v4253 = vmul.f32 %v4243, %v4251
        %v4254 = vmul.f32 %v4245, %v4251
        %v4255 = vmul.f32 %v4247, %v4251
        %v4256 = vpack.c.bf16 %v4253, %v4252
        %v4257 = vpack.c.bf16 %v4255, %v4254
        %v4258 = vpack.c.bf16 %v4237, %v4236
        %v4259 = vpack.c.bf16 %v4239, %v4238
        %v4264 = vunpack.c.l.b16 %v394
        %v4265 = vunpack.c.l.b16 %v395
        %v4266 = vunpack.c.l.b16 %v396
        %v4267 = vunpack.c.l.b16 %v397
        %v4268 = vpack.c.b16 %v4265, %v4264
        %v4269 = vpack.c.b16 %v4267, %v4266
        %v4271 = vsel %vm552, %v4268, 0
        %v4274 = vsel %vm552, %v4269, 0
        %4276 = vmatprep.subr.bf16.mxu0 0
        %4277 = vmatpush1.bf16.msra.mxu0 %v4258
        %4278 = vmatprep.subr.bf16.mxu0 0
        %4279 = vmatpush1.bf16.msra.mxu0 %v4259
        %4280 = vmatprep.subr.bf16.mxu0 0
        %4281 = vmatpush1.bf16.msra.mxu0 0
        %4282 = vmatprep.subr.bf16.mxu0 0
        %4283 = vmatpush1.bf16.msra.mxu0 0
        %4284 = vmatprep.subr.bf16.mxu0 0
        %4285 = vmatpush1.bf16.msra.mxu0 0
        %4286 = vmatprep.subr.bf16.mxu0 0
        %4287 = vmatpush1.bf16.msra.mxu0 0
        %4288 = vmatprep.subr.bf16.mxu0 0
        %4289 = vmatpush1.bf16.msra.mxu0 0
        %4290 = vmatprep.subr.bf16.mxu0 0
        %4291 = vmatpush1.bf16.msra.mxu0 0
        %4292 = vmatprep.subr.bf16.mxu0 0
        %4293 = vmatpush1.bf16.msra.mxu0 0
        %4294 = vmatprep.subr.bf16.mxu0 0
        %4295 = vmatpush1.bf16.msra.mxu0 0
        %4296 = vmatprep.subr.bf16.mxu0 0
        %4297 = vmatpush1.bf16.msra.mxu0 0
        %4298 = vmatprep.subr.bf16.mxu0 0
        %4299 = vmatpush1.bf16.msra.mxu0 0
        %4300 = vmatprep.subr.bf16.mxu0 0
        %4301 = vmatpush1.bf16.msra.mxu0 0
        %4302 = vmatprep.subr.bf16.mxu0 0
        %4303 = vmatpush1.bf16.msra.mxu0 0
        %4304 = vmatprep.subr.bf16.mxu0 0
        %4305 = vmatpush1.bf16.msra.mxu0 0
        %4306 = vmatprep.subr.bf16.mxu0 0
        %4307 = vmatpush1.bf16.msra.mxu0 0
        %4308 = vmatprep.mubr.bf16.mxu0 0
        %4309 = vmatmul.mubr.bf16.gmra.mrb[0].mxu0 %v4271
        %v4310 = vpop.f32.mrb[0].mxu0
        %v4311 = vadd.f32 0.0, %v4310
        %v4312 = vpop.f32.mrb[0].mxu0
        %v4313 = vpop.f32.mrb[0].mxu0
        %v4314 = vadd.f32 0.0, %v4313
        %v4315 = vpop.f32.mrb[0].mxu0
        %4316 = vmatprep.mubr.bf16.mxu0 0
        %4317 = vmatmul.mubr.bf16.gmra.mrb[0].mxu0 %v4274
        %v4318 = vpop.f32.mrb[0].mxu0
        %v4319 = vadd.f32 0.0, %v4318
        %v4320 = vpop.f32.mrb[0].mxu0
        %v4321 = vpop.f32.mrb[0].mxu0
        %v4322 = vadd.f32 0.0, %v4321
        %v4323 = vpop.f32.mrb[0].mxu0
        %4324 = vdwg.mxu0
        %v4329 = vunpack.c.l.b16 %v390
        %v4330 = vunpack.c.l.b16 %v391
        %v4331 = vunpack.c.l.b16 %v392
        %v4332 = vunpack.c.l.b16 %v393
        %v4333 = vpack.c.b16 %v4330, %v4329
        %v4334 = vpack.c.b16 %v4332, %v4331
        %v4336 = vsel %vm552, %v4333, 0
        %v4339 = vsel %vm552, %v4334, 0
        %4341 = vmatprep.subr.bf16.mxu0 0
        %4342 = vmatpush1.bf16.msra.mxu0 %v4256
        %4343 = vmatprep.subr.bf16.mxu0 0
        %4344 = vmatpush1.bf16.msra.mxu0 %v4257
        %4345 = vmatprep.subr.bf16.mxu0 0
        %4346 = vmatpush1.bf16.msra.mxu0 0
        %4347 = vmatprep.subr.bf16.mxu0 0
        %4348 = vmatpush1.bf16.msra.mxu0 0
        %4349 = vmatprep.subr.bf16.mxu0 0
        %4350 = vmatpush1.bf16.msra.mxu0 0
        %4351 = vmatprep.subr.bf16.mxu0 0
        %4352 = vmatpush1.bf16.msra.mxu0 0
        %4353 = vmatprep.subr.bf16.mxu0 0
        %4354 = vmatpush1.bf16.msra.mxu0 0
        %4355 = vmatprep.subr.bf16.mxu0 0
        %4356 = vmatpush1.bf16.msra.mxu0 0
        %4357 = vmatprep.subr.bf16.mxu0 0
        %4358 = vmatpush1.bf16.msra.mxu0 0
        %4359 = vmatprep.subr.bf16.mxu0 0
        %4360 = vmatpush1.bf16.msra.mxu0 0
        %4361 = vmatprep.subr.bf16.mxu0 0
        %4362 = vmatpush1.bf16.msra.mxu0 0
        %4363 = vmatprep.subr.bf16.mxu0 0
        %4364 = vmatpush1.bf16.msra.mxu0 0
        %4365 = vmatprep.subr.bf16.mxu0 0
        %4366 = vmatpush1.bf16.msra.mxu0 0
        %4367 = vmatprep.subr.bf16.mxu0 0
        %4368 = vmatpush1.bf16.msra.mxu0 0
        %4369 = vmatprep.subr.bf16.mxu0 0
        %4370 = vmatpush1.bf16.msra.mxu0 0
        %4371 = vmatprep.subr.bf16.mxu0 0
        %4372 = vmatpush1.bf16.msra.mxu0 0
        %4373 = vmatprep.mubr.bf16.mxu0 0
        %4374 = vmatmul.mubr.bf16.gmra.mrb[0].mxu0 %v4336
        %v4375 = vpop.f32.mrb[0].mxu0
        %v4376 = vadd.f32 %v4311, %v4375
        %v4377 = vpop.f32.mrb[0].mxu0
        %v4378 = vpop.f32.mrb[0].mxu0
        %v4379 = vadd.f32 %v4314, %v4378
        %v4380 = vpop.f32.mrb[0].mxu0
        %4381 = vmatprep.mubr.bf16.mxu0 0
        %4382 = vmatmul.mubr.bf16.gmra.mrb[0].mxu0 %v4339
        %v4383 = vpop.f32.mrb[0].mxu0
        %v4384 = vadd.f32 %v4319, %v4383
        %v4385 = vpop.f32.mrb[0].mxu0
        %v4386 = vpop.f32.mrb[0].mxu0
        %v4387 = vadd.f32 %v4322, %v4386
        %v4388 = vpop.f32.mrb[0].mxu0
        %4389 = vdwg.mxu0
        %4390 = vrot.lane.b32.xlu0 %v4236, 127
        %v4391 = vpop.permute.xlu0 %4390
        %4392 = vrot.lane.b32.xlu0 %v4237, 127
        %v4393 = vpop.permute.xlu0 %4392
        %4394 = vrot.lane.b32.xlu0 %v4238, 127
        %v4395 = vpop.permute.xlu0 %4394
        %4396 = vrot.lane.b32.xlu0 %v4239, 127
        %v4397 = vpop.permute.xlu0 %4396
        %v4398 = vlaneseq
        %v4399 = vshrl.u32 %v4398, 7
        %v4400 = vsub.s32 3, %v4399
        %v4401 = vrot.slane %v426, %v4400
        %v4402 = vmul.f32 %v4391, %v4401
        %v4403 = vmul.f32 %v4393, %v4401
        %v4404 = vmul.f32 %v4395, %v4401
        %v4405 = vmul.f32 %v4397, %v4401
        %v4406 = vpack.c.bf16 %v4403, %v4402
        %v4407 = vpack.c.bf16 %v4405, %v4404
        %v4412 = vunpack.c.l.b16 %v398
        %v4413 = vunpack.c.l.b16 %v399
        %v4414 = vunpack.c.l.b16 %v400
        %v4415 = vunpack.c.l.b16 %v401
        %v4416 = vpack.c.b16 %v4413, %v4412
        %v4417 = vpack.c.b16 %v4415, %v4414
        %v4419 = vsel %vm552, %v4416, 0
        %v4422 = vsel %vm552, %v4417, 0
        %4424 = vmatprep.subr.bf16.mxu0 0
        %4425 = vmatpush1.bf16.msra.mxu0 %v4406
        %4426 = vmatprep.subr.bf16.mxu0 0
        %4427 = vmatpush1.bf16.msra.mxu0 %v4407
        %4428 = vmatprep.subr.bf16.mxu0 0
        %4429 = vmatpush1.bf16.msra.mxu0 0
        %4430 = vmatprep.subr.bf16.mxu0 0
        %4431 = vmatpush1.bf16.msra.mxu0 0
        %4432 = vmatprep.subr.bf16.mxu0 0
        %4433 = vmatpush1.bf16.msra.mxu0 0
        %4434 = vmatprep.subr.bf16.mxu0 0
        %4435 = vmatpush1.bf16.msra.mxu0 0
        %4436 = vmatprep.subr.bf16.mxu0 0
        %4437 = vmatpush1.bf16.msra.mxu0 0
        %4438 = vmatprep.subr.bf16.mxu0 0
        %4439 = vmatpush1.bf16.msra.mxu0 0
        %4440 = vmatprep.subr.bf16.mxu0 0
        %4441 = vmatpush1.bf16.msra.mxu0 0
        %4442 = vmatprep.subr.bf16.mxu0 0
        %4443 = vmatpush1.bf16.msra.mxu0 0
        %4444 = vmatprep.subr.bf16.mxu0 0
        %4445 = vmatpush1.bf16.msra.mxu0 0
        %4446 = vmatprep.subr.bf16.mxu0 0
        %4447 = vmatpush1.bf16.msra.mxu0 0
        %4448 = vmatprep.subr.bf16.mxu0 0
        %4449 = vmatpush1.bf16.msra.mxu0 0
        %4450 = vmatprep.subr.bf16.mxu0 0
        %4451 = vmatpush1.bf16.msra.mxu0 0
        %4452 = vmatprep.subr.bf16.mxu0 0
        %4453 = vmatpush1.bf16.msra.mxu0 0
        %4454 = vmatprep.subr.bf16.mxu0 0
        %4455 = vmatpush1.bf16.msra.mxu0 0
        %4456 = vmatprep.mubr.bf16.mxu0 0
        %4457 = vmatmul.mubr.bf16.gmra.mrb[0].mxu0 %v4419
        %v4458 = vpop.f32.mrb[0].mxu0
        %v4459 = vadd.f32 0.0, %v4458
        %v4460 = vpop.f32.mrb[0].mxu0
        %v4461 = vpop.f32.mrb[0].mxu0
        %v4462 = vadd.f32 0.0, %v4461
        %v4463 = vpop.f32.mrb[0].mxu0
        %4464 = vmatprep.mubr.bf16.mxu0 0
        %4465 = vmatmul.mubr.bf16.gmra.mrb[0].mxu0 %v4422
        %v4466 = vpop.f32.mrb[0].mxu0
        %v4467 = vadd.f32 0.0, %v4466
        %v4468 = vpop.f32.mrb[0].mxu0
        %v4469 = vpop.f32.mrb[0].mxu0
        %v4470 = vadd.f32 0.0, %v4469
        %v4471 = vpop.f32.mrb[0].mxu0
        %4472 = vdwg.mxu0
        %v4473 = vadd.f32 %v4376, %v4459
        %v4474 = vadd.f32 %v4379, %v4462
        %v4475 = vadd.f32 %v4384, %v4467
        %v4476 = vadd.f32 %v4387, %v4470
        %4477 = vset.pattern.permute.xlu0 9
        %4478 = vperm.xlu0 %4477, %v418
        %v4479 = vpop.permute.xlu0 %4478
        %4481 = vset.pattern.permute.xlu0 9
        %4482 = vperm.xlu0 %4481, %v419
        %v4483 = vpop.permute.xlu0 %4482
        %4485 = vset.pattern.permute.xlu0 9
        %4486 = vperm.xlu0 %4485, %v420
        %v4487 = vpop.permute.xlu0 %4486
        %4489 = vset.pattern.permute.xlu0 9
        %4490 = vperm.xlu0 %4489, %v421
        %v4491 = vpop.permute.xlu0 %4490
        %v4493 = vadd.f32 %v4473, %v4479
        %v4494 = vadd.f32 %v4474, %v4483
        %v4495 = vadd.f32 %v4475, %v4487
        %v4496 = vadd.f32 %v4476, %v4491
        %v4497 = vmax.f32 %v4493, 0.0
        %v4498 = vmax.f32 %v4494, 0.0
        %v4499 = vmax.f32 %v4495, 0.0
        %v4500 = vmax.f32 %v4496, 0.0
        %v4501 = vpack.c.bf16 %v4498, %v4497
        %v4502 = vpack.c.bf16 %v4500, %v4499
        %v4507 = vunpack.c.l.b16 %v402
        %v4508 = vunpack.c.l.b16 %v403
        %v4509 = vunpack.c.l.b16 %v404
        %v4510 = vunpack.c.l.b16 %v405
        %v4511 = vpack.c.b16 %v4508, %v4507
        %v4512 = vpack.c.b16 %v4510, %v4509
        %v4514 = vsel %vm552, %v4511, 0
        %v4517 = vsel %vm552, %v4512, 0
        %4519 = vmatprep.subr.bf16.mxu0 0
        %4520 = vmatpush1.bf16.msra.mxu0 %v4501
        %4521 = vmatprep.subr.bf16.mxu0 0
        %4522 = vmatpush1.bf16.msra.mxu0 %v4502
        %4523 = vmatprep.subr.bf16.mxu0 0
        %4524 = vmatpush1.bf16.msra.mxu0 0
        %4525 = vmatprep.subr.bf16.mxu0 0
        %4526 = vmatpush1.bf16.msra.mxu0 0
        %4527 = vmatprep.subr.bf16.mxu0 0
        %4528 = vmatpush1.bf16.msra.mxu0 0
        %4529 = vmatprep.subr.bf16.mxu0 0
        %4530 = vmatpush1.bf16.msra.mxu0 0
        %4531 = vmatprep.subr.bf16.mxu0 0
        %4532 = vmatpush1.bf16.msra.mxu0 0
        %4533 = vmatprep.subr.bf16.mxu0 0
        %4534 = vmatpush1.bf16.msra.mxu0 0
        %4535 = vmatprep.subr.bf16.mxu0 0
        %4536 = vmatpush1.bf16.msra.mxu0 0
        %4537 = vmatprep.subr.bf16.mxu0 0
        %4538 = vmatpush1.bf16.msra.mxu0 0
        %4539 = vmatprep.subr.bf16.mxu0 0
        %4540 = vmatpush1.bf16.msra.mxu0 0
        %4541 = vmatprep.subr.bf16.mxu0 0
        %4542 = vmatpush1.bf16.msra.mxu0 0
        %4543 = vmatprep.subr.bf16.mxu0 0
        %4544 = vmatpush1.bf16.msra.mxu0 0
        %4545 = vmatprep.subr.bf16.mxu0 0
        %4546 = vmatpush1.bf16.msra.mxu0 0
        %4547 = vmatprep.subr.bf16.mxu0 0
        %4548 = vmatpush1.bf16.msra.mxu0 0
        %4549 = vmatprep.subr.bf16.mxu0 0
        %4550 = vmatpush1.bf16.msra.mxu0 0
        %4551 = vmatprep.mubr.bf16.mxu0 0
        %4552 = vmatmul.mubr.bf16.gmra.mrb[0].mxu0 %v4514
        %v4553 = vpop.f32.mrb[0].mxu0
        %v4554 = vadd.f32 0.0, %v4553
        %v4555 = vpop.f32.mrb[0].mxu0
        %v4556 = vpop.f32.mrb[0].mxu0
        %v4557 = vadd.f32 0.0, %v4556
        %v4558 = vpop.f32.mrb[0].mxu0
        %4559 = vmatprep.mubr.bf16.mxu0 0
        %4560 = vmatmul.mubr.bf16.gmra.mrb[0].mxu0 %v4517
        %v4561 = vpop.f32.mrb[0].mxu0
        %v4562 = vadd.f32 0.0, %v4561
        %v4563 = vpop.f32.mrb[0].mxu0
        %v4564 = vpop.f32.mrb[0].mxu0
        %v4565 = vadd.f32 0.0, %v4564
        %v4566 = vpop.f32.mrb[0].mxu0
        %4567 = vdwg.mxu0
        %v4568 = vadd.f32 %v4232, %v4554
        %v4569 = vadd.f32 %v4233, %v4557
        %v4570 = vadd.f32 %v4234, %v4562
        %v4571 = vadd.f32 %v4235, %v4565
        %4572 = vset.pattern.permute.xlu0 10
        %4573 = vperm.xlu0 %4572, %v418
        %v4574 = vpop.permute.xlu0 %4573
        %4576 = vset.pattern.permute.xlu0 10
        %4577 = vperm.xlu0 %4576, %v419
        %v4578 = vpop.permute.xlu0 %4577
        %4580 = vset.pattern.permute.xlu0 10
        %4581 = vperm.xlu0 %4580, %v420
        %v4582 = vpop.permute.xlu0 %4581
        %4584 = vset.pattern.permute.xlu0 10
        %4585 = vperm.xlu0 %4584, %v421
        %v4586 = vpop.permute.xlu0 %4585
        %v4588 = vadd.f32 %v4568, %v4574
        %v4589 = vadd.f32 %v4569, %v4578
        %v4590 = vadd.f32 %v4570, %v4582
        %v4591 = vadd.f32 %v4571, %v4586
        %4592 = vrot.lane.b32.xlu0 %v4588, 1
        %v4593 = vpop.permute.xlu0 %4592
        %4594 = vrot.lane.b32.xlu0 %v4589, 1
        %v4595 = vpop.permute.xlu0 %4594
        %4596 = vrot.lane.b32.xlu0 %v4590, 1
        %v4597 = vpop.permute.xlu0 %4596
        %4598 = vrot.lane.b32.xlu0 %v4591, 1
        %v4599 = vpop.permute.xlu0 %4598
        %v4600 = vmul.f32 %v4593, %v4251
        %v4601 = vmul.f32 %v4595, %v4251
        %v4602 = vmul.f32 %v4597, %v4251
        %v4603 = vmul.f32 %v4599, %v4251
        %v4604 = vpack.c.bf16 %v4601, %v4600
        %v4605 = vpack.c.bf16 %v4603, %v4602
        %v4606 = vpack.c.bf16 %v4589, %v4588
        %v4607 = vpack.c.bf16 %v4591, %v4590
        %v4612 = vunpack.c.l.b16 %v410
        %v4613 = vunpack.c.l.b16 %v411
        %v4614 = vunpack.c.l.b16 %v412
        %v4615 = vunpack.c.l.b16 %v413
        %v4616 = vpack.c.b16 %v4613, %v4612
        %v4617 = vpack.c.b16 %v4615, %v4614
        %v4619 = vsel %vm552, %v4616, 0
        %v4622 = vsel %vm552, %v4617, 0
        %4624 = vmatprep.subr.bf16.mxu0 0
        %4625 = vmatpush1.bf16.msra.mxu0 %v4606
        %4626 = vmatprep.subr.bf16.mxu0 0
        %4627 = vmatpush1.bf16.msra.mxu0 %v4607
        %4628 = vmatprep.subr.bf16.mxu0 0
        %4629 = vmatpush1.bf16.msra.mxu0 0
        %4630 = vmatprep.subr.bf16.mxu0 0
        %4631 = vmatpush1.bf16.msra.mxu0 0
        %4632 = vmatprep.subr.bf16.mxu0 0
        %4633 = vmatpush1.bf16.msra.mxu0 0
        %4634 = vmatprep.subr.bf16.mxu0 0
        %4635 = vmatpush1.bf16.msra.mxu0 0
        %4636 = vmatprep.subr.bf16.mxu0 0
        %4637 = vmatpush1.bf16.msra.mxu0 0
        %4638 = vmatprep.subr.bf16.mxu0 0
        %4639 = vmatpush1.bf16.msra.mxu0 0
        %4640 = vmatprep.subr.bf16.mxu0 0
        %4641 = vmatpush1.bf16.msra.mxu0 0
        %4642 = vmatprep.subr.bf16.mxu0 0
        %4643 = vmatpush1.bf16.msra.mxu0 0
        %4644 = vmatprep.subr.bf16.mxu0 0
        %4645 = vmatpush1.bf16.msra.mxu0 0
        %4646 = vmatprep.subr.bf16.mxu0 0
        %4647 = vmatpush1.bf16.msra.mxu0 0
        %4648 = vmatprep.subr.bf16.mxu0 0
        %4649 = vmatpush1.bf16.msra.mxu0 0
        %4650 = vmatprep.subr.bf16.mxu0 0
        %4651 = vmatpush1.bf16.msra.mxu0 0
        %4652 = vmatprep.subr.bf16.mxu0 0
        %4653 = vmatpush1.bf16.msra.mxu0 0
        %4654 = vmatprep.subr.bf16.mxu0 0
        %4655 = vmatpush1.bf16.msra.mxu0 0
        %4656 = vmatprep.mubr.bf16.mxu0 0
        %4657 = vmatmul.mubr.bf16.gmra.mrb[0].mxu0 %v4619
        %v4658 = vpop.f32.mrb[0].mxu0
        %v4659 = vadd.f32 0.0, %v4658
        %v4660 = vpop.f32.mrb[0].mxu0
        %v4661 = vpop.f32.mrb[0].mxu0
        %v4662 = vadd.f32 0.0, %v4661
        %v4663 = vpop.f32.mrb[0].mxu0
        %4664 = vmatprep.mubr.bf16.mxu0 0
        %4665 = vmatmul.mubr.bf16.gmra.mrb[0].mxu0 %v4622
        %v4666 = vpop.f32.mrb[0].mxu0
        %v4667 = vadd.f32 0.0, %v4666
        %v4668 = vpop.f32.mrb[0].mxu0
        %v4669 = vpop.f32.mrb[0].mxu0
        %v4670 = vadd.f32 0.0, %v4669
        %v4671 = vpop.f32.mrb[0].mxu0
        %4672 = vdwg.mxu0
        %v4677 = vunpack.c.l.b16 %v406
        %v4678 = vunpack.c.l.b16 %v407
        %v4679 = vunpack.c.l.b16 %v408
        %v4680 = vunpack.c.l.b16 %v409
        %v4681 = vpack.c.b16 %v4678, %v4677
        %v4682 = vpack.c.b16 %v4680, %v4679
        %v4684 = vsel %vm552, %v4681, 0
        %v4687 = vsel %vm552, %v4682, 0
        %4689 = vmatprep.subr.bf16.mxu0 0
        %4690 = vmatpush1.bf16.msra.mxu0 %v4604
        %4691 = vmatprep.subr.bf16.mxu0 0
        %4692 = vmatpush1.bf16.msra.mxu0 %v4605
        %4693 = vmatprep.subr.bf16.mxu0 0
        %4694 = vmatpush1.bf16.msra.mxu0 0
        %4695 = vmatprep.subr.bf16.mxu0 0
        %4696 = vmatpush1.bf16.msra.mxu0 0
        %4697 = vmatprep.subr.bf16.mxu0 0
        %4698 = vmatpush1.bf16.msra.mxu0 0
        %4699 = vmatprep.subr.bf16.mxu0 0
        %4700 = vmatpush1.bf16.msra.mxu0 0
        %4701 = vmatprep.subr.bf16.mxu0 0
        %4702 = vmatpush1.bf16.msra.mxu0 0
        %4703 = vmatprep.subr.bf16.mxu0 0
        %4704 = vmatpush1.bf16.msra.mxu0 0
        %4705 = vmatprep.subr.bf16.mxu0 0
        %4706 = vmatpush1.bf16.msra.mxu0 0
        %4707 = vmatprep.subr.bf16.mxu0 0
        %4708 = vmatpush1.bf16.msra.mxu0 0
        %4709 = vmatprep.subr.bf16.mxu0 0
        %4710 = vmatpush1.bf16.msra.mxu0 0
        %4711 = vmatprep.subr.bf16.mxu0 0
        %4712 = vmatpush1.bf16.msra.mxu0 0
        %4713 = vmatprep.subr.bf16.mxu0 0
        %4714 = vmatpush1.bf16.msra.mxu0 0
        %4715 = vmatprep.subr.bf16.mxu0 0
        %4716 = vmatpush1.bf16.msra.mxu0 0
        %4717 = vmatprep.subr.bf16.mxu0 0
        %4718 = vmatpush1.bf16.msra.mxu0 0
        %4719 = vmatprep.subr.bf16.mxu0 0
        %4720 = vmatpush1.bf16.msra.mxu0 0
        %4721 = vmatprep.mubr.bf16.mxu0 0
        %4722 = vmatmul.mubr.bf16.gmra.mrb[0].mxu0 %v4684
        %v4723 = vpop.f32.mrb[0].mxu0
        %v4724 = vadd.f32 %v4659, %v4723
        %v4725 = vpop.f32.mrb[0].mxu0
        %v4726 = vpop.f32.mrb[0].mxu0
        %v4727 = vadd.f32 %v4662, %v4726
        %v4728 = vpop.f32.mrb[0].mxu0
        %4729 = vmatprep.mubr.bf16.mxu0 0
        %4730 = vmatmul.mubr.bf16.gmra.mrb[0].mxu0 %v4687
        %v4731 = vpop.f32.mrb[0].mxu0
        %v4732 = vadd.f32 %v4667, %v4731
        %v4733 = vpop.f32.mrb[0].mxu0
        %v4734 = vpop.f32.mrb[0].mxu0
        %v4735 = vadd.f32 %v4670, %v4734
        %v4736 = vpop.f32.mrb[0].mxu0
        %4737 = vdwg.mxu0
        %4738 = vrot.lane.b32.xlu0 %v4588, 127
        %v4739 = vpop.permute.xlu0 %4738
        %4740 = vrot.lane.b32.xlu0 %v4589, 127
        %v4741 = vpop.permute.xlu0 %4740
        %4742 = vrot.lane.b32.xlu0 %v4590, 127
        %v4743 = vpop.permute.xlu0 %4742
        %4744 = vrot.lane.b32.xlu0 %v4591, 127
        %v4745 = vpop.permute.xlu0 %4744
        %v4746 = vmul.f32 %v4739, %v4401
        %v4747 = vmul.f32 %v4741, %v4401
        %v4748 = vmul.f32 %v4743, %v4401
        %v4749 = vmul.f32 %v4745, %v4401
        %v4750 = vpack.c.bf16 %v4747, %v4746
        %v4751 = vpack.c.bf16 %v4749, %v4748
        %v4756 = vunpack.c.l.b16 %v414
        %v4757 = vunpack.c.l.b16 %v415
        %v4758 = vunpack.c.l.b16 %v416
        %v4759 = vunpack.c.l.b16 %v417
        %v4760 = vpack.c.b16 %v4757, %v4756
        %v4761 = vpack.c.b16 %v4759, %v4758
        %v4763 = vsel %vm552, %v4760, 0
        %v4766 = vsel %vm552, %v4761, 0
        %4768 = vmatprep.subr.bf16.mxu0 0
        %4769 = vmatpush1.bf16.msra.mxu0 %v4750
        %4770 = vmatprep.subr.bf16.mxu0 0
        %4771 = vmatpush1.bf16.msra.mxu0 %v4751
        %4772 = vmatprep.subr.bf16.mxu0 0
        %4773 = vmatpush1.bf16.msra.mxu0 0
        %4774 = vmatprep.subr.bf16.mxu0 0
        %4775 = vmatpush1.bf16.msra.mxu0 0
        %4776 = vmatprep.subr.bf16.mxu0 0
        %4777 = vmatpush1.bf16.msra.mxu0 0
        %4778 = vmatprep.subr.bf16.mxu0 0
        %4779 = vmatpush1.bf16.msra.mxu0 0
        %4780 = vmatprep.subr.bf16.mxu0 0
        %4781 = vmatpush1.bf16.msra.mxu0 0
        %4782 = vmatprep.subr.bf16.mxu0 0
        %4783 = vmatpush1.bf16.msra.mxu0 0
        %4784 = vmatprep.subr.bf16.mxu0 0
        %4785 = vmatpush1.bf16.msra.mxu0 0
        %4786 = vmatprep.subr.bf16.mxu0 0
        %4787 = vmatpush1.bf16.msra.mxu0 0
        %4788 = vmatprep.subr.bf16.mxu0 0
        %4789 = vmatpush1.bf16.msra.mxu0 0
        %4790 = vmatprep.subr.bf16.mxu0 0
        %4791 = vmatpush1.bf16.msra.mxu0 0
        %4792 = vmatprep.subr.bf16.mxu0 0
        %4793 = vmatpush1.bf16.msra.mxu0 0
        %4794 = vmatprep.subr.bf16.mxu0 0
        %4795 = vmatpush1.bf16.msra.mxu0 0
        %4796 = vmatprep.subr.bf16.mxu0 0
        %4797 = vmatpush1.bf16.msra.mxu0 0
        %4798 = vmatprep.subr.bf16.mxu0 0
        %4799 = vmatpush1.bf16.msra.mxu0 0
        %4800 = vmatprep.mubr.bf16.mxu0 0
        %4801 = vmatmul.mubr.bf16.gmra.mrb[0].mxu0 %v4763
        %v4802 = vpop.f32.mrb[0].mxu0
        %v4803 = vadd.f32 0.0, %v4802
        %v4804 = vpop.f32.mrb[0].mxu0
        %v4805 = vpop.f32.mrb[0].mxu0
        %v4806 = vadd.f32 0.0, %v4805
        %v4807 = vpop.f32.mrb[0].mxu0
        %4808 = vmatprep.mubr.bf16.mxu0 0
        %4809 = vmatmul.mubr.bf16.gmra.mrb[0].mxu0 %v4766
        %v4810 = vpop.f32.mrb[0].mxu0
        %v4811 = vadd.f32 0.0, %v4810
        %v4812 = vpop.f32.mrb[0].mxu0
        %v4813 = vpop.f32.mrb[0].mxu0
        %v4814 = vadd.f32 0.0, %v4813
        %v4815 = vpop.f32.mrb[0].mxu0
        %4816 = vdwg.mxu0
        %v4817 = vadd.f32 %v4724, %v4803
        %v4818 = vadd.f32 %v4727, %v4806
        %v4819 = vadd.f32 %v4732, %v4811
        %v4820 = vadd.f32 %v4735, %v4814
        %4821 = vset.pattern.permute.xlu0 11
        %4822 = vperm.xlu0 %4821, %v418
        %v4823 = vpop.permute.xlu0 %4822
        %4825 = vset.pattern.permute.xlu0 11
        %4826 = vperm.xlu0 %4825, %v419
        %v4827 = vpop.permute.xlu0 %4826
        %4829 = vset.pattern.permute.xlu0 11
        %4830 = vperm.xlu0 %4829, %v420
        %v4831 = vpop.permute.xlu0 %4830
        %4833 = vset.pattern.permute.xlu0 11
        %4834 = vperm.xlu0 %4833, %v421
        %v4835 = vpop.permute.xlu0 %4834
        %v4837 = vadd.f32 %v4817, %v4823
        %v4838 = vadd.f32 %v4818, %v4827
        %v4839 = vadd.f32 %v4819, %v4831
        %v4840 = vadd.f32 %v4820, %v4835
        %4841 = vst [vmem:[%s295] sm:$0xff] %v4837
        %4842 = vst [vmem:[%s295 + $0x8] sm:$0xff] %v4838
        %4843 = vst [vmem:[%s295 + $0x10] sm:$0xff] %v4839
        %4844 = vst [vmem:[%s295 + $0x18] sm:$0xff] %v4840
        %s4845 = sand.u32 %s156, 1
        %s4846 = sand.u32 %s156, 1
        %s4847 = smul.addr %s4846, 32
        %s4848 = scalar_lea.vmem [#allocation3], %s4847
        // Predicated region
        $region68: #{_lambda_.1} parent=62 // pred_check
          %p4849 = pneg %p166
        $region69: #{_lambda_.1} parent=62 // pred_check_branch
          %4851 = sbr.rel (%p4849) target = $region71
        $region70: #{_lambda_.1} parent=62 // pred_region
          %s4852 = smul.addr %s17, 8
          %s4853 = scalar_lea.vmem %s6, %s4852
          // Predicated region
          $region72: #{_lambda_.1} parent=70 // pred_check
            _
          $region73: #{_lambda_.1} parent=70 // pred_check_branch
            %4855 = sbr.rel (0) target = $region75
          $region74: #{_lambda_.1} parent=70 // pred_region
            // Predicated region
            $region76: #{_lambda_.1} parent=74 // pred_check
              _
            $region77: #{_lambda_.1} parent=74 // pred_check_branch
              %4857 = sbr.rel (0) target = $region79
            $region78: #{_lambda_.1} parent=74 // pred_region
              // Predicated region
              $region91: #{_lambda_.1} parent=78 // pred_check
                _
              $region92: #{_lambda_.1} parent=78 // pred_check_branch
                %4878 = sbr.rel (0) target = $region94
              $region93: #{_lambda_.1} parent=78 // pred_region
                loop: start=0, step=1, limit=1
                $region95: #{_lambda_.1} parent=93 // loop_pre_header
                  _
                $region96: #{_lambda_.1} parent=93 // loop_header
                  %s4880 = sphi 0, %s4884
                  %p4881 = scmp.ge.s32.totalorder %s4880, 1
                  %s4885 = sphi %s4848, %s4848
                  %s4886 = sphi %s4853, %s4853
                $region97: #{_lambda_.1} parent=93 // loop_header_branch
                  %4883 = sbr.rel (%p4881) target = $region101
                $region98: #{_lambda_.1} parent=93 // loop_body
                  %v4887 = vld [vmem:[%s4885] sm:$0xff]
                  %4888 = vst [vmem:[%s4886] sm:$0xff] %v4887
                  %v4889 = vld [vmem:[%s4885 + $0x8] sm:$0xff]
                  %4890 = vst [vmem:[%s4886 + $0x10] sm:$0xff] %v4889
                  %v4891 = vld [vmem:[%s4885 + $0x10] sm:$0xff]
                  %4892 = vst [vmem:[%s4886 + $0x20] sm:$0xff] %v4891
                  %v4893 = vld [vmem:[%s4885 + $0x18] sm:$0xff]
                  %4894 = vst [vmem:[%s4886 + $0x30] sm:$0xff] %v4893
                $region99: #{_lambda_.1} parent=93 // loop_footer
                  %s4884 = sadd.s32 1, %s4880
                $region100: #{_lambda_.1} parent=93 // loop_footer_branch
                  %4879 = sbr.rel target = $region96
                $region101: #{_lambda_.1} parent=93 // loop_exit
                  _
              $region94: #{_lambda_.1} parent=78 // pred_fallthru
                _
              // Predicated region
              $region102: #{_lambda_.1} parent=78 // pred_check
                _
              $region103: #{_lambda_.1} parent=78 // pred_check_branch
                %4896 = sbr.rel target = $region105
              $region104: #{_lambda_.1} parent=78 // pred_region
                _
              $region105: #{_lambda_.1} parent=78 // pred_fallthru
                _
            $region79: #{_lambda_.1} parent=74 // pred_fallthru
              _
            // Predicated region
            $region80: #{_lambda_.1} parent=74 // pred_check
              _
            $region81: #{_lambda_.1} parent=74 // pred_check_branch
              %4859 = sbr.rel target = $region83
            $region82: #{_lambda_.1} parent=74 // pred_region
              loop: start=0, step=1, limit=1
              $region84: #{_lambda_.1} parent=82 // loop_pre_header
                _
              $region85: #{_lambda_.1} parent=82 // loop_header
                %s4862 = sphi 0, %s4866
                %p4863 = scmp.ge.s32.totalorder %s4862, 1
                %s4867 = sphi %s4848, %s4848
                %s4868 = sphi %s4853, %s4853
              $region86: #{_lambda_.1} parent=82 // loop_header_branch
                %4865 = sbr.rel (%p4863) target = $region90
              $region87: #{_lambda_.1} parent=82 // loop_body
                %v4869 = vld [vmem:[%s4867] sm:$0xff]
                %4870 = vst [vmem:[%s4868] sm:$0xff] %v4869
                %v4871 = vld [vmem:[%s4867 + $0x8] sm:$0xff]
                %4872 = vst [vmem:[%s4868 + $0x10] sm:$0xff] %v4871
                %v4873 = vld [vmem:[%s4867 + $0x10] sm:$0xff]
                %4874 = vst [vmem:[%s4868 + $0x20] sm:$0xff] %v4873
                %v4875 = vld [vmem:[%s4867 + $0x18] sm:$0xff]
                %4876 = vst [vmem:[%s4868 + $0x30] sm:$0xff] %v4875
              $region88: #{_lambda_.1} parent=82 // loop_footer
                %s4866 = sadd.s32 1, %s4862
              $region89: #{_lambda_.1} parent=82 // loop_footer_branch
                %4861 = sbr.rel target = $region85
              $region90: #{_lambda_.1} parent=82 // loop_exit
                _
            $region83: #{_lambda_.1} parent=74 // pred_fallthru
              _
          $region75: #{_lambda_.1} parent=70 // pred_fallthru
            _
          %4897 = vnop
        $region71: #{_lambda_.1} parent=62 // pred_fallthru
          _
      $region63: #{_lambda_.1} parent=5 // pred_fallthru
        _
      %p4898 = scmp.le.s32.totalorder 2, %s12
      // Predicated region
      $region106: #{_lambda_.1} parent=5 // pred_check
        %p4899 = pneg %p4898
      $region107: #{_lambda_.1} parent=5 // pred_check_branch
        %4901 = sbr.rel (%p4899) target = $region109
      $region108: #{_lambda_.1} parent=5 // pred_region
        %s4902 = ssub.s32 %s12, 2
        // Predicated region
        $region110: #{_lambda_.1} parent=108 // pred_check
          %p4903 = pneg %p172
        $region111: #{_lambda_.1} parent=108 // pred_check_branch
          %4905 = sbr.rel (%p4903) target = $region113
        $region112: #{_lambda_.1} parent=108 // pred_region
          %s4906 = sand.u32 %s157, 1
          %s4907 = sand.u32 %s157, 1
          %s4908 = smul.addr %s4907, 32
          %s4909 = scalar_lea.vmem [#allocation3], %s4908
        $region113: #{_lambda_.1} parent=108 // pred_fallthru
          _
      $region109: #{_lambda_.1} parent=5 // pred_fallthru
        _
    $region6: #{_lambda_.1} parent=1 // loop_footer
      %s16 = sadd.s32 1, %s12
    $region7: #{_lambda_.1} parent=1 // loop_footer_branch
      %11 = sbr.rel target = $region3
    $region8: #{_lambda_.1} parent=1 // loop_exit
      _

</llo_original>
